<compile_context>
chip_gen: v5e
topology: v5e:2x2
jax: 0.10.0
libtpu: 0.0.40
codegen_flags: <defaults>
</compile_context>

<pallas_src>
import functools

import numpy as np
import jax
import jax.numpy as jnp
from jax import lax
from jax.experimental import pallas as pl
from jax.experimental.pallas import tpu as pltpu

_IN_HW = 32                                   # input spatial size (32x32), implied by .view(-1, 256)
_LAYERS = ((32, 3, 8), (16, 8, 16), (8, 16, 16))   # (W_in, Cin, Cout) of the three stride-2 convs
TILE_B = 32                                   # images per grid step


# ------------------------------ fused kernel --------------------------------

def _fused_forward_kernel(x_ref, cw_ref, w1_ref, sm_ref, out_ref,
                          a1_ref, a2_ref, a3_ref, *, tile_b):
    f32 = jnp.float32

    def conv_layer(src_ref, ho, n_out, col0, bias_row):
        """Stride-2 3x3 conv + bias + ReLU, batched over images along sublanes.

        src_ref rows are (image, input_row) with per-image pitch 2*ho; columns are
        (w, cin) with K = 128.  Output value is (tile_b*ho, n_out), rows (image, out_row),
        columns (wo, cout).

        out[ho] = xpad[2ho]@M0 + xpad[2ho+1]@M1 + xpad[2ho+2]@M2 with
          xpad[2ho]   = x[2ho-1]  (odd input rows, shifted down; zero pad for ho == 0)
          xpad[2ho+1] = x[2ho]    (even input rows)
          xpad[2ho+2] = x[2ho+1]  (odd input rows)
        The bottom/right pad rows/cols of a k3/s2/p1 conv with even extents are never used,
        and the top/left pads are zero -> padding is folded into the weight panels.
        """
        count = tile_b * ho
        even_rows = src_ref[pl.ds(0, count, stride=2), :]        # x[2j]   per image
        odd_rows = src_ref[pl.ds(1, count, stride=2), :]         # x[2j+1] per image
        # [M0 | M2] packed along N (256-wide MXU pass), M1 separate.
        both = jnp.dot(odd_rows, cw_ref[:, col0:col0 + 2 * n_out],
                       preferred_element_type=f32)
        top = both[:, :n_out]                                    # x[2j+1] @ M0 -> out row j+1
        bot = both[:, n_out:]                                    # x[2j+1] @ M2 -> out row j
        mid = jnp.dot(even_rows, cw_ref[:, col0 + 2 * n_out:col0 + 3 * n_out],
                      preferred_element_type=f32)                # x[2j]   @ M1 -> out row j
        # realign the kernel-row-0 term: shift down one output row, zero the first row/image
        top = pltpu.roll(top, shift=1, axis=0)
        rows = lax.broadcasted_iota(jnp.int32, (count, n_out), 0)
        top = jnp.where(rows % ho != 0, top, 0.0)
        return jnp.maximum(top + mid + bot + bias_row, 0.0)

    # conv1: 32x32x3 -> 16x16x8   (rows (b, h), cols (w, c))
    a1_ref[...] = conv_layer(x_ref, 16, 128, 0, sm_ref[0:1, 0:128])
    # conv2: 16x16x8 -> 8x8x16
    a2_ref[...] = conv_layer(a1_ref, 8, 128, 384, sm_ref[1:2, 0:128])
    # conv3: 8x8x16 -> 4x4x16
    a3_ref[...] = conv_layer(a2_ref, 4, 64, 768, sm_ref[2:3, 0:64])

    # FC1: the NCHW .view(-1, 256) flatten is absorbed into the (pre-permuted, HWC-ordered)
    # fc1 weight; the per-image h rows are gathered with stride-4 reads (batch along M).
    fc1 = jnp.zeros((tile_b, 16), f32)
    for h in range(4):
        fc1 = fc1 + jnp.dot(a3_ref[pl.ds(h, tile_b, stride=4), :],
                            w1_ref[h * 64:(h + 1) * 64, :],
                            preferred_element_type=f32)
    fc1 = jnp.maximum(fc1 + sm_ref[3:4, 0:16], 0.0)

    # FC2 + softmax, computed transposed: (2, tile_b) so the output store is lane-dense.
    w2r = sm_ref[4:6, 0:16]                                      # (2, 16)  = torch fc2 weight
    b2 = sm_ref[4:6, 16:17]                                      # (2, 1)
    logits_t = lax.dot_general(w2r, fc1, (((1,), (1,)), ((), ())),
                               preferred_element_type=f32) + b2  # (2, tile_b)
    # TODO(synk): trailing ReLU assumed from FullyConnectedLayerSS = Linear + ReLU
    logits_t = jnp.maximum(logits_t, 0.0)
    z = logits_t - jnp.max(logits_t, axis=0, keepdims=True)
    e = jnp.exp(z)
    out_ref[0] = e / jnp.sum(e, axis=0, keepdims=True)           # exact normalization


# ------------------------- parameter / constant prep ------------------------

def init_params(key):
    """Deterministic synthetic parameters in PyTorch layouts."""
    keys = jax.random.split(key, 10)
    down = []
    for i, (_, cin, cout) in enumerate(_LAYERS):
        w = 0.1 * jax.random.normal(keys[2 * i], (cout, cin, 3, 3), jnp.float32)
        b = 0.05 * jax.random.normal(keys[2 * i + 1], (cout,), jnp.float32)
        down.append((w, b))
    fc = []
    for i, (fin, fout) in enumerate(((256, 16), (16, 2))):
        w = 0.1 * jax.random.normal(keys[6 + 2 * i], (fout, fin), jnp.float32)
        b = 0.05 * jax.random.normal(keys[7 + 2 * i], (fout,), jnp.float32)
        fc.append((w, b))
    return {"down": down, "fc": fc}


def build_kernel_params(params):
    """One-time conversion of PyTorch-layout params into the kernel's packed constants."""
    # Packed conv panels: for each layer, columns [M0 | M2 | M1], each (K=128, n_out).
    cw = np.zeros((128, 1024), np.float32)
    small = np.zeros((8, 128), np.float32)
    col = 0
    for li, ((w_pt, b_pt), (W, cin, cout)) in enumerate(zip(params["down"], _LAYERS)):
        w = np.asarray(w_pt, np.float32)                 # (Cout, Cin, 3, 3)
        b = np.asarray(b_pt, np.float32)
        wo_n = W // 2
        n_out = wo_n * cout
        M = np.zeros((3, 128, n_out), np.float32)        # K padded to 128 (layer 1: 96 real rows)
        for di in range(3):
            for wo in range(wo_n):
                for dj in range(3):
                    wcol = 2 * wo + dj - 1               # stride-2 + left-pad folded in
                    if 0 <= wcol < W:
                        M[di, wcol * cin:(wcol + 1) * cin,
                          wo * cout:(wo + 1) * cout] = w[:, :, di, dj].T
        cw[:, col:col + n_out] = M[0]
        cw[:, col + n_out:col + 2 * n_out] = M[2]
        cw[:, col + 2 * n_out:col + 3 * n_out] = M[1]
        col += 3 * n_out
        small[li, :n_out] = np.tile(b, wo_n)             # bias row, index wo*Cout + co

    (w1_pt, b1), (w2_pt, b2) = params["fc"]
    w1_pt = np.asarray(w1_pt, np.float32)                # (16, 256), inputs flat in CHW order
    n = np.arange(256)
    # kernel (HWC) row index n = h*64 + w*16 + c  ->  torch (CHW) index c*16 + h*4 + w
    old = (n % 16) * 16 + (n // 64) * 4 + ((n % 64) // 16)
    w1a = w1_pt.T[old]                                   # (256, 16), rows in HWC order
    small[3, :16] = np.asarray(b1, np.float32).reshape(-1)
    small[4:6, 0:16] = np.asarray(w2_pt, np.float32)     # (2, 16)
    small[4:6, 16] = np.asarray(b2, np.float32).reshape(-1)

    return dict(cw=jnp.asarray(cw), w1=jnp.asarray(w1a), small=jnp.asarray(small))


# --------------------------------- forward ----------------------------------

@functools.partial(jax.jit, static_argnames=("tile_b",))
def separate_model_forward(kparams, x_nchw, tile_b=TILE_B):
    b = x_nchw.shape[0]
    bp = ((b + tile_b - 1) // tile_b) * tile_b           # pad batch to a multiple of tile_b
    steps = bp // tile_b
    # Layout plumbing only (tiny, on the raw input): NCHW -> (B*32, 128) HWC row slab,
    # lane-padded 96 -> 128; no H/W pad rows (padding is folded into the weight panels).
    x = jnp.transpose(x_nchw, (0, 2, 3, 1)).reshape(b, _IN_HW, _IN_HW * 3)
    x = jnp.pad(x, ((0, bp - b), (0, 0), (0, 128 - _IN_HW * 3)))
    x = x.reshape(bp * _IN_HW, 128)

    out = pl.pallas_call(
        functools.partial(_fused_forward_kernel, tile_b=tile_b),
        out_shape=jax.ShapeDtypeStruct((steps, 2, tile_b), jnp.float32),
        grid_spec=pltpu.PrefetchScalarGridSpec(
            num_scalar_prefetch=0,
            grid=(steps,),
            in_specs=[
                pl.BlockSpec((tile_b * _IN_HW, 128), lambda i: (i, 0)),   # input slab
                pl.BlockSpec((128, 1024), lambda i: (0, 0)),              # packed conv panels
                pl.BlockSpec((256, 16), lambda i: (0, 0)),                # fc1 weight (HWC rows)
                pl.BlockSpec((8, 128), lambda i: (0, 0)),                 # biases + fc2
            ],
            out_specs=pl.BlockSpec((1, 2, tile_b), lambda i: (i, 0, 0)),
            scratch_shapes=[
                pltpu.VMEM((tile_b * 16, 128), jnp.float32),              # conv1 activations
                pltpu.VMEM((tile_b * 8, 128), jnp.float32),               # conv2 activations
                pltpu.VMEM((tile_b * 4, 64), jnp.float32),                # conv3 activations
            ],
        ),
        compiler_params=pltpu.CompilerParams(dimension_semantics=("parallel",)),
    )(x, kparams["cw"], kparams["w1"], kparams["small"])

    probs = jnp.transpose(out, (0, 2, 1)).reshape(bp, 2)  # (steps, 2, tile_b) -> (bp, 2)
    return probs[:b]


# --------------------------- pure-JAX reference ------------------------------

def _reference_forward(params, x_nchw):
    x = x_nchw
    for w, bb in params["down"]:
        x = lax.conv_general_dilated(x, w, window_strides=(2, 2),
                                     padding=((1, 1), (1, 1)),
                                     dimension_numbers=("NCHW", "OIHW", "NCHW"))
        x = jnp.maximum(x + bb.reshape(1, -1, 1, 1), 0.0)
    feat = x.reshape(x.shape[0], -1)                      # == torch .view(-1, 256)
    (w1, b1), (w2, b2) = params["fc"]
    h = jnp.maximum(feat @ w1.T + b1, 0.0)
    z = jnp.maximum(h @ w2.T + b2, 0.0)                   # TODO(synk): assumed trailing ReLU
    return jax.nn.softmax(z, axis=1)


if __name__ == "__main__":
    key = jax.random.PRNGKey(0)
    pkey, xkey = jax.random.split(key)
    params = init_params(pkey)
    kparams = build_kernel_params(params)
    x = jax.random.normal(xkey, (64, 3, 32, 32), jnp.float32)  # NCHW input, 2 grid steps of 32

    out = jax.block_until_ready(separate_model_forward(kparams, x))

    assert out.shape == (64, 2)
    assert bool(jnp.all(jnp.isfinite(out)))
    assert bool(jnp.allclose(jnp.sum(out, axis=1), 1.0, atol=1e-5))
    ref = _reference_forward(params, x)
    err = float(jnp.max(jnp.abs(out - ref)))
    assert err < 1e-3, (err, out[:4], ref[:4])
    print("KERNEL_OK")
</pallas_src>

<mosaic_0001>
module attributes {stable_mosaic.version = 11 : i64} {
  func.func @_fused_forward_kernel(%arg0: i32, %arg1: memref<1024x128xf32, #tpu.memory_space<vmem>>, %arg2: memref<128x1024xf32, #tpu.memory_space<vmem>>, %arg3: memref<256x16xf32, #tpu.memory_space<vmem>>, %arg4: memref<8x128xf32, #tpu.memory_space<vmem>>, %arg5: memref<1x2x32xf32, #tpu.memory_space<vmem>>, %arg6: memref<512x128xf32, #tpu.memory_space<vmem>>, %arg7: memref<256x128xf32, #tpu.memory_space<vmem>>, %arg8: memref<128x64xf32, #tpu.memory_space<vmem>>) attributes {dimension_semantics = [#tpu.dimension_semantics<parallel>], iteration_bounds = array<i64: 2>, scalar_prefetch = 0 : i64, scratch_operands = 3 : i64, tpu.core_type = #tpu.core_type<tc>, window_params = [{transform_indices = @transform_0, window_bounds = array<i64: 1024, 128>}, {pipeline_mode = #tpu.pipeline_mode<synchronous>, transform_indices = @transform_1, window_bounds = array<i64: 128, 1024>}, {pipeline_mode = #tpu.pipeline_mode<synchronous>, transform_indices = @transform_2, window_bounds = array<i64: 256, 16>}, {pipeline_mode = #tpu.pipeline_mode<synchronous>, transform_indices = @transform_3, window_bounds = array<i64: 8, 128>}, {transform_indices = @transform_4, window_bounds = array<i64: 1, 2, 32>}]} {
    %c0 = arith.constant 0 : index
    %c0_0 = arith.constant 0 : index
    %0 = vector.load %arg4[%c0, %c0_0] : memref<8x128xf32, #tpu.memory_space<vmem>>, vector<1x128xf32>
    %c0_1 = arith.constant 0 : index
    %c0_2 = arith.constant 0 : index
    %1 = tpu.strided_load %arg1[%c0_1, %c0_2] {strides = array<i32: 2, 1>} : memref<1024x128xf32, #tpu.memory_space<vmem>>, vector<512x128xf32>
    %c1 = arith.constant 1 : index
    %c0_3 = arith.constant 0 : index
    %2 = tpu.strided_load %arg1[%c1, %c0_3] {strides = array<i32: 2, 1>} : memref<1024x128xf32, #tpu.memory_space<vmem>>, vector<512x128xf32>
    %c0_4 = arith.constant 0 : index
    %c0_5 = arith.constant 0 : index
    %3 = vector.load %arg2[%c0_4, %c0_5] : memref<128x1024xf32, #tpu.memory_space<vmem>>, vector<128x256xf32>
    %cst = arith.constant dense<0.000000e+00> : vector<512x256xf32>
    %4 = tpu.matmul %2, %3, %cst {dimension_numbers = #tpu.dot_dimension_numbers<[1], [0], [0], [1], [0, 0, 1, 1], [], []>} : vector<512x128xf32>, vector<128x256xf32>, vector<512x256xf32> -> vector<512x256xf32>
    %5 = vector.extract_strided_slice %4 {offsets = [0, 0], sizes = [512, 128], strides = [1, 1]} : vector<512x256xf32> to vector<512x128xf32>
    %6 = vector.extract_strided_slice %4 {offsets = [0, 128], sizes = [512, 128], strides = [1, 1]} : vector<512x256xf32> to vector<512x128xf32>
    %c0_6 = arith.constant 0 : index
    %c256 = arith.constant 256 : index
    %7 = vector.load %arg2[%c0_6, %c256] : memref<128x1024xf32, #tpu.memory_space<vmem>>, vector<128x128xf32>
    %cst_7 = arith.constant dense<0.000000e+00> : vector<512x128xf32>
    %8 = tpu.matmul %1, %7, %cst_7 {dimension_numbers = #tpu.dot_dimension_numbers<[1], [0], [0], [1], [0, 0, 1, 1], [], []>} : vector<512x128xf32>, vector<128x128xf32>, vector<512x128xf32> -> vector<512x128xf32>
    %c1_i32 = arith.constant 1 : i32
    %9 = tpu.dynamic_rotate %5 by %c1_i32 dim 0 : vector<512x128xf32>, i32 -> vector<512x128xf32>
    %10 = tpu.iota {dimensions = array<i32: 0>} : vector<512x128xi32>
    %c16_i32 = arith.constant 16 : i32
    %c0_i32 = arith.constant 0 : i32
    %11 = arith.cmpi eq, %c16_i32, %c0_i32 : i32
    %c1_i32_8 = arith.constant 1 : i32
    %12 = arith.select %11, %c1_i32_8, %c16_i32 : i32
    %13 = vector.broadcast %12 : i32 to vector<512x128xi32>
    %14 = arith.remsi %10, %13 : vector<512x128xi32>
    %c0_i32_9 = arith.constant 0 : i32
    %15 = vector.broadcast %c0_i32_9 : i32 to vector<512x128xi32>
    %16 = arith.cmpi ne, %14, %15 : vector<512x128xi32>
    %c0_i32_10 = arith.constant 0 : i32
    %17 = vector.broadcast %c0_i32_10 : i32 to vector<512x128xi32>
    %18 = arith.cmpi slt, %14, %17 : vector<512x128xi32>
    %c0_i32_11 = arith.constant 0 : i32
    %19 = arith.cmpi slt, %12, %c0_i32_11 : i32
    %20 = vector.broadcast %19 : i1 to vector<512x128xi1>
    %21 = vector.broadcast %20 : vector<512x128xi1> to vector<512x128xi1>
    %22 = arith.xori %18, %21 : vector<512x128xi1>
    %23 = arith.andi %22, %16 : vector<512x128xi1>
    %24 = vector.broadcast %12 : i32 to vector<512x128xi32>
    %25 = arith.addi %14, %24 : vector<512x128xi32>
    %26 = arith.select %23, %25, %14 : vector<512x128xi1>, vector<512x128xi32>
    %c0_i32_12 = arith.constant 0 : i32
    %27 = vector.broadcast %c0_i32_12 : i32 to vector<512x128xi32>
    %28 = arith.cmpi ne, %26, %27 : vector<512x128xi32>
    %cst_13 = arith.constant 0.000000e+00 : f32
    %29 = vector.broadcast %cst_13 : f32 to vector<512x128xf32>
    %30 = arith.select %28, %9, %29 : vector<512x128xi1>, vector<512x128xf32>
    %31 = arith.addf %30, %8 : vector<512x128xf32>
    %32 = arith.addf %31, %6 : vector<512x128xf32>
    %33 = vector.broadcast %0 : vector<1x128xf32> to vector<512x128xf32>
    %34 = arith.addf %32, %33 : vector<512x128xf32>
    %cst_14 = arith.constant 0.000000e+00 : f32
    %35 = vector.broadcast %cst_14 : f32 to vector<512x128xf32>
    %36 = arith.maximumf %34, %35 : vector<512x128xf32>
    %c0_15 = arith.constant 0 : index
    %c0_16 = arith.constant 0 : index
    %37 = vector.load %arg6[%c0_15, %c0_16] : memref<512x128xf32, #tpu.memory_space<vmem>>, vector<512x128xf32>
    tpu.vector_store %arg6[%c0_15, %c0_16], %36 {strides = array<i32>} : memref<512x128xf32, #tpu.memory_space<vmem>>, vector<512x128xf32>,
    %c1_17 = arith.constant 1 : index
    %c0_18 = arith.constant 0 : index
    %38 = vector.load %arg4[%c1_17, %c0_18] : memref<8x128xf32, #tpu.memory_space<vmem>>, vector<1x128xf32>
    %c0_19 = arith.constant 0 : index
    %c0_20 = arith.constant 0 : index
    %39 = tpu.strided_load %arg6[%c0_19, %c0_20] {strides = array<i32: 2, 1>} : memref<512x128xf32, #tpu.memory_space<vmem>>, vector<256x128xf32>
    %c1_21 = arith.constant 1 : index
    %c0_22 = arith.constant 0 : index
    %40 = tpu.strided_load %arg6[%c1_21, %c0_22] {strides = array<i32: 2, 1>} : memref<512x128xf32, #tpu.memory_space<vmem>>, vector<256x128xf32>
    %c0_23 = arith.constant 0 : index
    %c384 = arith.constant 384 : index
    %41 = vector.load %arg2[%c0_23, %c384] : memref<128x1024xf32, #tpu.memory_space<vmem>>, vector<128x256xf32>
    %cst_24 = arith.constant dense<0.000000e+00> : vector<256x256xf32>
    %42 = tpu.matmul %40, %41, %cst_24 {dimension_numbers = #tpu.dot_dimension_numbers<[1], [0], [0], [1], [0, 0, 1, 1], [], []>} : vector<256x128xf32>, vector<128x256xf32>, vector<256x256xf32> -> vector<256x256xf32>
    %43 = vector.extract_strided_slice %42 {offsets = [0, 0], sizes = [256, 128], strides = [1, 1]} : vector<256x256xf32> to vector<256x128xf32>
    %44 = vector.extract_strided_slice %42 {offsets = [0, 128], sizes = [256, 128], strides = [1, 1]} : vector<256x256xf32> to vector<256x128xf32>
    %c0_25 = arith.constant 0 : index
    %c640 = arith.constant 640 : index
    %45 = vector.load %arg2[%c0_25, %c640] : memref<128x1024xf32, #tpu.memory_space<vmem>>, vector<128x128xf32>
    %cst_26 = arith.constant dense<0.000000e+00> : vector<256x128xf32>
    %46 = tpu.matmul %39, %45, %cst_26 {dimension_numbers = #tpu.dot_dimension_numbers<[1], [0], [0], [1], [0, 0, 1, 1], [], []>} : vector<256x128xf32>, vector<128x128xf32>, vector<256x128xf32> -> vector<256x128xf32>
    %c1_i32_27 = arith.constant 1 : i32
    %47 = tpu.dynamic_rotate %43 by %c1_i32_27 dim 0 : vector<256x128xf32>, i32 -> vector<256x128xf32>
    %48 = tpu.iota {dimensions = array<i32: 0>} : vector<256x128xi32>
    %c8_i32 = arith.constant 8 : i32
    %c0_i32_28 = arith.constant 0 : i32
    %49 = arith.cmpi eq, %c8_i32, %c0_i32_28 : i32
    %c1_i32_29 = arith.constant 1 : i32
    %50 = arith.select %49, %c1_i32_29, %c8_i32 : i32
    %51 = vector.broadcast %50 : i32 to vector<256x128xi32>
    %52 = arith.remsi %48, %51 : vector<256x128xi32>
    %c0_i32_30 = arith.constant 0 : i32
    %53 = vector.broadcast %c0_i32_30 : i32 to vector<256x128xi32>
    %54 = arith.cmpi ne, %52, %53 : vector<256x128xi32>
    %c0_i32_31 = arith.constant 0 : i32
    %55 = vector.broadcast %c0_i32_31 : i32 to vector<256x128xi32>
    %56 = arith.cmpi slt, %52, %55 : vector<256x128xi32>
    %c0_i32_32 = arith.constant 0 : i32
    %57 = arith.cmpi slt, %50, %c0_i32_32 : i32
    %58 = vector.broadcast %57 : i1 to vector<256x128xi1>
    %59 = vector.broadcast %58 : vector<256x128xi1> to vector<256x128xi1>
    %60 = arith.xori %56, %59 : vector<256x128xi1>
    %61 = arith.andi %60, %54 : vector<256x128xi1>
    %62 = vector.broadcast %50 : i32 to vector<256x128xi32>
    %63 = arith.addi %52, %62 : vector<256x128xi32>
    %64 = arith.select %61, %63, %52 : vector<256x128xi1>, vector<256x128xi32>
    %c0_i32_33 = arith.constant 0 : i32
    %65 = vector.broadcast %c0_i32_33 : i32 to vector<256x128xi32>
    %66 = arith.cmpi ne, %64, %65 : vector<256x128xi32>
    %cst_34 = arith.constant 0.000000e+00 : f32
    %67 = vector.broadcast %cst_34 : f32 to vector<256x128xf32>
    %68 = arith.select %66, %47, %67 : vector<256x128xi1>, vector<256x128xf32>
    %69 = arith.addf %68, %46 : vector<256x128xf32>
    %70 = arith.addf %69, %44 : vector<256x128xf32>
    %71 = vector.broadcast %38 : vector<1x128xf32> to vector<256x128xf32>
    %72 = arith.addf %70, %71 : vector<256x128xf32>
    %cst_35 = arith.constant 0.000000e+00 : f32
    %73 = vector.broadcast %cst_35 : f32 to vector<256x128xf32>
    %74 = arith.maximumf %72, %73 : vector<256x128xf32>
    %c0_36 = arith.constant 0 : index
    %c0_37 = arith.constant 0 : index
    %75 = vector.load %arg7[%c0_36, %c0_37] : memref<256x128xf32, #tpu.memory_space<vmem>>, vector<256x128xf32>
    tpu.vector_store %arg7[%c0_36, %c0_37], %74 {strides = array<i32>} : memref<256x128xf32, #tpu.memory_space<vmem>>, vector<256x128xf32>,
    %c2 = arith.constant 2 : index
    %c0_38 = arith.constant 0 : index
    %76 = vector.load %arg4[%c2, %c0_38] : memref<8x128xf32, #tpu.memory_space<vmem>>, vector<1x64xf32>
    %c0_39 = arith.constant 0 : index
    %c0_40 = arith.constant 0 : index
    %77 = tpu.strided_load %arg7[%c0_39, %c0_40] {strides = array<i32: 2, 1>} : memref<256x128xf32, #tpu.memory_space<vmem>>, vector<128x128xf32>
    %c1_41 = arith.constant 1 : index
    %c0_42 = arith.constant 0 : index
    %78 = tpu.strided_load %arg7[%c1_41, %c0_42] {strides = array<i32: 2, 1>} : memref<256x128xf32, #tpu.memory_space<vmem>>, vector<128x128xf32>
    %c0_43 = arith.constant 0 : index
    %c768 = arith.constant 768 : index
    %79 = vector.load %arg2[%c0_43, %c768] : memref<128x1024xf32, #tpu.memory_space<vmem>>, vector<128x128xf32>
    %cst_44 = arith.constant dense<0.000000e+00> : vector<128x128xf32>
    %80 = tpu.matmul %78, %79, %cst_44 {dimension_numbers = #tpu.dot_dimension_numbers<[1], [0], [0], [1], [0, 0, 1, 1], [], []>} : vector<128x128xf32>, vector<128x128xf32>, vector<128x128xf32> -> vector<128x128xf32>
    %81 = vector.extract_strided_slice %80 {offsets = [0, 0], sizes = [128, 64], strides = [1, 1]} : vector<128x128xf32> to vector<128x64xf32>
    %82 = vector.extract_strided_slice %80 {offsets = [0, 64], sizes = [128, 64], strides = [1, 1]} : vector<128x128xf32> to vector<128x64xf32>
    %c0_45 = arith.constant 0 : index
    %c896 = arith.constant 896 : index
    %83 = vector.load %arg2[%c0_45, %c896] : memref<128x1024xf32, #tpu.memory_space<vmem>>, vector<128x64xf32>
    %cst_46 = arith.constant dense<0.000000e+00> : vector<128x64xf32>
    %84 = tpu.matmul %77, %83, %cst_46 {dimension_numbers = #tpu.dot_dimension_numbers<[1], [0], [0], [1], [0, 0, 1, 1], [], []>} : vector<128x128xf32>, vector<128x64xf32>, vector<128x64xf32> -> vector<128x64xf32>
    %c1_i32_47 = arith.constant 1 : i32
    %85 = tpu.dynamic_rotate %81 by %c1_i32_47 dim 0 : vector<128x64xf32>, i32 -> vector<128x64xf32>
    %86 = tpu.iota {dimensions = array<i32: 0>} : vector<128x64xi32>
    %c4_i32 = arith.constant 4 : i32
    %c0_i32_48 = arith.constant 0 : i32
    %87 = arith.cmpi eq, %c4_i32, %c0_i32_48 : i32
    %c1_i32_49 = arith.constant 1 : i32
    %88 = arith.select %87, %c1_i32_49, %c4_i32 : i32
    %89 = vector.broadcast %88 : i32 to vector<128x64xi32>
    %90 = arith.remsi %86, %89 : vector<128x64xi32>
    %c0_i32_50 = arith.constant 0 : i32
    %91 = vector.broadcast %c0_i32_50 : i32 to vector<128x64xi32>
    %92 = arith.cmpi ne, %90, %91 : vector<128x64xi32>
    %c0_i32_51 = arith.constant 0 : i32
    %93 = vector.broadcast %c0_i32_51 : i32 to vector<128x64xi32>
    %94 = arith.cmpi slt, %90, %93 : vector<128x64xi32>
    %c0_i32_52 = arith.constant 0 : i32
    %95 = arith.cmpi slt, %88, %c0_i32_52 : i32
    %96 = vector.broadcast %95 : i1 to vector<128x64xi1>
    %97 = vector.broadcast %96 : vector<128x64xi1> to vector<128x64xi1>
    %98 = arith.xori %94, %97 : vector<128x64xi1>
    %99 = arith.andi %98, %92 : vector<128x64xi1>
    %100 = vector.broadcast %88 : i32 to vector<128x64xi32>
    %101 = arith.addi %90, %100 : vector<128x64xi32>
    %102 = arith.select %99, %101, %90 : vector<128x64xi1>, vector<128x64xi32>
    %c0_i32_53 = arith.constant 0 : i32
    %103 = vector.broadcast %c0_i32_53 : i32 to vector<128x64xi32>
    %104 = arith.cmpi ne, %102, %103 : vector<128x64xi32>
    %cst_54 = arith.constant 0.000000e+00 : f32
    %105 = vector.broadcast %cst_54 : f32 to vector<128x64xf32>
    %106 = arith.select %104, %85, %105 : vector<128x64xi1>, vector<128x64xf32>
    %107 = arith.addf %106, %84 : vector<128x64xf32>
    %108 = arith.addf %107, %82 : vector<128x64xf32>
    %109 = vector.broadcast %76 : vector<1x64xf32> to vector<128x64xf32>
    %110 = arith.addf %108, %109 : vector<128x64xf32>
    %cst_55 = arith.constant 0.000000e+00 : f32
    %111 = vector.broadcast %cst_55 : f32 to vector<128x64xf32>
    %112 = arith.maximumf %110, %111 : vector<128x64xf32>
    %c0_56 = arith.constant 0 : index
    %c0_57 = arith.constant 0 : index
    %113 = vector.load %arg8[%c0_56, %c0_57] : memref<128x64xf32, #tpu.memory_space<vmem>>, vector<128x64xf32>
    tpu.vector_store %arg8[%c0_56, %c0_57], %112 {strides = array<i32>} : memref<128x64xf32, #tpu.memory_space<vmem>>, vector<128x64xf32>,
    %cst_58 = arith.constant 0.000000e+00 : f32
    %114 = vector.broadcast %cst_58 : f32 to vector<32x16xf32>
    %c0_59 = arith.constant 0 : index
    %c0_60 = arith.constant 0 : index
    %115 = tpu.strided_load %arg8[%c0_59, %c0_60] {strides = array<i32: 4, 1>} : memref<128x64xf32, #tpu.memory_space<vmem>>, vector<32x64xf32>
    %c0_61 = arith.constant 0 : index
    %c0_62 = arith.constant 0 : index
    %116 = vector.load %arg3[%c0_61, %c0_62] : memref<256x16xf32, #tpu.memory_space<vmem>>, vector<64x16xf32>
    %cst_63 = arith.constant dense<0.000000e+00> : vector<32x16xf32>
    %117 = tpu.matmul %115, %116, %cst_63 {dimension_numbers = #tpu.dot_dimension_numbers<[1], [0], [0], [1], [0, 0, 1, 1], [], []>} : vector<32x64xf32>, vector<64x16xf32>, vector<32x16xf32> -> vector<32x16xf32>
    %118 = arith.addf %114, %117 : vector<32x16xf32>
    %c1_64 = arith.constant 1 : index
    %c0_65 = arith.constant 0 : index
    %119 = tpu.strided_load %arg8[%c1_64, %c0_65] {strides = array<i32: 4, 1>} : memref<128x64xf32, #tpu.memory_space<vmem>>, vector<32x64xf32>
    %c64 = arith.constant 64 : index
    %c0_66 = arith.constant 0 : index
    %120 = vector.load %arg3[%c64, %c0_66] : memref<256x16xf32, #tpu.memory_space<vmem>>, vector<64x16xf32>
    %cst_67 = arith.constant dense<0.000000e+00> : vector<32x16xf32>
    %121 = tpu.matmul %119, %120, %cst_67 {dimension_numbers = #tpu.dot_dimension_numbers<[1], [0], [0], [1], [0, 0, 1, 1], [], []>} : vector<32x64xf32>, vector<64x16xf32>, vector<32x16xf32> -> vector<32x16xf32>
    %122 = arith.addf %118, %121 : vector<32x16xf32>
    %c2_68 = arith.constant 2 : index
    %c0_69 = arith.constant 0 : index
    %123 = tpu.strided_load %arg8[%c2_68, %c0_69] {strides = array<i32: 4, 1>} : memref<128x64xf32, #tpu.memory_space<vmem>>, vector<32x64xf32>
    %c128 = arith.constant 128 : index
    %c0_70 = arith.constant 0 : index
    %124 = vector.load %arg3[%c128, %c0_70] : memref<256x16xf32, #tpu.memory_space<vmem>>, vector<64x16xf32>
    %cst_71 = arith.constant dense<0.000000e+00> : vector<32x16xf32>
    %125 = tpu.matmul %123, %124, %cst_71 {dimension_numbers = #tpu.dot_dimension_numbers<[1], [0], [0], [1], [0, 0, 1, 1], [], []>} : vector<32x64xf32>, vector<64x16xf32>, vector<32x16xf32> -> vector<32x16xf32>
    %126 = arith.addf %122, %125 : vector<32x16xf32>
    %c3 = arith.constant 3 : index
    %c0_72 = arith.constant 0 : index
    %127 = tpu.strided_load %arg8[%c3, %c0_72] {strides = array<i32: 4, 1>} : memref<128x64xf32, #tpu.memory_space<vmem>>, vector<32x64xf32>
    %c192 = arith.constant 192 : index
    %c0_73 = arith.constant 0 : index
    %128 = vector.load %arg3[%c192, %c0_73] : memref<256x16xf32, #tpu.memory_space<vmem>>, vector<64x16xf32>
    %cst_74 = arith.constant dense<0.000000e+00> : vector<32x16xf32>
    %129 = tpu.matmul %127, %128, %cst_74 {dimension_numbers = #tpu.dot_dimension_numbers<[1], [0], [0], [1], [0, 0, 1, 1], [], []>} : vector<32x64xf32>, vector<64x16xf32>, vector<32x16xf32> -> vector<32x16xf32>
    %130 = arith.addf %126, %129 : vector<32x16xf32>
    %c3_75 = arith.constant 3 : index
    %c0_76 = arith.constant 0 : index
    %131 = vector.load %arg4[%c3_75, %c0_76] : memref<8x128xf32, #tpu.memory_space<vmem>>, vector<1x16xf32>
    %132 = vector.broadcast %131 : vector<1x16xf32> to vector<32x16xf32>
    %133 = arith.addf %130, %132 : vector<32x16xf32>
    %cst_77 = arith.constant 0.000000e+00 : f32
    %134 = vector.broadcast %cst_77 : f32 to vector<32x16xf32>
    %135 = arith.maximumf %133, %134 : vector<32x16xf32>
    %c4 = arith.constant 4 : index
    %c0_78 = arith.constant 0 : index
    %136 = vector.load %arg4[%c4, %c0_78] : memref<8x128xf32, #tpu.memory_space<vmem>>, vector<2x16xf32>
    %c4_79 = arith.constant 4 : index
    %c16 = arith.constant 16 : index
    %137 = vector.load %arg4[%c4_79, %c16] : memref<8x128xf32, #tpu.memory_space<vmem>>, vector<2x1xf32>
    %cst_80 = arith.constant dense<0.000000e+00> : vector<2x32xf32>
    %138 = tpu.matmul %136, %135, %cst_80 {dimension_numbers = #tpu.dot_dimension_numbers<[1], [1], [0], [0], [0, 0, 1, 0], [], []>} : vector<2x16xf32>, vector<32x16xf32>, vector<2x32xf32> -> vector<2x32xf32>
    %139 = vector.broadcast %137 : vector<2x1xf32> to vector<2x32xf32>
    %140 = arith.addf %138, %139 : vector<2x32xf32>
    %cst_81 = arith.constant 0.000000e+00 : f32
    %141 = vector.broadcast %cst_81 : f32 to vector<2x32xf32>
    %142 = arith.maximumf %140, %141 : vector<2x32xf32>
    %cst_82 = arith.constant dense<0xFF800000> : vector<32xf32>
    %143 = vector.multi_reduction <maximumf>, %142, %cst_82 [0] : vector<2x32xf32> to vector<32xf32>
    %144 = vector.shape_cast %143 : vector<32xf32> to vector<1x32xf32>
    %145 = vector.broadcast %144 : vector<1x32xf32> to vector<2x32xf32>
    %146 = arith.subf %142, %145 : vector<2x32xf32>
    %147 = math.exp %146 : vector<2x32xf32>
    %cst_83 = arith.constant dense<0.000000e+00> : vector<32xf32>
    %148 = vector.multi_reduction <add>, %147, %cst_83 [0] : vector<2x32xf32> to vector<32xf32>
    %149 = vector.shape_cast %148 : vector<32xf32> to vector<1x32xf32>
    %150 = vector.broadcast %149 : vector<1x32xf32> to vector<2x32xf32>
    %151 = arith.divf %147, %150 : vector<2x32xf32>
    %c0_84 = arith.constant 0 : index
    %c0_85 = arith.constant 0 : index
    %c0_86 = arith.constant 0 : index
    %152 = vector.load %arg5[%c0_84, %c0_85, %c0_86] : memref<1x2x32xf32, #tpu.memory_space<vmem>>, vector<1x2x32xf32>
    %153 = vector.shape_cast %152 : vector<1x2x32xf32> to vector<2x32xf32>
    %154 = vector.shape_cast %151 : vector<2x32xf32> to vector<1x2x32xf32>
    tpu.vector_store %arg5[%c0_84, %c0_85, %c0_86], %154 {strides = array<i32>} : memref<1x2x32xf32, #tpu.memory_space<vmem>>, vector<1x2x32xf32>,
    return
  }
  func.func @transform_0(%arg0: i32) -> (i32, i32) {
    %c0_i32 = arith.constant 0 : i32
    %c0_i32_0 = arith.constant 0 : i32
    return %arg0, %c0_i32 : i32, i32
  }
  func.func @transform_1(%arg0: i32) -> (i32, i32) {
    %c0_i32 = arith.constant 0 : i32
    %c0_i32_0 = arith.constant 0 : i32
    %c0_i32_1 = arith.constant 0 : i32
    return %c0_i32, %c0_i32_0 : i32, i32
  }
  func.func @transform_2(%arg0: i32) -> (i32, i32) {
    %c0_i32 = arith.constant 0 : i32
    %c0_i32_0 = arith.constant 0 : i32
    %c0_i32_1 = arith.constant 0 : i32
    return %c0_i32, %c0_i32_0 : i32, i32
  }
  func.func @transform_3(%arg0: i32) -> (i32, i32) {
    %c0_i32 = arith.constant 0 : i32
    %c0_i32_0 = arith.constant 0 : i32
    %c0_i32_1 = arith.constant 0 : i32
    return %c0_i32, %c0_i32_0 : i32, i32
  }
  func.func @transform_4(%arg0: i32) -> (i32, i32, i32) {
    %c0_i32 = arith.constant 0 : i32
    %c0_i32_0 = arith.constant 0 : i32
    %c0_i32_1 = arith.constant 0 : i32
    return %arg0, %c0_i32, %c0_i32_0 : i32, i32, i32
  }
}

</mosaic_0001>

<llo_original>
// kernel: separate_model_forward.1
$region0: #{separate_model_forward.1}
  #allocation0 [shape = 'u32[]', space=smem, size = 0x4, offset = 0x4, fixed_abs, tag = 'smem constant byte address 0x4 - core index']
  #allocation1 [shape = 'u32[72,128]{1,0:T(1,128)}', space=vmem, size = 0x9000, scoped, tag = 'internal scratch']
  #allocation2 [shape = 'f32[512,128]{1,0:T(8,128)}', space=vmem, size = 0x40000, scoped, tag = 'scratch operand']
  #allocation3 [shape = 'f32[256,128]{1,0:T(8,128)}', space=vmem, size = 0x20000, scoped, tag = 'scratch operand']
  #allocation4 [shape = 'f32[128,64]{1,0:T(8,128)}', space=vmem, size = 0x10000, scoped, tag = 'scratch operand']
  %s0 = inlined_call_operand.vmem [shape: f32[2048,128], index: 0, kind: input, shape index: {}]
  %s1 = inlined_call_operand.vmem [shape: f32[128,1024], index: 1, kind: input, shape index: {}]
  %s2 = inlined_call_operand.vmem [shape: f32[256,16], index: 2, kind: input, shape index: {}]
  %s3 = inlined_call_operand.vmem [shape: f32[8,128], index: 3, kind: input, shape index: {}]
  %s4 = inlined_call_operand.vmem [shape: f32[2,2,32], index: 4, kind: output, shape index: {}]
  %s5 = sld [smem:[#allocation0]]
  $region49: #{separate_model_forward.1} parent=0
    _
  %s7 = ssub.s32 1, %s5
  %s8 = scalar_select 0, %s7, %s5
  loop: start=0, step=1, limit=4
  $region2: #{separate_model_forward.1} parent=0 // loop_pre_header
    _
  $region3: #{separate_model_forward.1} parent=0 // loop_header
    %s10 = sphi 0, %s14
    %p11 = scmp.ge.s32.totalorder %s10, 4
    %s20 = sphi 0, %s22
    %s23 = sphi 0, %s20
    %s24 = sphi 0, %s23
    %s40 = sphi 0, %s24
    %s44 = sphi 0, %s44
    %s46 = sphi 0, %s44
    %s47 = sphi 0, %s46
    %s61 = sphi 0, %s47
    %s65 = sphi 0, %s65
    %s67 = sphi 0, %s65
    %s68 = sphi 0, %s67
    %s82 = sphi 0, %s68
    %s86 = sphi 0, %s86
    %s88 = sphi 0, %s86
    %s89 = sphi 0, %s88
    %s103 = sphi 0, %s89
    %s109 = sphi 0, %s111
    %s112 = sphi 0, %s109
    %s113 = sphi 0, %s112
    %s129 = sphi 0, %s113
  $region4: #{separate_model_forward.1} parent=0 // loop_header_branch
    %13 = sbr.rel (%p11) target = $region8
  $region5: #{separate_model_forward.1} parent=0 // loop_body
    %s15 = ssub.s32 %s10, 1
    %s16 = ssub.s32 %s10, 2
    %s17 = sadd.s32 %s10, 1
    %s18 = ssub.s32 %s10, %s17
    %p19 = scmp.eq.s32.totalorder %s18, 0
    %s21 = sadd.s32 %s20, 1
    %s22 = scalar_select %p19, %s20, %s21
    %p25 = pneg %p19
    %p26 = scmp.eq.s32.totalorder %s10, 1
    %p27 = por %p25, %p26
    %p28 = scmp.ne.s32.totalorder %s20, %s23
    %p29 = scmp.eq.s32.totalorder %s10, 0
    %p30 = por %p28, %p29
    %p31 = scmp.ne.s32.totalorder %s20, %s23
    %p32 = scmp.eq.s32.totalorder %s15, 1
    %p33 = por %p31, %p32
    %p34 = scmp.ne.s32.totalorder %s23, %s24
    %p35 = scmp.eq.s32.totalorder %s15, 0
    %p36 = por %p34, %p35
    %p37 = scmp.ne.s32.totalorder %s23, %s24
    %p38 = scmp.eq.s32.totalorder %s16, 1
    %p39 = por %p37, %p38
    %p41 = scmp.ne.s32.totalorder %s24, %s40
    %p42 = scmp.eq.s32.totalorder %s16, 0
    %p43 = por %p41, %p42
    %s45 = sadd.s32 %s44, 1
    %p48 = scmp.eq.s32.totalorder %s10, 1
    %p49 = scmp.ne.s32.totalorder %s44, %s46
    %p50 = scmp.eq.s32.totalorder %s10, 0
    %p51 = por %p49, %p50
    %p52 = scmp.ne.s32.totalorder %s44, %s46
    %p53 = scmp.eq.s32.totalorder %s15, 1
    %p54 = por %p52, %p53
    %p55 = scmp.ne.s32.totalorder %s46, %s47
    %p56 = scmp.eq.s32.totalorder %s15, 0
    %p57 = por %p55, %p56
    %p58 = scmp.ne.s32.totalorder %s46, %s47
    %p59 = scmp.eq.s32.totalorder %s16, 1
    %p60 = por %p58, %p59
    %p62 = scmp.ne.s32.totalorder %s47, %s61
    %p63 = scmp.eq.s32.totalorder %s16, 0
    %p64 = por %p62, %p63
    %s66 = sadd.s32 %s65, 1
    %p69 = scmp.eq.s32.totalorder %s10, 1
    %p70 = scmp.ne.s32.totalorder %s65, %s67
    %p71 = scmp.eq.s32.totalorder %s10, 0
    %p72 = por %p70, %p71
    %p73 = scmp.ne.s32.totalorder %s65, %s67
    %p74 = scmp.eq.s32.totalorder %s15, 1
    %p75 = por %p73, %p74
    %p76 = scmp.ne.s32.totalorder %s67, %s68
    %p77 = scmp.eq.s32.totalorder %s15, 0
    %p78 = por %p76, %p77
    %p79 = scmp.ne.s32.totalorder %s67, %s68
    %p80 = scmp.eq.s32.totalorder %s16, 1
    %p81 = por %p79, %p80
    %p83 = scmp.ne.s32.totalorder %s68, %s82
    %p84 = scmp.eq.s32.totalorder %s16, 0
    %p85 = por %p83, %p84
    %s87 = sadd.s32 %s86, 1
    %p90 = scmp.eq.s32.totalorder %s10, 1
    %p91 = scmp.ne.s32.totalorder %s86, %s88
    %p92 = scmp.eq.s32.totalorder %s10, 0
    %p93 = por %p91, %p92
    %p94 = scmp.ne.s32.totalorder %s86, %s88
    %p95 = scmp.eq.s32.totalorder %s15, 1
    %p96 = por %p94, %p95
    %p97 = scmp.ne.s32.totalorder %s88, %s89
    %p98 = scmp.eq.s32.totalorder %s15, 0
    %p99 = por %p97, %p98
    %p100 = scmp.ne.s32.totalorder %s88, %s89
    %p101 = scmp.eq.s32.totalorder %s16, 1
    %p102 = por %p100, %p101
    %p104 = scmp.ne.s32.totalorder %s89, %s103
    %p105 = scmp.eq.s32.totalorder %s16, 0
    %p106 = por %p104, %p105
    %s107 = ssub.s32 %s10, %s17
    %p108 = scmp.eq.s32.totalorder %s107, 0
    %s110 = sadd.s32 %s109, 1
    %s111 = scalar_select %p108, %s109, %s110
    %p114 = pneg %p108
    %p115 = scmp.eq.s32.totalorder %s10, 1
    %p116 = por %p114, %p115
    %p117 = scmp.ne.s32.totalorder %s109, %s112
    %p118 = scmp.eq.s32.totalorder %s10, 0
    %p119 = por %p117, %p118
    %p120 = scmp.ne.s32.totalorder %s109, %s112
    %p121 = scmp.eq.s32.totalorder %s15, 1
    %p122 = por %p120, %p121
    %p123 = scmp.ne.s32.totalorder %s112, %s113
    %p124 = scmp.eq.s32.totalorder %s15, 0
    %p125 = por %p123, %p124
    %p126 = scmp.ne.s32.totalorder %s112, %s113
    %p127 = scmp.eq.s32.totalorder %s16, 1
    %p128 = por %p126, %p127
    %p130 = scmp.ne.s32.totalorder %s113, %s129
    %p131 = scmp.eq.s32.totalorder %s16, 0
    %p132 = por %p130, %p131
    %p133 = scmp.le.s32.totalorder 1, %s10
    %p134 = scmp.lt.s32.totalorder %s10, 3
    %p135 = pnand %p133, %p134
    %p136 = pneg %p135
    // Predicated region
    $region9: #{separate_model_forward.1} parent=5 // pred_check
      _
    $region10: #{separate_model_forward.1} parent=5 // pred_check_branch
      %138 = sbr.rel (%p135) target = $region12
    $region11: #{separate_model_forward.1} parent=5 // pred_region
      %s139 = ssub.s32 %s10, 1
      // Predicated region
      $region13: #{separate_model_forward.1} parent=11 // pred_check
        %p140 = pneg %p57
      $region14: #{separate_model_forward.1} parent=11 // pred_check_branch
        %142 = sbr.rel (%p140) target = $region16
      $region15: #{separate_model_forward.1} parent=11 // pred_region
        _
      $region16: #{separate_model_forward.1} parent=11 // pred_fallthru
        _
      // Predicated region
      $region17: #{separate_model_forward.1} parent=11 // pred_check
        %p143 = pneg %p78
      $region18: #{separate_model_forward.1} parent=11 // pred_check_branch
        %145 = sbr.rel (%p143) target = $region20
      $region19: #{separate_model_forward.1} parent=11 // pred_region
        _
      $region20: #{separate_model_forward.1} parent=11 // pred_fallthru
        _
      // Predicated region
      $region21: #{separate_model_forward.1} parent=11 // pred_check
        %p146 = pneg %p99
      $region22: #{separate_model_forward.1} parent=11 // pred_check_branch
        %148 = sbr.rel (%p146) target = $region24
      $region23: #{separate_model_forward.1} parent=11 // pred_region
        _
      $region24: #{separate_model_forward.1} parent=11 // pred_fallthru
        _
    $region12: #{separate_model_forward.1} parent=5 // pred_fallthru
      _
    %p149 = scmp.lt.s32.totalorder %s10, 2
    // Predicated region
    $region25: #{separate_model_forward.1} parent=5 // pred_check
      %p150 = pneg %p149
    $region26: #{separate_model_forward.1} parent=5 // pred_check_branch
      %152 = sbr.rel (%p150) target = $region28
    $region27: #{separate_model_forward.1} parent=5 // pred_region
      // Predicated region
      $region29: #{separate_model_forward.1} parent=27 // pred_check
        %p153 = pneg %p30
      $region30: #{separate_model_forward.1} parent=27 // pred_check_branch
        %155 = sbr.rel (%p153) target = $region32
      $region31: #{separate_model_forward.1} parent=27 // pred_region
        %s156 = smul.u32 128, %s10
        %p157 = scmp.lt.s32.totalorder %s156, 255
        %s158 = scalar_select %p157, %s156, 255
        %s159 = smul.addr %s158, 8
        %s160 = scalar_lea.vmem %s0, %s159
        %s161 = smul.u32 128, %s10
      $region32: #{separate_model_forward.1} parent=27 // pred_fallthru
        _
    $region28: #{separate_model_forward.1} parent=5 // pred_fallthru
      _
    %p162 = scmp.le.s32.totalorder 1, %s10
    %p163 = scmp.lt.s32.totalorder %s10, 3
    %p164 = pnand %p162, %p163
    %p165 = pneg %p164
    // Predicated region
    $region33: #{separate_model_forward.1} parent=5 // pred_check
      _
    $region34: #{separate_model_forward.1} parent=5 // pred_check_branch
      %167 = sbr.rel (%p164) target = $region36
    $region35: #{separate_model_forward.1} parent=5 // pred_region
      %s168 = ssub.s32 %s10, 1
      %s169 = smul.u32 128, %s15
      %p170 = scmp.lt.s32.totalorder %s169, 255
      %s171 = scalar_select %p170, %s169, 255
      %s172 = smul.addr %s171, 8
      %s173 = scalar_lea.vmem %s0, %s172
      %p174 = pneg %p36
      %p175 = pneg %p33
      %p176 = pneg %p57
      %p177 = pneg %p54
      %p178 = pneg %p78
      %p179 = pneg %p75
      %p180 = pneg %p99
      %p181 = pneg %p96
      %p182 = pneg %p125
      %p183 = pneg %p122
      %p184 = scmp.lt.s32.totalorder %s15, 1
      %s185 = scalar_select %p184, %s15, 1
      %s186 = smul.addr %s185, 2
      %s187 = scalar_lea.vmem %s4, %s186
      %s188 = smul.u32 128, %s15
      %p189 = scmp.lt.s32.totalorder %s188, 255
      %s190 = scalar_select %p189, %s188, 255
      %s191 = smul.addr %s190, 8
      %s192 = scalar_lea.vmem %s0, %s191
      %s193 = smul.u32 128, %s15
      %p194 = scmp.lt.s32.totalorder %s15, 1
      %s195 = scalar_select %p194, %s15, 1
      %s196 = smul.addr %s195, 2
      %s197 = scalar_lea.vmem %s4, %s196
      %v198 = vld [vmem:[%s3] sm:$0x1]
      %v199 = vld [vmem:[%s192] ss:$2 sm:$0xff]
      %s200 = scalar_lea.vmem %s192, 16
      %v201 = vld [vmem:[%s200] ss:$2 sm:$0xff]
      %s202 = scalar_lea.vmem %s192, 32
      %v203 = vld [vmem:[%s202] ss:$2 sm:$0xff]
      %s204 = scalar_lea.vmem %s192, 48
      %v205 = vld [vmem:[%s204] ss:$2 sm:$0xff]
      %s206 = scalar_lea.vmem %s192, 64
      %v207 = vld [vmem:[%s206] ss:$2 sm:$0xff]
      %s208 = scalar_lea.vmem %s192, 80
      %v209 = vld [vmem:[%s208] ss:$2 sm:$0xff]
      %s210 = scalar_lea.vmem %s192, 96
      %v211 = vld [vmem:[%s210] ss:$2 sm:$0xff]
      %s212 = scalar_lea.vmem %s192, 112
      %v213 = vld [vmem:[%s212] ss:$2 sm:$0xff]
      %s214 = scalar_lea.vmem %s192, 128
      %v215 = vld [vmem:[%s214] ss:$2 sm:$0xff]
      %s216 = scalar_lea.vmem %s192, 144
      %v217 = vld [vmem:[%s216] ss:$2 sm:$0xff]
      %s218 = scalar_lea.vmem %s192, 160
      %v219 = vld [vmem:[%s218] ss:$2 sm:$0xff]
      %s220 = scalar_lea.vmem %s192, 176
      %v221 = vld [vmem:[%s220] ss:$2 sm:$0xff]
      %s222 = scalar_lea.vmem %s192, 192
      %v223 = vld [vmem:[%s222] ss:$2 sm:$0xff]
      %s224 = scalar_lea.vmem %s192, 208
      %v225 = vld [vmem:[%s224] ss:$2 sm:$0xff]
      %s226 = scalar_lea.vmem %s192, 224
      %v227 = vld [vmem:[%s226] ss:$2 sm:$0xff]
      %s228 = scalar_lea.vmem %s192, 240
      %v229 = vld [vmem:[%s228] ss:$2 sm:$0xff]
      %s230 = scalar_lea.vmem %s192, 256
      %v231 = vld [vmem:[%s230] ss:$2 sm:$0xff]
      %s232 = scalar_lea.vmem %s192, 272
      %v233 = vld [vmem:[%s232] ss:$2 sm:$0xff]
      %s234 = scalar_lea.vmem %s192, 288
      %v235 = vld [vmem:[%s234] ss:$2 sm:$0xff]
      %s236 = scalar_lea.vmem %s192, 304
      %v237 = vld [vmem:[%s236] ss:$2 sm:$0xff]
      %s238 = scalar_lea.vmem %s192, 320
      %v239 = vld [vmem:[%s238] ss:$2 sm:$0xff]
      %s240 = scalar_lea.vmem %s192, 336
      %v241 = vld [vmem:[%s240] ss:$2 sm:$0xff]
      %s242 = scalar_lea.vmem %s192, 352
      %v243 = vld [vmem:[%s242] ss:$2 sm:$0xff]
      %s244 = scalar_lea.vmem %s192, 368
      %v245 = vld [vmem:[%s244] ss:$2 sm:$0xff]
      %s246 = scalar_lea.vmem %s192, 384
      %v247 = vld [vmem:[%s246] ss:$2 sm:$0xff]
      %s248 = scalar_lea.vmem %s192, 400
      %v249 = vld [vmem:[%s248] ss:$2 sm:$0xff]
      %s250 = scalar_lea.vmem %s192, 416
      %v251 = vld [vmem:[%s250] ss:$2 sm:$0xff]
      %s252 = scalar_lea.vmem %s192, 432
      %v253 = vld [vmem:[%s252] ss:$2 sm:$0xff]
      %s254 = scalar_lea.vmem %s192, 448
      %v255 = vld [vmem:[%s254] ss:$2 sm:$0xff]
      %s256 = scalar_lea.vmem %s192, 464
      %v257 = vld [vmem:[%s256] ss:$2 sm:$0xff]
      %s258 = scalar_lea.vmem %s192, 480
      %v259 = vld [vmem:[%s258] ss:$2 sm:$0xff]
      %s260 = scalar_lea.vmem %s192, 496
      %v261 = vld [vmem:[%s260] ss:$2 sm:$0xff]
      %s262 = scalar_lea.vmem %s192, 512
      %v263 = vld [vmem:[%s262] ss:$2 sm:$0xff]
      %s264 = scalar_lea.vmem %s192, 528
      %v265 = vld [vmem:[%s264] ss:$2 sm:$0xff]
      %s266 = scalar_lea.vmem %s192, 544
      %v267 = vld [vmem:[%s266] ss:$2 sm:$0xff]
      %s268 = scalar_lea.vmem %s192, 560
      %v269 = vld [vmem:[%s268] ss:$2 sm:$0xff]
      %s270 = scalar_lea.vmem %s192, 576
      %v271 = vld [vmem:[%s270] ss:$2 sm:$0xff]
      %s272 = scalar_lea.vmem %s192, 592
      %v273 = vld [vmem:[%s272] ss:$2 sm:$0xff]
      %s274 = scalar_lea.vmem %s192, 608
      %v275 = vld [vmem:[%s274] ss:$2 sm:$0xff]
      %s276 = scalar_lea.vmem %s192, 624
      %v277 = vld [vmem:[%s276] ss:$2 sm:$0xff]
      %s278 = scalar_lea.vmem %s192, 640
      %v279 = vld [vmem:[%s278] ss:$2 sm:$0xff]
      %s280 = scalar_lea.vmem %s192, 656
      %v281 = vld [vmem:[%s280] ss:$2 sm:$0xff]
      %s282 = scalar_lea.vmem %s192, 672
      %v283 = vld [vmem:[%s282] ss:$2 sm:$0xff]
      %s284 = scalar_lea.vmem %s192, 688
      %v285 = vld [vmem:[%s284] ss:$2 sm:$0xff]
      %s286 = scalar_lea.vmem %s192, 704
      %v287 = vld [vmem:[%s286] ss:$2 sm:$0xff]
      %s288 = scalar_lea.vmem %s192, 720
      %v289 = vld [vmem:[%s288] ss:$2 sm:$0xff]
      %s290 = scalar_lea.vmem %s192, 736
      %v291 = vld [vmem:[%s290] ss:$2 sm:$0xff]
      %s292 = scalar_lea.vmem %s192, 752
      %v293 = vld [vmem:[%s292] ss:$2 sm:$0xff]
      %s294 = scalar_lea.vmem %s192, 768
      %v295 = vld [vmem:[%s294] ss:$2 sm:$0xff]
      %s296 = scalar_lea.vmem %s192, 784
      %v297 = vld [vmem:[%s296] ss:$2 sm:$0xff]
      %s298 = scalar_lea.vmem %s192, 800
      %v299 = vld [vmem:[%s298] ss:$2 sm:$0xff]
      %s300 = scalar_lea.vmem %s192, 816
      %v301 = vld [vmem:[%s300] ss:$2 sm:$0xff]
      %s302 = scalar_lea.vmem %s192, 832
      %v303 = vld [vmem:[%s302] ss:$2 sm:$0xff]
      %s304 = scalar_lea.vmem %s192, 848
      %v305 = vld [vmem:[%s304] ss:$2 sm:$0xff]
      %s306 = scalar_lea.vmem %s192, 864
      %v307 = vld [vmem:[%s306] ss:$2 sm:$0xff]
      %s308 = scalar_lea.vmem %s192, 880
      %v309 = vld [vmem:[%s308] ss:$2 sm:$0xff]
      %s310 = scalar_lea.vmem %s192, 896
      %v311 = vld [vmem:[%s310] ss:$2 sm:$0xff]
      %s312 = scalar_lea.vmem %s192, 912
      %v313 = vld [vmem:[%s312] ss:$2 sm:$0xff]
      %s314 = scalar_lea.vmem %s192, 928
      %v315 = vld [vmem:[%s314] ss:$2 sm:$0xff]
      %s316 = scalar_lea.vmem %s192, 944
      %v317 = vld [vmem:[%s316] ss:$2 sm:$0xff]
      %s318 = scalar_lea.vmem %s192, 960
      %v319 = vld [vmem:[%s318] ss:$2 sm:$0xff]
      %s320 = scalar_lea.vmem %s192, 976
      %v321 = vld [vmem:[%s320] ss:$2 sm:$0xff]
      %s322 = scalar_lea.vmem %s192, 992
      %v323 = vld [vmem:[%s322] ss:$2 sm:$0xff]
      %s324 = scalar_lea.vmem %s192, 1008
      %v325 = vld [vmem:[%s324] ss:$2 sm:$0xff]
      %s326 = scalar_lea.vmem %s192, 1
      %v327 = vld [vmem:[%s326] ss:$2 sm:$0xff]
      %s328 = scalar_lea.vmem %s192, 17
      %v329 = vld [vmem:[%s328] ss:$2 sm:$0xff]
      %s330 = scalar_lea.vmem %s192, 33
      %v331 = vld [vmem:[%s330] ss:$2 sm:$0xff]
      %s332 = scalar_lea.vmem %s192, 49
      %v333 = vld [vmem:[%s332] ss:$2 sm:$0xff]
      %s334 = scalar_lea.vmem %s192, 65
      %v335 = vld [vmem:[%s334] ss:$2 sm:$0xff]
      %s336 = scalar_lea.vmem %s192, 81
      %v337 = vld [vmem:[%s336] ss:$2 sm:$0xff]
      %s338 = scalar_lea.vmem %s192, 97
      %v339 = vld [vmem:[%s338] ss:$2 sm:$0xff]
      %s340 = scalar_lea.vmem %s192, 113
      %v341 = vld [vmem:[%s340] ss:$2 sm:$0xff]
      %s342 = scalar_lea.vmem %s192, 129
      %v343 = vld [vmem:[%s342] ss:$2 sm:$0xff]
      %s344 = scalar_lea.vmem %s192, 145
      %v345 = vld [vmem:[%s344] ss:$2 sm:$0xff]
      %s346 = scalar_lea.vmem %s192, 161
      %v347 = vld [vmem:[%s346] ss:$2 sm:$0xff]
      %s348 = scalar_lea.vmem %s192, 177
      %v349 = vld [vmem:[%s348] ss:$2 sm:$0xff]
      %s350 = scalar_lea.vmem %s192, 193
      %v351 = vld [vmem:[%s350] ss:$2 sm:$0xff]
      %s352 = scalar_lea.vmem %s192, 209
      %v353 = vld [vmem:[%s352] ss:$2 sm:$0xff]
      %s354 = scalar_lea.vmem %s192, 225
      %v355 = vld [vmem:[%s354] ss:$2 sm:$0xff]
      %s356 = scalar_lea.vmem %s192, 241
      %v357 = vld [vmem:[%s356] ss:$2 sm:$0xff]
      %s358 = scalar_lea.vmem %s192, 257
      %v359 = vld [vmem:[%s358] ss:$2 sm:$0xff]
      %s360 = scalar_lea.vmem %s192, 273
      %v361 = vld [vmem:[%s360] ss:$2 sm:$0xff]
      %s362 = scalar_lea.vmem %s192, 289
      %v363 = vld [vmem:[%s362] ss:$2 sm:$0xff]
      %s364 = scalar_lea.vmem %s192, 305
      %v365 = vld [vmem:[%s364] ss:$2 sm:$0xff]
      %s366 = scalar_lea.vmem %s192, 321
      %v367 = vld [vmem:[%s366] ss:$2 sm:$0xff]
      %s368 = scalar_lea.vmem %s192, 337
      %v369 = vld [vmem:[%s368] ss:$2 sm:$0xff]
      %s370 = scalar_lea.vmem %s192, 353
      %v371 = vld [vmem:[%s370] ss:$2 sm:$0xff]
      %s372 = scalar_lea.vmem %s192, 369
      %v373 = vld [vmem:[%s372] ss:$2 sm:$0xff]
      %s374 = scalar_lea.vmem %s192, 385
      %v375 = vld [vmem:[%s374] ss:$2 sm:$0xff]
      %s376 = scalar_lea.vmem %s192, 401
      %v377 = vld [vmem:[%s376] ss:$2 sm:$0xff]
      %s378 = scalar_lea.vmem %s192, 417
      %v379 = vld [vmem:[%s378] ss:$2 sm:$0xff]
      %s380 = scalar_lea.vmem %s192, 433
      %v381 = vld [vmem:[%s380] ss:$2 sm:$0xff]
      %s382 = scalar_lea.vmem %s192, 449
      %v383 = vld [vmem:[%s382] ss:$2 sm:$0xff]
      %s384 = scalar_lea.vmem %s192, 465
      %v385 = vld [vmem:[%s384] ss:$2 sm:$0xff]
      %s386 = scalar_lea.vmem %s192, 481
      %v387 = vld [vmem:[%s386] ss:$2 sm:$0xff]
      %s388 = scalar_lea.vmem %s192, 497
      %v389 = vld [vmem:[%s388] ss:$2 sm:$0xff]
      %s390 = scalar_lea.vmem %s192, 513
      %v391 = vld [vmem:[%s390] ss:$2 sm:$0xff]
      %s392 = scalar_lea.vmem %s192, 529
      %v393 = vld [vmem:[%s392] ss:$2 sm:$0xff]
      %s394 = scalar_lea.vmem %s192, 545
      %v395 = vld [vmem:[%s394] ss:$2 sm:$0xff]
      %s396 = scalar_lea.vmem %s192, 561
      %v397 = vld [vmem:[%s396] ss:$2 sm:$0xff]
      %s398 = scalar_lea.vmem %s192, 577
      %v399 = vld [vmem:[%s398] ss:$2 sm:$0xff]
      %s400 = scalar_lea.vmem %s192, 593
      %v401 = vld [vmem:[%s400] ss:$2 sm:$0xff]
      %s402 = scalar_lea.vmem %s192, 609
      %v403 = vld [vmem:[%s402] ss:$2 sm:$0xff]
      %s404 = scalar_lea.vmem %s192, 625
      %v405 = vld [vmem:[%s404] ss:$2 sm:$0xff]
      %s406 = scalar_lea.vmem %s192, 641
      %v407 = vld [vmem:[%s406] ss:$2 sm:$0xff]
      %s408 = scalar_lea.vmem %s192, 657
      %v409 = vld [vmem:[%s408] ss:$2 sm:$0xff]
      %s410 = scalar_lea.vmem %s192, 673
      %v411 = vld [vmem:[%s410] ss:$2 sm:$0xff]
      %s412 = scalar_lea.vmem %s192, 689
      %v413 = vld [vmem:[%s412] ss:$2 sm:$0xff]
      %s414 = scalar_lea.vmem %s192, 705
      %v415 = vld [vmem:[%s414] ss:$2 sm:$0xff]
      %s416 = scalar_lea.vmem %s192, 721
      %v417 = vld [vmem:[%s416] ss:$2 sm:$0xff]
      %s418 = scalar_lea.vmem %s192, 737
      %v419 = vld [vmem:[%s418] ss:$2 sm:$0xff]
      %s420 = scalar_lea.vmem %s192, 753
      %v421 = vld [vmem:[%s420] ss:$2 sm:$0xff]
      %s422 = scalar_lea.vmem %s192, 769
      %v423 = vld [vmem:[%s422] ss:$2 sm:$0xff]
      %s424 = scalar_lea.vmem %s192, 785
      %v425 = vld [vmem:[%s424] ss:$2 sm:$0xff]
      %s426 = scalar_lea.vmem %s192, 801
      %v427 = vld [vmem:[%s426] ss:$2 sm:$0xff]
      %s428 = scalar_lea.vmem %s192, 817
      %v429 = vld [vmem:[%s428] ss:$2 sm:$0xff]
      %s430 = scalar_lea.vmem %s192, 833
      %v431 = vld [vmem:[%s430] ss:$2 sm:$0xff]
      %s432 = scalar_lea.vmem %s192, 849
      %v433 = vld [vmem:[%s432] ss:$2 sm:$0xff]
      %s434 = scalar_lea.vmem %s192, 865
      %v435 = vld [vmem:[%s434] ss:$2 sm:$0xff]
      %s436 = scalar_lea.vmem %s192, 881
      %v437 = vld [vmem:[%s436] ss:$2 sm:$0xff]
      %s438 = scalar_lea.vmem %s192, 897
      %v439 = vld [vmem:[%s438] ss:$2 sm:$0xff]
      %s440 = scalar_lea.vmem %s192, 913
      %v441 = vld [vmem:[%s440] ss:$2 sm:$0xff]
      %s442 = scalar_lea.vmem %s192, 929
      %v443 = vld [vmem:[%s442] ss:$2 sm:$0xff]
      %s444 = scalar_lea.vmem %s192, 945
      %v445 = vld [vmem:[%s444] ss:$2 sm:$0xff]
      %s446 = scalar_lea.vmem %s192, 961
      %v447 = vld [vmem:[%s446] ss:$2 sm:$0xff]
      %s448 = scalar_lea.vmem %s192, 977
      %v449 = vld [vmem:[%s448] ss:$2 sm:$0xff]
      %s450 = scalar_lea.vmem %s192, 993
      %v451 = vld [vmem:[%s450] ss:$2 sm:$0xff]
      %s452 = scalar_lea.vmem %s192, 1009
      %v453 = vld [vmem:[%s452] ss:$2 sm:$0xff]
      %v454 = vld [vmem:[%s1] sm:$0xff]
      %v455 = vld [vmem:[%s1 + $0x8] sm:$0xff]
      %v456 = vld [vmem:[%s1 + $0x40] sm:$0xff]
      %v457 = vld [vmem:[%s1 + $0x48] sm:$0xff]
      %v458 = vld [vmem:[%s1 + $0x80] sm:$0xff]
      %v459 = vld [vmem:[%s1 + $0x88] sm:$0xff]
      %v460 = vld [vmem:[%s1 + $0xc0] sm:$0xff]
      %v461 = vld [vmem:[%s1 + $0xc8] sm:$0xff]
      %v462 = vld [vmem:[%s1 + $0x100] sm:$0xff]
      %v463 = vld [vmem:[%s1 + $0x108] sm:$0xff]
      %v464 = vld [vmem:[%s1 + $0x140] sm:$0xff]
      %v465 = vld [vmem:[%s1 + $0x148] sm:$0xff]
      %v466 = vld [vmem:[%s1 + $0x180] sm:$0xff]
      %v467 = vld [vmem:[%s1 + $0x188] sm:$0xff]
      %v468 = vld [vmem:[%s1 + $0x1c0] sm:$0xff]
      %v469 = vld [vmem:[%s1 + $0x1c8] sm:$0xff]
      %v470 = vld [vmem:[%s1 + $0x200] sm:$0xff]
      %v471 = vld [vmem:[%s1 + $0x208] sm:$0xff]
      %v472 = vld [vmem:[%s1 + $0x240] sm:$0xff]
      %v473 = vld [vmem:[%s1 + $0x248] sm:$0xff]
      %v474 = vld [vmem:[%s1 + $0x280] sm:$0xff]
      %v475 = vld [vmem:[%s1 + $0x288] sm:$0xff]
      %v476 = vld [vmem:[%s1 + $0x2c0] sm:$0xff]
      %v477 = vld [vmem:[%s1 + $0x2c8] sm:$0xff]
      %v478 = vld [vmem:[%s1 + $0x300] sm:$0xff]
      %v479 = vld [vmem:[%s1 + $0x308] sm:$0xff]
      %v480 = vld [vmem:[%s1 + $0x340] sm:$0xff]
      %v481 = vld [vmem:[%s1 + $0x348] sm:$0xff]
      %v482 = vld [vmem:[%s1 + $0x380] sm:$0xff]
      %v483 = vld [vmem:[%s1 + $0x388] sm:$0xff]
      %v484 = vld [vmem:[%s1 + $0x3c0] sm:$0xff]
      %v485 = vld [vmem:[%s1 + $0x3c8] sm:$0xff]
      %486 = vmatpush.msra.mxu0 %v484
      %487 = vmatpush.msra.mxu0 %v482
      %488 = vmatpush.msra.mxu0 %v480
      %489 = vmatpush.msra.mxu0 %v478
      %490 = vmatpush.msra.mxu0 %v476
      %491 = vmatpush.msra.mxu0 %v474
      %492 = vmatpush.msra.mxu0 %v472
      %493 = vmatpush.msra.mxu0 %v470
      %494 = vmatpush.msra.mxu0 %v468
      %495 = vmatpush.msra.mxu0 %v466
      %496 = vmatpush.msra.mxu0 %v464
      %497 = vmatpush.msra.mxu0 %v462
      %498 = vmatpush.msra.mxu0 %v460
      %499 = vmatpush.msra.mxu0 %v458
      %500 = vmatpush.msra.mxu0 %v456
      %501 = vmatpush.msra.mxu0 %v454
      %502 = vmatmul.f32.gmra.mxu0 %v327
      %v503 = vpop.f32.mrf.mxu0
      %v504 = vadd.f32 0.0, %v503
      %505 = vmatmul.f32.gmra.mxu0 %v329
      %v506 = vpop.f32.mrf.mxu0
      %v507 = vadd.f32 0.0, %v506
      %508 = vmatmul.f32.gmra.mxu0 %v331
      %v509 = vpop.f32.mrf.mxu0
      %v510 = vadd.f32 0.0, %v509
      %511 = vmatmul.f32.gmra.mxu0 %v333
      %v512 = vpop.f32.mrf.mxu0
      %v513 = vadd.f32 0.0, %v512
      %514 = vmatmul.f32.gmra.mxu0 %v335
      %v515 = vpop.f32.mrf.mxu0
      %v516 = vadd.f32 0.0, %v515
      %517 = vmatmul.f32.gmra.mxu0 %v337
      %v518 = vpop.f32.mrf.mxu0
      %v519 = vadd.f32 0.0, %v518
      %520 = vmatmul.f32.gmra.mxu0 %v339
      %v521 = vpop.f32.mrf.mxu0
      %v522 = vadd.f32 0.0, %v521
      %523 = vmatmul.f32.gmra.mxu0 %v341
      %v524 = vpop.f32.mrf.mxu0
      %v525 = vadd.f32 0.0, %v524
      %526 = vmatmul.f32.gmra.mxu0 %v343
      %v527 = vpop.f32.mrf.mxu0
      %v528 = vadd.f32 0.0, %v527
      %529 = vmatmul.f32.gmra.mxu0 %v345
      %v530 = vpop.f32.mrf.mxu0
      %v531 = vadd.f32 0.0, %v530
      %532 = vmatmul.f32.gmra.mxu0 %v347
      %v533 = vpop.f32.mrf.mxu0
      %v534 = vadd.f32 0.0, %v533
      %535 = vmatmul.f32.gmra.mxu0 %v349
      %v536 = vpop.f32.mrf.mxu0
      %v537 = vadd.f32 0.0, %v536
      %538 = vmatmul.f32.gmra.mxu0 %v351
      %v539 = vpop.f32.mrf.mxu0
      %v540 = vadd.f32 0.0, %v539
      %541 = vmatmul.f32.gmra.mxu0 %v353
      %v542 = vpop.f32.mrf.mxu0
      %v543 = vadd.f32 0.0, %v542
      %544 = vmatmul.f32.gmra.mxu0 %v355
      %v545 = vpop.f32.mrf.mxu0
      %v546 = vadd.f32 0.0, %v545
      %547 = vmatmul.f32.gmra.mxu0 %v357
      %v548 = vpop.f32.mrf.mxu0
      %v549 = vadd.f32 0.0, %v548
      %550 = vmatmul.f32.gmra.mxu0 %v359
      %v551 = vpop.f32.mrf.mxu0
      %v552 = vadd.f32 0.0, %v551
      %553 = vmatmul.f32.gmra.mxu0 %v361
      %v554 = vpop.f32.mrf.mxu0
      %v555 = vadd.f32 0.0, %v554
      %556 = vmatmul.f32.gmra.mxu0 %v363
      %v557 = vpop.f32.mrf.mxu0
      %v558 = vadd.f32 0.0, %v557
      %559 = vmatmul.f32.gmra.mxu0 %v365
      %v560 = vpop.f32.mrf.mxu0
      %v561 = vadd.f32 0.0, %v560
      %562 = vmatmul.f32.gmra.mxu0 %v367
      %v563 = vpop.f32.mrf.mxu0
      %v564 = vadd.f32 0.0, %v563
      %565 = vmatmul.f32.gmra.mxu0 %v369
      %v566 = vpop.f32.mrf.mxu0
      %v567 = vadd.f32 0.0, %v566
      %568 = vmatmul.f32.gmra.mxu0 %v371
      %v569 = vpop.f32.mrf.mxu0
      %v570 = vadd.f32 0.0, %v569
      %571 = vmatmul.f32.gmra.mxu0 %v373
      %v572 = vpop.f32.mrf.mxu0
      %v573 = vadd.f32 0.0, %v572
      %574 = vmatmul.f32.gmra.mxu0 %v375
      %v575 = vpop.f32.mrf.mxu0
      %v576 = vadd.f32 0.0, %v575
      %577 = vmatmul.f32.gmra.mxu0 %v377
      %v578 = vpop.f32.mrf.mxu0
      %v579 = vadd.f32 0.0, %v578
      %580 = vmatmul.f32.gmra.mxu0 %v379
      %v581 = vpop.f32.mrf.mxu0
      %v582 = vadd.f32 0.0, %v581
      %583 = vmatmul.f32.gmra.mxu0 %v381
      %v584 = vpop.f32.mrf.mxu0
      %v585 = vadd.f32 0.0, %v584
      %586 = vmatmul.f32.gmra.mxu0 %v383
      %v587 = vpop.f32.mrf.mxu0
      %v588 = vadd.f32 0.0, %v587
      %589 = vmatmul.f32.gmra.mxu0 %v385
      %v590 = vpop.f32.mrf.mxu0
      %v591 = vadd.f32 0.0, %v590
      %592 = vmatmul.f32.gmra.mxu0 %v387
      %v593 = vpop.f32.mrf.mxu0
      %v594 = vadd.f32 0.0, %v593
      %595 = vmatmul.f32.gmra.mxu0 %v389
      %v596 = vpop.f32.mrf.mxu0
      %v597 = vadd.f32 0.0, %v596
      %598 = vmatmul.f32.gmra.mxu0 %v391
      %v599 = vpop.f32.mrf.mxu0
      %v600 = vadd.f32 0.0, %v599
      %601 = vmatmul.f32.gmra.mxu0 %v393
      %v602 = vpop.f32.mrf.mxu0
      %v603 = vadd.f32 0.0, %v602
      %604 = vmatmul.f32.gmra.mxu0 %v395
      %v605 = vpop.f32.mrf.mxu0
      %v606 = vadd.f32 0.0, %v605
      %607 = vmatmul.f32.gmra.mxu0 %v397
      %v608 = vpop.f32.mrf.mxu0
      %v609 = vadd.f32 0.0, %v608
      %610 = vmatmul.f32.gmra.mxu0 %v399
      %v611 = vpop.f32.mrf.mxu0
      %v612 = vadd.f32 0.0, %v611
      %613 = vmatmul.f32.gmra.mxu0 %v401
      %v614 = vpop.f32.mrf.mxu0
      %v615 = vadd.f32 0.0, %v614
      %616 = vmatmul.f32.gmra.mxu0 %v403
      %v617 = vpop.f32.mrf.mxu0
      %v618 = vadd.f32 0.0, %v617
      %619 = vmatmul.f32.gmra.mxu0 %v405
      %v620 = vpop.f32.mrf.mxu0
      %v621 = vadd.f32 0.0, %v620
      %622 = vmatmul.f32.gmra.mxu0 %v407
      %v623 = vpop.f32.mrf.mxu0
      %v624 = vadd.f32 0.0, %v623
      %625 = vmatmul.f32.gmra.mxu0 %v409
      %v626 = vpop.f32.mrf.mxu0
      %v627 = vadd.f32 0.0, %v626
      %628 = vmatmul.f32.gmra.mxu0 %v411
      %v629 = vpop.f32.mrf.mxu0
      %v630 = vadd.f32 0.0, %v629
      %631 = vmatmul.f32.gmra.mxu0 %v413
      %v632 = vpop.f32.mrf.mxu0
      %v633 = vadd.f32 0.0, %v632
      %634 = vmatmul.f32.gmra.mxu0 %v415
      %v635 = vpop.f32.mrf.mxu0
      %v636 = vadd.f32 0.0, %v635
      %637 = vmatmul.f32.gmra.mxu0 %v417
      %v638 = vpop.f32.mrf.mxu0
      %v639 = vadd.f32 0.0, %v638
      %640 = vmatmul.f32.gmra.mxu0 %v419
      %v641 = vpop.f32.mrf.mxu0
      %v642 = vadd.f32 0.0, %v641
      %643 = vmatmul.f32.gmra.mxu0 %v421
      %v644 = vpop.f32.mrf.mxu0
      %v645 = vadd.f32 0.0, %v644
      %646 = vmatmul.f32.gmra.mxu0 %v423
      %v647 = vpop.f32.mrf.mxu0
      %v648 = vadd.f32 0.0, %v647
      %649 = vmatmul.f32.gmra.mxu0 %v425
      %v650 = vpop.f32.mrf.mxu0
      %v651 = vadd.f32 0.0, %v650
      %652 = vmatmul.f32.gmra.mxu0 %v427
      %v653 = vpop.f32.mrf.mxu0
      %v654 = vadd.f32 0.0, %v653
      %655 = vmatmul.f32.gmra.mxu0 %v429
      %v656 = vpop.f32.mrf.mxu0
      %v657 = vadd.f32 0.0, %v656
      %658 = vmatmul.f32.gmra.mxu0 %v431
      %v659 = vpop.f32.mrf.mxu0
      %v660 = vadd.f32 0.0, %v659
      %661 = vmatmul.f32.gmra.mxu0 %v433
      %v662 = vpop.f32.mrf.mxu0
      %v663 = vadd.f32 0.0, %v662
      %664 = vmatmul.f32.gmra.mxu0 %v435
      %v665 = vpop.f32.mrf.mxu0
      %v666 = vadd.f32 0.0, %v665
      %667 = vmatmul.f32.gmra.mxu0 %v437
      %v668 = vpop.f32.mrf.mxu0
      %v669 = vadd.f32 0.0, %v668
      %670 = vmatmul.f32.gmra.mxu0 %v439
      %v671 = vpop.f32.mrf.mxu0
      %v672 = vadd.f32 0.0, %v671
      %673 = vmatmul.f32.gmra.mxu0 %v441
      %v674 = vpop.f32.mrf.mxu0
      %v675 = vadd.f32 0.0, %v674
      %676 = vmatmul.f32.gmra.mxu0 %v443
      %v677 = vpop.f32.mrf.mxu0
      %v678 = vadd.f32 0.0, %v677
      %679 = vmatmul.f32.gmra.mxu0 %v445
      %v680 = vpop.f32.mrf.mxu0
      %v681 = vadd.f32 0.0, %v680
      %682 = vmatmul.f32.gmra.mxu0 %v447
      %v683 = vpop.f32.mrf.mxu0
      %v684 = vadd.f32 0.0, %v683
      %685 = vmatmul.f32.gmra.mxu0 %v449
      %v686 = vpop.f32.mrf.mxu0
      %v687 = vadd.f32 0.0, %v686
      %688 = vmatmul.f32.gmra.mxu0 %v451
      %v689 = vpop.f32.mrf.mxu0
      %v690 = vadd.f32 0.0, %v689
      %691 = vmatmul.f32.gmra.mxu0 %v453
      %v692 = vpop.f32.mrf.mxu0
      %v693 = vadd.f32 0.0, %v692
      %694 = vdwg.mxu0
      %695 = vmatpush.msra.mxu0 %v485
      %696 = vmatpush.msra.mxu0 %v483
      %697 = vmatpush.msra.mxu0 %v481
      %698 = vmatpush.msra.mxu0 %v479
      %699 = vmatpush.msra.mxu0 %v477
      %700 = vmatpush.msra.mxu0 %v475
      %701 = vmatpush.msra.mxu0 %v473
      %702 = vmatpush.msra.mxu0 %v471
      %703 = vmatpush.msra.mxu0 %v469
      %704 = vmatpush.msra.mxu0 %v467
      %705 = vmatpush.msra.mxu0 %v465
      %706 = vmatpush.msra.mxu0 %v463
      %707 = vmatpush.msra.mxu0 %v461
      %708 = vmatpush.msra.mxu0 %v459
      %709 = vmatpush.msra.mxu0 %v457
      %710 = vmatpush.msra.mxu0 %v455
      %711 = vmatmul.f32.gmra.mxu0 %v327
      %v712 = vpop.f32.mrf.mxu0
      %v713 = vadd.f32 0.0, %v712
      %714 = vmatmul.f32.gmra.mxu0 %v329
      %v715 = vpop.f32.mrf.mxu0
      %v716 = vadd.f32 0.0, %v715
      %717 = vmatmul.f32.gmra.mxu0 %v331
      %v718 = vpop.f32.mrf.mxu0
      %v719 = vadd.f32 0.0, %v718
      %720 = vmatmul.f32.gmra.mxu0 %v333
      %v721 = vpop.f32.mrf.mxu0
      %v722 = vadd.f32 0.0, %v721
      %723 = vmatmul.f32.gmra.mxu0 %v335
      %v724 = vpop.f32.mrf.mxu0
      %v725 = vadd.f32 0.0, %v724
      %726 = vmatmul.f32.gmra.mxu0 %v337
      %v727 = vpop.f32.mrf.mxu0
      %v728 = vadd.f32 0.0, %v727
      %729 = vmatmul.f32.gmra.mxu0 %v339
      %v730 = vpop.f32.mrf.mxu0
      %v731 = vadd.f32 0.0, %v730
      %732 = vmatmul.f32.gmra.mxu0 %v341
      %v733 = vpop.f32.mrf.mxu0
      %v734 = vadd.f32 0.0, %v733
      %735 = vmatmul.f32.gmra.mxu0 %v343
      %v736 = vpop.f32.mrf.mxu0
      %v737 = vadd.f32 0.0, %v736
      %738 = vmatmul.f32.gmra.mxu0 %v345
      %v739 = vpop.f32.mrf.mxu0
      %v740 = vadd.f32 0.0, %v739
      %741 = vmatmul.f32.gmra.mxu0 %v347
      %v742 = vpop.f32.mrf.mxu0
      %v743 = vadd.f32 0.0, %v742
      %744 = vmatmul.f32.gmra.mxu0 %v349
      %v745 = vpop.f32.mrf.mxu0
      %v746 = vadd.f32 0.0, %v745
      %747 = vmatmul.f32.gmra.mxu0 %v351
      %v748 = vpop.f32.mrf.mxu0
      %v749 = vadd.f32 0.0, %v748
      %750 = vmatmul.f32.gmra.mxu0 %v353
      %v751 = vpop.f32.mrf.mxu0
      %v752 = vadd.f32 0.0, %v751
      %753 = vmatmul.f32.gmra.mxu0 %v355
      %v754 = vpop.f32.mrf.mxu0
      %v755 = vadd.f32 0.0, %v754
      %756 = vmatmul.f32.gmra.mxu0 %v357
      %v757 = vpop.f32.mrf.mxu0
      %v758 = vadd.f32 0.0, %v757
      %759 = vmatmul.f32.gmra.mxu0 %v359
      %v760 = vpop.f32.mrf.mxu0
      %v761 = vadd.f32 0.0, %v760
      %762 = vmatmul.f32.gmra.mxu0 %v361
      %v763 = vpop.f32.mrf.mxu0
      %v764 = vadd.f32 0.0, %v763
      %765 = vmatmul.f32.gmra.mxu0 %v363
      %v766 = vpop.f32.mrf.mxu0
      %v767 = vadd.f32 0.0, %v766
      %768 = vmatmul.f32.gmra.mxu0 %v365
      %v769 = vpop.f32.mrf.mxu0
      %v770 = vadd.f32 0.0, %v769
      %771 = vmatmul.f32.gmra.mxu0 %v367
      %v772 = vpop.f32.mrf.mxu0
      %v773 = vadd.f32 0.0, %v772
      %774 = vmatmul.f32.gmra.mxu0 %v369
      %v775 = vpop.f32.mrf.mxu0
      %v776 = vadd.f32 0.0, %v775
      %777 = vmatmul.f32.gmra.mxu0 %v371
      %v778 = vpop.f32.mrf.mxu0
      %v779 = vadd.f32 0.0, %v778
      %780 = vmatmul.f32.gmra.mxu0 %v373
      %v781 = vpop.f32.mrf.mxu0
      %v782 = vadd.f32 0.0, %v781
      %783 = vmatmul.f32.gmra.mxu0 %v375
      %v784 = vpop.f32.mrf.mxu0
      %v785 = vadd.f32 0.0, %v784
      %786 = vmatmul.f32.gmra.mxu0 %v377
      %v787 = vpop.f32.mrf.mxu0
      %v788 = vadd.f32 0.0, %v787
      %789 = vmatmul.f32.gmra.mxu0 %v379
      %v790 = vpop.f32.mrf.mxu0
      %v791 = vadd.f32 0.0, %v790
      %792 = vmatmul.f32.gmra.mxu0 %v381
      %v793 = vpop.f32.mrf.mxu0
      %v794 = vadd.f32 0.0, %v793
      %795 = vmatmul.f32.gmra.mxu0 %v383
      %v796 = vpop.f32.mrf.mxu0
      %v797 = vadd.f32 0.0, %v796
      %798 = vmatmul.f32.gmra.mxu0 %v385
      %v799 = vpop.f32.mrf.mxu0
      %v800 = vadd.f32 0.0, %v799
      %801 = vmatmul.f32.gmra.mxu0 %v387
      %v802 = vpop.f32.mrf.mxu0
      %v803 = vadd.f32 0.0, %v802
      %804 = vmatmul.f32.gmra.mxu0 %v389
      %v805 = vpop.f32.mrf.mxu0
      %v806 = vadd.f32 0.0, %v805
      %807 = vmatmul.f32.gmra.mxu0 %v391
      %v808 = vpop.f32.mrf.mxu0
      %v809 = vadd.f32 0.0, %v808
      %810 = vmatmul.f32.gmra.mxu0 %v393
      %v811 = vpop.f32.mrf.mxu0
      %v812 = vadd.f32 0.0, %v811
      %813 = vmatmul.f32.gmra.mxu0 %v395
      %v814 = vpop.f32.mrf.mxu0
      %v815 = vadd.f32 0.0, %v814
      %816 = vmatmul.f32.gmra.mxu0 %v397
      %v817 = vpop.f32.mrf.mxu0
      %v818 = vadd.f32 0.0, %v817
      %819 = vmatmul.f32.gmra.mxu0 %v399
      %v820 = vpop.f32.mrf.mxu0
      %v821 = vadd.f32 0.0, %v820
      %822 = vmatmul.f32.gmra.mxu0 %v401
      %v823 = vpop.f32.mrf.mxu0
      %v824 = vadd.f32 0.0, %v823
      %825 = vmatmul.f32.gmra.mxu0 %v403
      %v826 = vpop.f32.mrf.mxu0
      %v827 = vadd.f32 0.0, %v826
      %828 = vmatmul.f32.gmra.mxu0 %v405
      %v829 = vpop.f32.mrf.mxu0
      %v830 = vadd.f32 0.0, %v829
      %831 = vmatmul.f32.gmra.mxu0 %v407
      %v832 = vpop.f32.mrf.mxu0
      %v833 = vadd.f32 0.0, %v832
      %834 = vmatmul.f32.gmra.mxu0 %v409
      %v835 = vpop.f32.mrf.mxu0
      %v836 = vadd.f32 0.0, %v835
      %837 = vmatmul.f32.gmra.mxu0 %v411
      %v838 = vpop.f32.mrf.mxu0
      %v839 = vadd.f32 0.0, %v838
      %840 = vmatmul.f32.gmra.mxu0 %v413
      %v841 = vpop.f32.mrf.mxu0
      %v842 = vadd.f32 0.0, %v841
      %843 = vmatmul.f32.gmra.mxu0 %v415
      %v844 = vpop.f32.mrf.mxu0
      %v845 = vadd.f32 0.0, %v844
      %846 = vmatmul.f32.gmra.mxu0 %v417
      %v847 = vpop.f32.mrf.mxu0
      %v848 = vadd.f32 0.0, %v847
      %849 = vmatmul.f32.gmra.mxu0 %v419
      %v850 = vpop.f32.mrf.mxu0
      %v851 = vadd.f32 0.0, %v850
      %852 = vmatmul.f32.gmra.mxu0 %v421
      %v853 = vpop.f32.mrf.mxu0
      %v854 = vadd.f32 0.0, %v853
      %855 = vmatmul.f32.gmra.mxu0 %v423
      %v856 = vpop.f32.mrf.mxu0
      %v857 = vadd.f32 0.0, %v856
      %858 = vmatmul.f32.gmra.mxu0 %v425
      %v859 = vpop.f32.mrf.mxu0
      %v860 = vadd.f32 0.0, %v859
      %861 = vmatmul.f32.gmra.mxu0 %v427
      %v862 = vpop.f32.mrf.mxu0
      %v863 = vadd.f32 0.0, %v862
      %864 = vmatmul.f32.gmra.mxu0 %v429
      %v865 = vpop.f32.mrf.mxu0
      %v866 = vadd.f32 0.0, %v865
      %867 = vmatmul.f32.gmra.mxu0 %v431
      %v868 = vpop.f32.mrf.mxu0
      %v869 = vadd.f32 0.0, %v868
      %870 = vmatmul.f32.gmra.mxu0 %v433
      %v871 = vpop.f32.mrf.mxu0
      %v872 = vadd.f32 0.0, %v871
      %873 = vmatmul.f32.gmra.mxu0 %v435
      %v874 = vpop.f32.mrf.mxu0
      %v875 = vadd.f32 0.0, %v874
      %876 = vmatmul.f32.gmra.mxu0 %v437
      %v877 = vpop.f32.mrf.mxu0
      %v878 = vadd.f32 0.0, %v877
      %879 = vmatmul.f32.gmra.mxu0 %v439
      %v880 = vpop.f32.mrf.mxu0
      %v881 = vadd.f32 0.0, %v880
      %882 = vmatmul.f32.gmra.mxu0 %v441
      %v883 = vpop.f32.mrf.mxu0
      %v884 = vadd.f32 0.0, %v883
      %885 = vmatmul.f32.gmra.mxu0 %v443
      %v886 = vpop.f32.mrf.mxu0
      %v887 = vadd.f32 0.0, %v886
      %888 = vmatmul.f32.gmra.mxu0 %v445
      %v889 = vpop.f32.mrf.mxu0
      %v890 = vadd.f32 0.0, %v889
      %891 = vmatmul.f32.gmra.mxu0 %v447
      %v892 = vpop.f32.mrf.mxu0
      %v893 = vadd.f32 0.0, %v892
      %894 = vmatmul.f32.gmra.mxu0 %v449
      %v895 = vpop.f32.mrf.mxu0
      %v896 = vadd.f32 0.0, %v895
      %897 = vmatmul.f32.gmra.mxu0 %v451
      %v898 = vpop.f32.mrf.mxu0
      %v899 = vadd.f32 0.0, %v898
      %900 = vmatmul.f32.gmra.mxu0 %v453
      %v901 = vpop.f32.mrf.mxu0
      %v902 = vadd.f32 0.0, %v901
      %903 = vdwg.mxu0
      %v904 = vld [vmem:[%s1 + $0x10] sm:$0xff]
      %v905 = vld [vmem:[%s1 + $0x50] sm:$0xff]
      %v906 = vld [vmem:[%s1 + $0x90] sm:$0xff]
      %v907 = vld [vmem:[%s1 + $0xd0] sm:$0xff]
      %v908 = vld [vmem:[%s1 + $0x110] sm:$0xff]
      %v909 = vld [vmem:[%s1 + $0x150] sm:$0xff]
      %v910 = vld [vmem:[%s1 + $0x190] sm:$0xff]
      %v911 = vld [vmem:[%s1 + $0x1d0] sm:$0xff]
      %v912 = vld [vmem:[%s1 + $0x210] sm:$0xff]
      %v913 = vld [vmem:[%s1 + $0x250] sm:$0xff]
      %v914 = vld [vmem:[%s1 + $0x290] sm:$0xff]
      %v915 = vld [vmem:[%s1 + $0x2d0] sm:$0xff]
      %v916 = vld [vmem:[%s1 + $0x310] sm:$0xff]
      %v917 = vld [vmem:[%s1 + $0x350] sm:$0xff]
      %v918 = vld [vmem:[%s1 + $0x390] sm:$0xff]
      %v919 = vld [vmem:[%s1 + $0x3d0] sm:$0xff]
      %920 = vmatpush.msra.mxu0 %v919
      %921 = vmatpush.msra.mxu0 %v918
      %922 = vmatpush.msra.mxu0 %v917
      %923 = vmatpush.msra.mxu0 %v916
      %924 = vmatpush.msra.mxu0 %v915
      %925 = vmatpush.msra.mxu0 %v914
      %926 = vmatpush.msra.mxu0 %v913
      %927 = vmatpush.msra.mxu0 %v912
      %928 = vmatpush.msra.mxu0 %v911
      %929 = vmatpush.msra.mxu0 %v910
      %930 = vmatpush.msra.mxu0 %v909
      %931 = vmatpush.msra.mxu0 %v908
      %932 = vmatpush.msra.mxu0 %v907
      %933 = vmatpush.msra.mxu0 %v906
      %934 = vmatpush.msra.mxu0 %v905
      %935 = vmatpush.msra.mxu0 %v904
      %936 = vmatmul.f32.gmra.mxu0 %v199
      %v937 = vpop.f32.mrf.mxu0
      %v938 = vadd.f32 0.0, %v937
      %939 = vmatmul.f32.gmra.mxu0 %v201
      %v940 = vpop.f32.mrf.mxu0
      %v941 = vadd.f32 0.0, %v940
      %942 = vmatmul.f32.gmra.mxu0 %v203
      %v943 = vpop.f32.mrf.mxu0
      %v944 = vadd.f32 0.0, %v943
      %945 = vmatmul.f32.gmra.mxu0 %v205
      %v946 = vpop.f32.mrf.mxu0
      %v947 = vadd.f32 0.0, %v946
      %948 = vmatmul.f32.gmra.mxu0 %v207
      %v949 = vpop.f32.mrf.mxu0
      %v950 = vadd.f32 0.0, %v949
      %951 = vmatmul.f32.gmra.mxu0 %v209
      %v952 = vpop.f32.mrf.mxu0
      %v953 = vadd.f32 0.0, %v952
      %954 = vmatmul.f32.gmra.mxu0 %v211
      %v955 = vpop.f32.mrf.mxu0
      %v956 = vadd.f32 0.0, %v955
      %957 = vmatmul.f32.gmra.mxu0 %v213
      %v958 = vpop.f32.mrf.mxu0
      %v959 = vadd.f32 0.0, %v958
      %960 = vmatmul.f32.gmra.mxu0 %v215
      %v961 = vpop.f32.mrf.mxu0
      %v962 = vadd.f32 0.0, %v961
      %963 = vmatmul.f32.gmra.mxu0 %v217
      %v964 = vpop.f32.mrf.mxu0
      %v965 = vadd.f32 0.0, %v964
      %966 = vmatmul.f32.gmra.mxu0 %v219
      %v967 = vpop.f32.mrf.mxu0
      %v968 = vadd.f32 0.0, %v967
      %969 = vmatmul.f32.gmra.mxu0 %v221
      %v970 = vpop.f32.mrf.mxu0
      %v971 = vadd.f32 0.0, %v970
      %972 = vmatmul.f32.gmra.mxu0 %v223
      %v973 = vpop.f32.mrf.mxu0
      %v974 = vadd.f32 0.0, %v973
      %975 = vmatmul.f32.gmra.mxu0 %v225
      %v976 = vpop.f32.mrf.mxu0
      %v977 = vadd.f32 0.0, %v976
      %978 = vmatmul.f32.gmra.mxu0 %v227
      %v979 = vpop.f32.mrf.mxu0
      %v980 = vadd.f32 0.0, %v979
      %981 = vmatmul.f32.gmra.mxu0 %v229
      %v982 = vpop.f32.mrf.mxu0
      %v983 = vadd.f32 0.0, %v982
      %984 = vmatmul.f32.gmra.mxu0 %v231
      %v985 = vpop.f32.mrf.mxu0
      %v986 = vadd.f32 0.0, %v985
      %987 = vmatmul.f32.gmra.mxu0 %v233
      %v988 = vpop.f32.mrf.mxu0
      %v989 = vadd.f32 0.0, %v988
      %990 = vmatmul.f32.gmra.mxu0 %v235
      %v991 = vpop.f32.mrf.mxu0
      %v992 = vadd.f32 0.0, %v991
      %993 = vmatmul.f32.gmra.mxu0 %v237
      %v994 = vpop.f32.mrf.mxu0
      %v995 = vadd.f32 0.0, %v994
      %996 = vmatmul.f32.gmra.mxu0 %v239
      %v997 = vpop.f32.mrf.mxu0
      %v998 = vadd.f32 0.0, %v997
      %999 = vmatmul.f32.gmra.mxu0 %v241
      %v1000 = vpop.f32.mrf.mxu0
      %v1001 = vadd.f32 0.0, %v1000
      %1002 = vmatmul.f32.gmra.mxu0 %v243
      %v1003 = vpop.f32.mrf.mxu0
      %v1004 = vadd.f32 0.0, %v1003
      %1005 = vmatmul.f32.gmra.mxu0 %v245
      %v1006 = vpop.f32.mrf.mxu0
      %v1007 = vadd.f32 0.0, %v1006
      %1008 = vmatmul.f32.gmra.mxu0 %v247
      %v1009 = vpop.f32.mrf.mxu0
      %v1010 = vadd.f32 0.0, %v1009
      %1011 = vmatmul.f32.gmra.mxu0 %v249
      %v1012 = vpop.f32.mrf.mxu0
      %v1013 = vadd.f32 0.0, %v1012
      %1014 = vmatmul.f32.gmra.mxu0 %v251
      %v1015 = vpop.f32.mrf.mxu0
      %v1016 = vadd.f32 0.0, %v1015
      %1017 = vmatmul.f32.gmra.mxu0 %v253
      %v1018 = vpop.f32.mrf.mxu0
      %v1019 = vadd.f32 0.0, %v1018
      %1020 = vmatmul.f32.gmra.mxu0 %v255
      %v1021 = vpop.f32.mrf.mxu0
      %v1022 = vadd.f32 0.0, %v1021
      %1023 = vmatmul.f32.gmra.mxu0 %v257
      %v1024 = vpop.f32.mrf.mxu0
      %v1025 = vadd.f32 0.0, %v1024
      %1026 = vmatmul.f32.gmra.mxu0 %v259
      %v1027 = vpop.f32.mrf.mxu0
      %v1028 = vadd.f32 0.0, %v1027
      %1029 = vmatmul.f32.gmra.mxu0 %v261
      %v1030 = vpop.f32.mrf.mxu0
      %v1031 = vadd.f32 0.0, %v1030
      %1032 = vmatmul.f32.gmra.mxu0 %v263
      %v1033 = vpop.f32.mrf.mxu0
      %v1034 = vadd.f32 0.0, %v1033
      %1035 = vmatmul.f32.gmra.mxu0 %v265
      %v1036 = vpop.f32.mrf.mxu0
      %v1037 = vadd.f32 0.0, %v1036
      %1038 = vmatmul.f32.gmra.mxu0 %v267
      %v1039 = vpop.f32.mrf.mxu0
      %v1040 = vadd.f32 0.0, %v1039
      %1041 = vmatmul.f32.gmra.mxu0 %v269
      %v1042 = vpop.f32.mrf.mxu0
      %v1043 = vadd.f32 0.0, %v1042
      %1044 = vmatmul.f32.gmra.mxu0 %v271
      %v1045 = vpop.f32.mrf.mxu0
      %v1046 = vadd.f32 0.0, %v1045
      %1047 = vmatmul.f32.gmra.mxu0 %v273
      %v1048 = vpop.f32.mrf.mxu0
      %v1049 = vadd.f32 0.0, %v1048
      %1050 = vmatmul.f32.gmra.mxu0 %v275
      %v1051 = vpop.f32.mrf.mxu0
      %v1052 = vadd.f32 0.0, %v1051
      %1053 = vmatmul.f32.gmra.mxu0 %v277
      %v1054 = vpop.f32.mrf.mxu0
      %v1055 = vadd.f32 0.0, %v1054
      %1056 = vmatmul.f32.gmra.mxu0 %v279
      %v1057 = vpop.f32.mrf.mxu0
      %v1058 = vadd.f32 0.0, %v1057
      %1059 = vmatmul.f32.gmra.mxu0 %v281
      %v1060 = vpop.f32.mrf.mxu0
      %v1061 = vadd.f32 0.0, %v1060
      %1062 = vmatmul.f32.gmra.mxu0 %v283
      %v1063 = vpop.f32.mrf.mxu0
      %v1064 = vadd.f32 0.0, %v1063
      %1065 = vmatmul.f32.gmra.mxu0 %v285
      %v1066 = vpop.f32.mrf.mxu0
      %v1067 = vadd.f32 0.0, %v1066
      %1068 = vmatmul.f32.gmra.mxu0 %v287
      %v1069 = vpop.f32.mrf.mxu0
      %v1070 = vadd.f32 0.0, %v1069
      %1071 = vmatmul.f32.gmra.mxu0 %v289
      %v1072 = vpop.f32.mrf.mxu0
      %v1073 = vadd.f32 0.0, %v1072
      %1074 = vmatmul.f32.gmra.mxu0 %v291
      %v1075 = vpop.f32.mrf.mxu0
      %v1076 = vadd.f32 0.0, %v1075
      %1077 = vmatmul.f32.gmra.mxu0 %v293
      %v1078 = vpop.f32.mrf.mxu0
      %v1079 = vadd.f32 0.0, %v1078
      %1080 = vmatmul.f32.gmra.mxu0 %v295
      %v1081 = vpop.f32.mrf.mxu0
      %v1082 = vadd.f32 0.0, %v1081
      %1083 = vmatmul.f32.gmra.mxu0 %v297
      %v1084 = vpop.f32.mrf.mxu0
      %v1085 = vadd.f32 0.0, %v1084
      %1086 = vmatmul.f32.gmra.mxu0 %v299
      %v1087 = vpop.f32.mrf.mxu0
      %v1088 = vadd.f32 0.0, %v1087
      %1089 = vmatmul.f32.gmra.mxu0 %v301
      %v1090 = vpop.f32.mrf.mxu0
      %v1091 = vadd.f32 0.0, %v1090
      %1092 = vmatmul.f32.gmra.mxu0 %v303
      %v1093 = vpop.f32.mrf.mxu0
      %v1094 = vadd.f32 0.0, %v1093
      %1095 = vmatmul.f32.gmra.mxu0 %v305
      %v1096 = vpop.f32.mrf.mxu0
      %v1097 = vadd.f32 0.0, %v1096
      %1098 = vmatmul.f32.gmra.mxu0 %v307
      %v1099 = vpop.f32.mrf.mxu0
      %v1100 = vadd.f32 0.0, %v1099
      %1101 = vmatmul.f32.gmra.mxu0 %v309
      %v1102 = vpop.f32.mrf.mxu0
      %v1103 = vadd.f32 0.0, %v1102
      %1104 = vmatmul.f32.gmra.mxu0 %v311
      %v1105 = vpop.f32.mrf.mxu0
      %v1106 = vadd.f32 0.0, %v1105
      %1107 = vmatmul.f32.gmra.mxu0 %v313
      %v1108 = vpop.f32.mrf.mxu0
      %v1109 = vadd.f32 0.0, %v1108
      %1110 = vmatmul.f32.gmra.mxu0 %v315
      %v1111 = vpop.f32.mrf.mxu0
      %v1112 = vadd.f32 0.0, %v1111
      %1113 = vmatmul.f32.gmra.mxu0 %v317
      %v1114 = vpop.f32.mrf.mxu0
      %v1115 = vadd.f32 0.0, %v1114
      %1116 = vmatmul.f32.gmra.mxu0 %v319
      %v1117 = vpop.f32.mrf.mxu0
      %v1118 = vadd.f32 0.0, %v1117
      %1119 = vmatmul.f32.gmra.mxu0 %v321
      %v1120 = vpop.f32.mrf.mxu0
      %v1121 = vadd.f32 0.0, %v1120
      %1122 = vmatmul.f32.gmra.mxu0 %v323
      %v1123 = vpop.f32.mrf.mxu0
      %v1124 = vadd.f32 0.0, %v1123
      %1125 = vmatmul.f32.gmra.mxu0 %v325
      %v1126 = vpop.f32.mrf.mxu0
      %v1127 = vadd.f32 0.0, %v1126
      %1128 = vdwg.mxu0
      %v1129 = vrot.slane %v504, 7
      %v1130 = vrot.slane %v507, 7
      %v1131 = vrot.slane %v510, 7
      %v1132 = vrot.slane %v513, 7
      %v1133 = vrot.slane %v516, 7
      %v1134 = vrot.slane %v519, 7
      %v1135 = vrot.slane %v522, 7
      %v1136 = vrot.slane %v525, 7
      %v1137 = vrot.slane %v528, 7
      %v1138 = vrot.slane %v531, 7
      %v1139 = vrot.slane %v534, 7
      %v1140 = vrot.slane %v537, 7
      %v1141 = vrot.slane %v540, 7
      %v1142 = vrot.slane %v543, 7
      %v1143 = vrot.slane %v546, 7
      %v1144 = vrot.slane %v549, 7
      %v1145 = vrot.slane %v552, 7
      %v1146 = vrot.slane %v555, 7
      %v1147 = vrot.slane %v558, 7
      %v1148 = vrot.slane %v561, 7
      %v1149 = vrot.slane %v564, 7
      %v1150 = vrot.slane %v567, 7
      %v1151 = vrot.slane %v570, 7
      %v1152 = vrot.slane %v573, 7
      %v1153 = vrot.slane %v576, 7
      %v1154 = vrot.slane %v579, 7
      %v1155 = vrot.slane %v582, 7
      %v1156 = vrot.slane %v585, 7
      %v1157 = vrot.slane %v588, 7
      %v1158 = vrot.slane %v591, 7
      %v1159 = vrot.slane %v594, 7
      %v1160 = vrot.slane %v597, 7
      %v1161 = vrot.slane %v600, 7
      %v1162 = vrot.slane %v603, 7
      %v1163 = vrot.slane %v606, 7
      %v1164 = vrot.slane %v609, 7
      %v1165 = vrot.slane %v612, 7
      %v1166 = vrot.slane %v615, 7
      %v1167 = vrot.slane %v618, 7
      %v1168 = vrot.slane %v621, 7
      %v1169 = vrot.slane %v624, 7
      %v1170 = vrot.slane %v627, 7
      %v1171 = vrot.slane %v630, 7
      %v1172 = vrot.slane %v633, 7
      %v1173 = vrot.slane %v636, 7
      %v1174 = vrot.slane %v639, 7
      %v1175 = vrot.slane %v642, 7
      %v1176 = vrot.slane %v645, 7
      %v1177 = vrot.slane %v648, 7
      %v1178 = vrot.slane %v651, 7
      %v1179 = vrot.slane %v654, 7
      %v1180 = vrot.slane %v657, 7
      %v1181 = vrot.slane %v660, 7
      %v1182 = vrot.slane %v663, 7
      %v1183 = vrot.slane %v666, 7
      %v1184 = vrot.slane %v669, 7
      %v1185 = vrot.slane %v672, 7
      %v1186 = vrot.slane %v675, 7
      %v1187 = vrot.slane %v678, 7
      %v1188 = vrot.slane %v681, 7
      %v1189 = vrot.slane %v684, 7
      %v1190 = vrot.slane %v687, 7
      %v1191 = vrot.slane %v690, 7
      %v1192 = vrot.slane %v693, 7
      %v1193 = vlaneseq
      %v1194 = vshrl.u32 %v1193, 7
      %vm1195 = vcmp.lt.s32.totalorder %v1194, 1
      %v1196 = vsel %vm1195, %v1191, %v1192
      %v1197 = vsel %vm1195, %v1190, %v1191
      %v1198 = vsel %vm1195, %v1189, %v1190
      %v1199 = vsel %vm1195, %v1188, %v1189
      %v1200 = vsel %vm1195, %v1187, %v1188
      %v1201 = vsel %vm1195, %v1186, %v1187
      %v1202 = vsel %vm1195, %v1185, %v1186
      %v1203 = vsel %vm1195, %v1184, %v1185
      %v1204 = vsel %vm1195, %v1183, %v1184
      %v1205 = vsel %vm1195, %v1182, %v1183
      %v1206 = vsel %vm1195, %v1181, %v1182
      %v1207 = vsel %vm1195, %v1180, %v1181
      %v1208 = vsel %vm1195, %v1179, %v1180
      %v1209 = vsel %vm1195, %v1178, %v1179
      %v1210 = vsel %vm1195, %v1177, %v1178
      %v1211 = vsel %vm1195, %v1176, %v1177
      %v1212 = vsel %vm1195, %v1175, %v1176
      %v1213 = vsel %vm1195, %v1174, %v1175
      %v1214 = vsel %vm1195, %v1173, %v1174
      %v1215 = vsel %vm1195, %v1172, %v1173
      %v1216 = vsel %vm1195, %v1171, %v1172
      %v1217 = vsel %vm1195, %v1170, %v1171
      %v1218 = vsel %vm1195, %v1169, %v1170
      %v1219 = vsel %vm1195, %v1168, %v1169
      %v1220 = vsel %vm1195, %v1167, %v1168
      %v1221 = vsel %vm1195, %v1166, %v1167
      %v1222 = vsel %vm1195, %v1165, %v1166
      %v1223 = vsel %vm1195, %v1164, %v1165
      %v1224 = vsel %vm1195, %v1163, %v1164
      %v1225 = vsel %vm1195, %v1162, %v1163
      %v1226 = vsel %vm1195, %v1161, %v1162
      %v1227 = vsel %vm1195, %v1160, %v1161
      %v1228 = vsel %vm1195, %v1159, %v1160
      %v1229 = vsel %vm1195, %v1158, %v1159
      %v1230 = vsel %vm1195, %v1157, %v1158
      %v1231 = vsel %vm1195, %v1156, %v1157
      %v1232 = vsel %vm1195, %v1155, %v1156
      %v1233 = vsel %vm1195, %v1154, %v1155
      %v1234 = vsel %vm1195, %v1153, %v1154
      %v1235 = vsel %vm1195, %v1152, %v1153
      %v1236 = vsel %vm1195, %v1151, %v1152
      %v1237 = vsel %vm1195, %v1150, %v1151
      %v1238 = vsel %vm1195, %v1149, %v1150
      %v1239 = vsel %vm1195, %v1148, %v1149
      %v1240 = vsel %vm1195, %v1147, %v1148
      %v1241 = vsel %vm1195, %v1146, %v1147
      %v1242 = vsel %vm1195, %v1145, %v1146
      %v1243 = vsel %vm1195, %v1144, %v1145
      %v1244 = vsel %vm1195, %v1143, %v1144
      %v1245 = vsel %vm1195, %v1142, %v1143
      %v1246 = vsel %vm1195, %v1141, %v1142
      %v1247 = vsel %vm1195, %v1140, %v1141
      %v1248 = vsel %vm1195, %v1139, %v1140
      %v1249 = vsel %vm1195, %v1138, %v1139
      %v1250 = vsel %vm1195, %v1137, %v1138
      %v1251 = vsel %vm1195, %v1136, %v1137
      %v1252 = vsel %vm1195, %v1135, %v1136
      %v1253 = vsel %vm1195, %v1134, %v1135
      %v1254 = vsel %vm1195, %v1133, %v1134
      %v1255 = vsel %vm1195, %v1132, %v1133
      %v1256 = vsel %vm1195, %v1131, %v1132
      %v1257 = vsel %vm1195, %v1130, %v1131
      %v1258 = vsel %vm1195, %v1129, %v1130
      %v1259 = vsel %vm1195, %v1192, %v1129
      %v1260 = vadd.s32 %v1194, 8
      %v1261 = vadd.s32 %v1194, 16
      %v1262 = vadd.s32 %v1194, 24
      %v1263 = vadd.s32 %v1194, 32
      %v1264 = vadd.s32 %v1194, 40
      %v1265 = vadd.s32 %v1194, 48
      %v1266 = vadd.s32 %v1194, 56
      %v1267 = vadd.s32 %v1194, 64
      %v1268 = vadd.s32 %v1194, 72
      %v1269 = vadd.s32 %v1194, 80
      %v1270 = vadd.s32 %v1194, 88
      %v1271 = vadd.s32 %v1194, 96
      %v1272 = vadd.s32 %v1194, 104
      %v1273 = vadd.s32 %v1194, 112
      %v1274 = vadd.s32 %v1194, 120
      %v1275 = vadd.s32 %v1194, 128
      %v1276 = vadd.s32 %v1194, 136
      %v1277 = vadd.s32 %v1194, 144
      %v1278 = vadd.s32 %v1194, 152
      %v1279 = vadd.s32 %v1194, 160
      %v1280 = vadd.s32 %v1194, 168
      %v1281 = vadd.s32 %v1194, 176
      %v1282 = vadd.s32 %v1194, 184
      %v1283 = vadd.s32 %v1194, 192
      %v1284 = vadd.s32 %v1194, 200
      %v1285 = vadd.s32 %v1194, 208
      %v1286 = vadd.s32 %v1194, 216
      %v1287 = vadd.s32 %v1194, 224
      %v1288 = vadd.s32 %v1194, 232
      %v1289 = vadd.s32 %v1194, 240
      %v1290 = vadd.s32 %v1194, 248
      %v1291 = vadd.s32 %v1194, 256
      %v1292 = vadd.s32 %v1194, 264
      %v1293 = vadd.s32 %v1194, 272
      %v1294 = vadd.s32 %v1194, 280
      %v1295 = vadd.s32 %v1194, 288
      %v1296 = vadd.s32 %v1194, 296
      %v1297 = vadd.s32 %v1194, 304
      %v1298 = vadd.s32 %v1194, 312
      %v1299 = vadd.s32 %v1194, 320
      %v1300 = vadd.s32 %v1194, 328
      %v1301 = vadd.s32 %v1194, 336
      %v1302 = vadd.s32 %v1194, 344
      %v1303 = vadd.s32 %v1194, 352
      %v1304 = vadd.s32 %v1194, 360
      %v1305 = vadd.s32 %v1194, 368
      %v1306 = vadd.s32 %v1194, 376
      %v1307 = vadd.s32 %v1194, 384
      %v1308 = vadd.s32 %v1194, 392
      %v1309 = vadd.s32 %v1194, 400
      %v1310 = vadd.s32 %v1194, 408
      %v1311 = vadd.s32 %v1194, 416
      %v1312 = vadd.s32 %v1194, 424
      %v1313 = vadd.s32 %v1194, 432
      %v1314 = vadd.s32 %v1194, 440
      %v1315 = vadd.s32 %v1194, 448
      %v1316 = vadd.s32 %v1194, 456
      %v1317 = vadd.s32 %v1194, 464
      %v1318 = vadd.s32 %v1194, 472
      %v1319 = vadd.s32 %v1194, 480
      %v1320 = vadd.s32 %v1194, 488
      %v1321 = vadd.s32 %v1194, 496
      %v1322 = vadd.s32 %v1194, 504
      %vm1323 = vcmp.lt.s32.totalorder %v1194, 0
      %v1324 = vsub.s32 0, %v1194
      %v1325 = vsel %vm1323, %v1324, %v1194
      %v1326 = vshrl.u32 %v1325, 4
      %v1327 = vand.u32 %v1325, 15
      %v1328 = vsub.s32 0, %v1327
      %v1329 = vsel %vm1323, %v1328, %v1327
      %vm1330 = vcmp.lt.s32.totalorder %v1260, 0
      %v1331 = vsub.s32 0, %v1260
      %v1332 = vsel %vm1330, %v1331, %v1260
      %v1333 = vshrl.u32 %v1332, 4
      %v1334 = vand.u32 %v1332, 15
      %v1335 = vsub.s32 0, %v1334
      %v1336 = vsel %vm1330, %v1335, %v1334
      %vm1337 = vcmp.lt.s32.totalorder %v1261, 0
      %v1338 = vsub.s32 0, %v1261
      %v1339 = vsel %vm1337, %v1338, %v1261
      %v1340 = vshrl.u32 %v1339, 4
      %v1341 = vand.u32 %v1339, 15
      %v1342 = vsub.s32 0, %v1341
      %v1343 = vsel %vm1337, %v1342, %v1341
      %vm1344 = vcmp.lt.s32.totalorder %v1262, 0
      %v1345 = vsub.s32 0, %v1262
      %v1346 = vsel %vm1344, %v1345, %v1262
      %v1347 = vshrl.u32 %v1346, 4
      %v1348 = vand.u32 %v1346, 15
      %v1349 = vsub.s32 0, %v1348
      %v1350 = vsel %vm1344, %v1349, %v1348
      %vm1351 = vcmp.lt.s32.totalorder %v1263, 0
      %v1352 = vsub.s32 0, %v1263
      %v1353 = vsel %vm1351, %v1352, %v1263
      %v1354 = vshrl.u32 %v1353, 4
      %v1355 = vand.u32 %v1353, 15
      %v1356 = vsub.s32 0, %v1355
      %v1357 = vsel %vm1351, %v1356, %v1355
      %vm1358 = vcmp.lt.s32.totalorder %v1264, 0
      %v1359 = vsub.s32 0, %v1264
      %v1360 = vsel %vm1358, %v1359, %v1264
      %v1361 = vshrl.u32 %v1360, 4
      %v1362 = vand.u32 %v1360, 15
      %v1363 = vsub.s32 0, %v1362
      %v1364 = vsel %vm1358, %v1363, %v1362
      %vm1365 = vcmp.lt.s32.totalorder %v1265, 0
      %v1366 = vsub.s32 0, %v1265
      %v1367 = vsel %vm1365, %v1366, %v1265
      %v1368 = vshrl.u32 %v1367, 4
      %v1369 = vand.u32 %v1367, 15
      %v1370 = vsub.s32 0, %v1369
      %v1371 = vsel %vm1365, %v1370, %v1369
      %vm1372 = vcmp.lt.s32.totalorder %v1266, 0
      %v1373 = vsub.s32 0, %v1266
      %v1374 = vsel %vm1372, %v1373, %v1266
      %v1375 = vshrl.u32 %v1374, 4
      %v1376 = vand.u32 %v1374, 15
      %v1377 = vsub.s32 0, %v1376
      %v1378 = vsel %vm1372, %v1377, %v1376
      %vm1379 = vcmp.lt.s32.totalorder %v1267, 0
      %v1380 = vsub.s32 0, %v1267
      %v1381 = vsel %vm1379, %v1380, %v1267
      %v1382 = vshrl.u32 %v1381, 4
      %v1383 = vand.u32 %v1381, 15
      %v1384 = vsub.s32 0, %v1383
      %v1385 = vsel %vm1379, %v1384, %v1383
      %vm1386 = vcmp.lt.s32.totalorder %v1268, 0
      %v1387 = vsub.s32 0, %v1268
      %v1388 = vsel %vm1386, %v1387, %v1268
      %v1389 = vshrl.u32 %v1388, 4
      %v1390 = vand.u32 %v1388, 15
      %v1391 = vsub.s32 0, %v1390
      %v1392 = vsel %vm1386, %v1391, %v1390
      %vm1393 = vcmp.lt.s32.totalorder %v1269, 0
      %v1394 = vsub.s32 0, %v1269
      %v1395 = vsel %vm1393, %v1394, %v1269
      %v1396 = vshrl.u32 %v1395, 4
      %v1397 = vand.u32 %v1395, 15
      %v1398 = vsub.s32 0, %v1397
      %v1399 = vsel %vm1393, %v1398, %v1397
      %vm1400 = vcmp.lt.s32.totalorder %v1270, 0
      %v1401 = vsub.s32 0, %v1270
      %v1402 = vsel %vm1400, %v1401, %v1270
      %v1403 = vshrl.u32 %v1402, 4
      %v1404 = vand.u32 %v1402, 15
      %v1405 = vsub.s32 0, %v1404
      %v1406 = vsel %vm1400, %v1405, %v1404
      %vm1407 = vcmp.lt.s32.totalorder %v1271, 0
      %v1408 = vsub.s32 0, %v1271
      %v1409 = vsel %vm1407, %v1408, %v1271
      %v1410 = vshrl.u32 %v1409, 4
      %v1411 = vand.u32 %v1409, 15
      %v1412 = vsub.s32 0, %v1411
      %v1413 = vsel %vm1407, %v1412, %v1411
      %vm1414 = vcmp.lt.s32.totalorder %v1272, 0
      %v1415 = vsub.s32 0, %v1272
      %v1416 = vsel %vm1414, %v1415, %v1272
      %v1417 = vshrl.u32 %v1416, 4
      %v1418 = vand.u32 %v1416, 15
      %v1419 = vsub.s32 0, %v1418
      %v1420 = vsel %vm1414, %v1419, %v1418
      %vm1421 = vcmp.lt.s32.totalorder %v1273, 0
      %v1422 = vsub.s32 0, %v1273
      %v1423 = vsel %vm1421, %v1422, %v1273
      %v1424 = vshrl.u32 %v1423, 4
      %v1425 = vand.u32 %v1423, 15
      %v1426 = vsub.s32 0, %v1425
      %v1427 = vsel %vm1421, %v1426, %v1425
      %vm1428 = vcmp.lt.s32.totalorder %v1274, 0
      %v1429 = vsub.s32 0, %v1274
      %v1430 = vsel %vm1428, %v1429, %v1274
      %v1431 = vshrl.u32 %v1430, 4
      %v1432 = vand.u32 %v1430, 15
      %v1433 = vsub.s32 0, %v1432
      %v1434 = vsel %vm1428, %v1433, %v1432
      %vm1435 = vcmp.lt.s32.totalorder %v1275, 0
      %v1436 = vsub.s32 0, %v1275
      %v1437 = vsel %vm1435, %v1436, %v1275
      %v1438 = vshrl.u32 %v1437, 4
      %v1439 = vand.u32 %v1437, 15
      %v1440 = vsub.s32 0, %v1439
      %v1441 = vsel %vm1435, %v1440, %v1439
      %vm1442 = vcmp.lt.s32.totalorder %v1276, 0
      %v1443 = vsub.s32 0, %v1276
      %v1444 = vsel %vm1442, %v1443, %v1276
      %v1445 = vshrl.u32 %v1444, 4
      %v1446 = vand.u32 %v1444, 15
      %v1447 = vsub.s32 0, %v1446
      %v1448 = vsel %vm1442, %v1447, %v1446
      %vm1449 = vcmp.lt.s32.totalorder %v1277, 0
      %v1450 = vsub.s32 0, %v1277
      %v1451 = vsel %vm1449, %v1450, %v1277
      %v1452 = vshrl.u32 %v1451, 4
      %v1453 = vand.u32 %v1451, 15
      %v1454 = vsub.s32 0, %v1453
      %v1455 = vsel %vm1449, %v1454, %v1453
      %vm1456 = vcmp.lt.s32.totalorder %v1278, 0
      %v1457 = vsub.s32 0, %v1278
      %v1458 = vsel %vm1456, %v1457, %v1278
      %v1459 = vshrl.u32 %v1458, 4
      %v1460 = vand.u32 %v1458, 15
      %v1461 = vsub.s32 0, %v1460
      %v1462 = vsel %vm1456, %v1461, %v1460
      %vm1463 = vcmp.lt.s32.totalorder %v1279, 0
      %v1464 = vsub.s32 0, %v1279
      %v1465 = vsel %vm1463, %v1464, %v1279
      %v1466 = vshrl.u32 %v1465, 4
      %v1467 = vand.u32 %v1465, 15
      %v1468 = vsub.s32 0, %v1467
      %v1469 = vsel %vm1463, %v1468, %v1467
      %vm1470 = vcmp.lt.s32.totalorder %v1280, 0
      %v1471 = vsub.s32 0, %v1280
      %v1472 = vsel %vm1470, %v1471, %v1280
      %v1473 = vshrl.u32 %v1472, 4
      %v1474 = vand.u32 %v1472, 15
      %v1475 = vsub.s32 0, %v1474
      %v1476 = vsel %vm1470, %v1475, %v1474
      %vm1477 = vcmp.lt.s32.totalorder %v1281, 0
      %v1478 = vsub.s32 0, %v1281
      %v1479 = vsel %vm1477, %v1478, %v1281
      %v1480 = vshrl.u32 %v1479, 4
      %v1481 = vand.u32 %v1479, 15
      %v1482 = vsub.s32 0, %v1481
      %v1483 = vsel %vm1477, %v1482, %v1481
      %vm1484 = vcmp.lt.s32.totalorder %v1282, 0
      %v1485 = vsub.s32 0, %v1282
      %v1486 = vsel %vm1484, %v1485, %v1282
      %v1487 = vshrl.u32 %v1486, 4
      %v1488 = vand.u32 %v1486, 15
      %v1489 = vsub.s32 0, %v1488
      %v1490 = vsel %vm1484, %v1489, %v1488
      %vm1491 = vcmp.lt.s32.totalorder %v1283, 0
      %v1492 = vsub.s32 0, %v1283
      %v1493 = vsel %vm1491, %v1492, %v1283
      %v1494 = vshrl.u32 %v1493, 4
      %v1495 = vand.u32 %v1493, 15
      %v1496 = vsub.s32 0, %v1495
      %v1497 = vsel %vm1491, %v1496, %v1495
      %vm1498 = vcmp.lt.s32.totalorder %v1284, 0
      %v1499 = vsub.s32 0, %v1284
      %v1500 = vsel %vm1498, %v1499, %v1284
      %v1501 = vshrl.u32 %v1500, 4
      %v1502 = vand.u32 %v1500, 15
      %v1503 = vsub.s32 0, %v1502
      %v1504 = vsel %vm1498, %v1503, %v1502
      %vm1505 = vcmp.lt.s32.totalorder %v1285, 0
      %v1506 = vsub.s32 0, %v1285
      %v1507 = vsel %vm1505, %v1506, %v1285
      %v1508 = vshrl.u32 %v1507, 4
      %v1509 = vand.u32 %v1507, 15
      %v1510 = vsub.s32 0, %v1509
      %v1511 = vsel %vm1505, %v1510, %v1509
      %vm1512 = vcmp.lt.s32.totalorder %v1286, 0
      %v1513 = vsub.s32 0, %v1286
      %v1514 = vsel %vm1512, %v1513, %v1286
      %v1515 = vshrl.u32 %v1514, 4
      %v1516 = vand.u32 %v1514, 15
      %v1517 = vsub.s32 0, %v1516
      %v1518 = vsel %vm1512, %v1517, %v1516
      %vm1519 = vcmp.lt.s32.totalorder %v1287, 0
      %v1520 = vsub.s32 0, %v1287
      %v1521 = vsel %vm1519, %v1520, %v1287
      %v1522 = vshrl.u32 %v1521, 4
      %v1523 = vand.u32 %v1521, 15
      %v1524 = vsub.s32 0, %v1523
      %v1525 = vsel %vm1519, %v1524, %v1523
      %vm1526 = vcmp.lt.s32.totalorder %v1288, 0
      %v1527 = vsub.s32 0, %v1288
      %v1528 = vsel %vm1526, %v1527, %v1288
      %v1529 = vshrl.u32 %v1528, 4
      %v1530 = vand.u32 %v1528, 15
      %v1531 = vsub.s32 0, %v1530
      %v1532 = vsel %vm1526, %v1531, %v1530
      %vm1533 = vcmp.lt.s32.totalorder %v1289, 0
      %v1534 = vsub.s32 0, %v1289
      %v1535 = vsel %vm1533, %v1534, %v1289
      %v1536 = vshrl.u32 %v1535, 4
      %v1537 = vand.u32 %v1535, 15
      %v1538 = vsub.s32 0, %v1537
      %v1539 = vsel %vm1533, %v1538, %v1537
      %vm1540 = vcmp.lt.s32.totalorder %v1290, 0
      %v1541 = vsub.s32 0, %v1290
      %v1542 = vsel %vm1540, %v1541, %v1290
      %v1543 = vshrl.u32 %v1542, 4
      %v1544 = vand.u32 %v1542, 15
      %v1545 = vsub.s32 0, %v1544
      %v1546 = vsel %vm1540, %v1545, %v1544
      %vm1547 = vcmp.lt.s32.totalorder %v1291, 0
      %v1548 = vsub.s32 0, %v1291
      %v1549 = vsel %vm1547, %v1548, %v1291
      %v1550 = vshrl.u32 %v1549, 4
      %v1551 = vand.u32 %v1549, 15
      %v1552 = vsub.s32 0, %v1551
      %v1553 = vsel %vm1547, %v1552, %v1551
      %vm1554 = vcmp.lt.s32.totalorder %v1292, 0
      %v1555 = vsub.s32 0, %v1292
      %v1556 = vsel %vm1554, %v1555, %v1292
      %v1557 = vshrl.u32 %v1556, 4
      %v1558 = vand.u32 %v1556, 15
      %v1559 = vsub.s32 0, %v1558
      %v1560 = vsel %vm1554, %v1559, %v1558
      %vm1561 = vcmp.lt.s32.totalorder %v1293, 0
      %v1562 = vsub.s32 0, %v1293
      %v1563 = vsel %vm1561, %v1562, %v1293
      %v1564 = vshrl.u32 %v1563, 4
      %v1565 = vand.u32 %v1563, 15
      %v1566 = vsub.s32 0, %v1565
      %v1567 = vsel %vm1561, %v1566, %v1565
      %vm1568 = vcmp.lt.s32.totalorder %v1294, 0
      %v1569 = vsub.s32 0, %v1294
      %v1570 = vsel %vm1568, %v1569, %v1294
      %v1571 = vshrl.u32 %v1570, 4
      %v1572 = vand.u32 %v1570, 15
      %v1573 = vsub.s32 0, %v1572
      %v1574 = vsel %vm1568, %v1573, %v1572
      %vm1575 = vcmp.lt.s32.totalorder %v1295, 0
      %v1576 = vsub.s32 0, %v1295
      %v1577 = vsel %vm1575, %v1576, %v1295
      %v1578 = vshrl.u32 %v1577, 4
      %v1579 = vand.u32 %v1577, 15
      %v1580 = vsub.s32 0, %v1579
      %v1581 = vsel %vm1575, %v1580, %v1579
      %vm1582 = vcmp.lt.s32.totalorder %v1296, 0
      %v1583 = vsub.s32 0, %v1296
      %v1584 = vsel %vm1582, %v1583, %v1296
      %v1585 = vshrl.u32 %v1584, 4
      %v1586 = vand.u32 %v1584, 15
      %v1587 = vsub.s32 0, %v1586
      %v1588 = vsel %vm1582, %v1587, %v1586
      %vm1589 = vcmp.lt.s32.totalorder %v1297, 0
      %v1590 = vsub.s32 0, %v1297
      %v1591 = vsel %vm1589, %v1590, %v1297
      %v1592 = vshrl.u32 %v1591, 4
      %v1593 = vand.u32 %v1591, 15
      %v1594 = vsub.s32 0, %v1593
      %v1595 = vsel %vm1589, %v1594, %v1593
      %vm1596 = vcmp.lt.s32.totalorder %v1298, 0
      %v1597 = vsub.s32 0, %v1298
      %v1598 = vsel %vm1596, %v1597, %v1298
      %v1599 = vshrl.u32 %v1598, 4
      %v1600 = vand.u32 %v1598, 15
      %v1601 = vsub.s32 0, %v1600
      %v1602 = vsel %vm1596, %v1601, %v1600
      %vm1603 = vcmp.lt.s32.totalorder %v1299, 0
      %v1604 = vsub.s32 0, %v1299
      %v1605 = vsel %vm1603, %v1604, %v1299
      %v1606 = vshrl.u32 %v1605, 4
      %v1607 = vand.u32 %v1605, 15
      %v1608 = vsub.s32 0, %v1607
      %v1609 = vsel %vm1603, %v1608, %v1607
      %vm1610 = vcmp.lt.s32.totalorder %v1300, 0
      %v1611 = vsub.s32 0, %v1300
      %v1612 = vsel %vm1610, %v1611, %v1300
      %v1613 = vshrl.u32 %v1612, 4
      %v1614 = vand.u32 %v1612, 15
      %v1615 = vsub.s32 0, %v1614
      %v1616 = vsel %vm1610, %v1615, %v1614
      %vm1617 = vcmp.lt.s32.totalorder %v1301, 0
      %v1618 = vsub.s32 0, %v1301
      %v1619 = vsel %vm1617, %v1618, %v1301
      %v1620 = vshrl.u32 %v1619, 4
      %v1621 = vand.u32 %v1619, 15
      %v1622 = vsub.s32 0, %v1621
      %v1623 = vsel %vm1617, %v1622, %v1621
      %vm1624 = vcmp.lt.s32.totalorder %v1302, 0
      %v1625 = vsub.s32 0, %v1302
      %v1626 = vsel %vm1624, %v1625, %v1302
      %v1627 = vshrl.u32 %v1626, 4
      %v1628 = vand.u32 %v1626, 15
      %v1629 = vsub.s32 0, %v1628
      %v1630 = vsel %vm1624, %v1629, %v1628
      %vm1631 = vcmp.lt.s32.totalorder %v1303, 0
      %v1632 = vsub.s32 0, %v1303
      %v1633 = vsel %vm1631, %v1632, %v1303
      %v1634 = vshrl.u32 %v1633, 4
      %v1635 = vand.u32 %v1633, 15
      %v1636 = vsub.s32 0, %v1635
      %v1637 = vsel %vm1631, %v1636, %v1635
      %vm1638 = vcmp.lt.s32.totalorder %v1304, 0
      %v1639 = vsub.s32 0, %v1304
      %v1640 = vsel %vm1638, %v1639, %v1304
      %v1641 = vshrl.u32 %v1640, 4
      %v1642 = vand.u32 %v1640, 15
      %v1643 = vsub.s32 0, %v1642
      %v1644 = vsel %vm1638, %v1643, %v1642
      %vm1645 = vcmp.lt.s32.totalorder %v1305, 0
      %v1646 = vsub.s32 0, %v1305
      %v1647 = vsel %vm1645, %v1646, %v1305
      %v1648 = vshrl.u32 %v1647, 4
      %v1649 = vand.u32 %v1647, 15
      %v1650 = vsub.s32 0, %v1649
      %v1651 = vsel %vm1645, %v1650, %v1649
      %vm1652 = vcmp.lt.s32.totalorder %v1306, 0
      %v1653 = vsub.s32 0, %v1306
      %v1654 = vsel %vm1652, %v1653, %v1306
      %v1655 = vshrl.u32 %v1654, 4
      %v1656 = vand.u32 %v1654, 15
      %v1657 = vsub.s32 0, %v1656
      %v1658 = vsel %vm1652, %v1657, %v1656
      %vm1659 = vcmp.lt.s32.totalorder %v1307, 0
      %v1660 = vsub.s32 0, %v1307
      %v1661 = vsel %vm1659, %v1660, %v1307
      %v1662 = vshrl.u32 %v1661, 4
      %v1663 = vand.u32 %v1661, 15
      %v1664 = vsub.s32 0, %v1663
      %v1665 = vsel %vm1659, %v1664, %v1663
      %vm1666 = vcmp.lt.s32.totalorder %v1308, 0
      %v1667 = vsub.s32 0, %v1308
      %v1668 = vsel %vm1666, %v1667, %v1308
      %v1669 = vshrl.u32 %v1668, 4
      %v1670 = vand.u32 %v1668, 15
      %v1671 = vsub.s32 0, %v1670
      %v1672 = vsel %vm1666, %v1671, %v1670
      %vm1673 = vcmp.lt.s32.totalorder %v1309, 0
      %v1674 = vsub.s32 0, %v1309
      %v1675 = vsel %vm1673, %v1674, %v1309
      %v1676 = vshrl.u32 %v1675, 4
      %v1677 = vand.u32 %v1675, 15
      %v1678 = vsub.s32 0, %v1677
      %v1679 = vsel %vm1673, %v1678, %v1677
      %vm1680 = vcmp.lt.s32.totalorder %v1310, 0
      %v1681 = vsub.s32 0, %v1310
      %v1682 = vsel %vm1680, %v1681, %v1310
      %v1683 = vshrl.u32 %v1682, 4
      %v1684 = vand.u32 %v1682, 15
      %v1685 = vsub.s32 0, %v1684
      %v1686 = vsel %vm1680, %v1685, %v1684
      %vm1687 = vcmp.lt.s32.totalorder %v1311, 0
      %v1688 = vsub.s32 0, %v1311
      %v1689 = vsel %vm1687, %v1688, %v1311
      %v1690 = vshrl.u32 %v1689, 4
      %v1691 = vand.u32 %v1689, 15
      %v1692 = vsub.s32 0, %v1691
      %v1693 = vsel %vm1687, %v1692, %v1691
      %vm1694 = vcmp.lt.s32.totalorder %v1312, 0
      %v1695 = vsub.s32 0, %v1312
      %v1696 = vsel %vm1694, %v1695, %v1312
      %v1697 = vshrl.u32 %v1696, 4
      %v1698 = vand.u32 %v1696, 15
      %v1699 = vsub.s32 0, %v1698
      %v1700 = vsel %vm1694, %v1699, %v1698
      %vm1701 = vcmp.lt.s32.totalorder %v1313, 0
      %v1702 = vsub.s32 0, %v1313
      %v1703 = vsel %vm1701, %v1702, %v1313
      %v1704 = vshrl.u32 %v1703, 4
      %v1705 = vand.u32 %v1703, 15
      %v1706 = vsub.s32 0, %v1705
      %v1707 = vsel %vm1701, %v1706, %v1705
      %vm1708 = vcmp.lt.s32.totalorder %v1314, 0
      %v1709 = vsub.s32 0, %v1314
      %v1710 = vsel %vm1708, %v1709, %v1314
      %v1711 = vshrl.u32 %v1710, 4
      %v1712 = vand.u32 %v1710, 15
      %v1713 = vsub.s32 0, %v1712
      %v1714 = vsel %vm1708, %v1713, %v1712
      %vm1715 = vcmp.lt.s32.totalorder %v1315, 0
      %v1716 = vsub.s32 0, %v1315
      %v1717 = vsel %vm1715, %v1716, %v1315
      %v1718 = vshrl.u32 %v1717, 4
      %v1719 = vand.u32 %v1717, 15
      %v1720 = vsub.s32 0, %v1719
      %v1721 = vsel %vm1715, %v1720, %v1719
      %vm1722 = vcmp.lt.s32.totalorder %v1316, 0
      %v1723 = vsub.s32 0, %v1316
      %v1724 = vsel %vm1722, %v1723, %v1316
      %v1725 = vshrl.u32 %v1724, 4
      %v1726 = vand.u32 %v1724, 15
      %v1727 = vsub.s32 0, %v1726
      %v1728 = vsel %vm1722, %v1727, %v1726
      %vm1729 = vcmp.lt.s32.totalorder %v1317, 0
      %v1730 = vsub.s32 0, %v1317
      %v1731 = vsel %vm1729, %v1730, %v1317
      %v1732 = vshrl.u32 %v1731, 4
      %v1733 = vand.u32 %v1731, 15
      %v1734 = vsub.s32 0, %v1733
      %v1735 = vsel %vm1729, %v1734, %v1733
      %vm1736 = vcmp.lt.s32.totalorder %v1318, 0
      %v1737 = vsub.s32 0, %v1318
      %v1738 = vsel %vm1736, %v1737, %v1318
      %v1739 = vshrl.u32 %v1738, 4
      %v1740 = vand.u32 %v1738, 15
      %v1741 = vsub.s32 0, %v1740
      %v1742 = vsel %vm1736, %v1741, %v1740
      %vm1743 = vcmp.lt.s32.totalorder %v1319, 0
      %v1744 = vsub.s32 0, %v1319
      %v1745 = vsel %vm1743, %v1744, %v1319
      %v1746 = vshrl.u32 %v1745, 4
      %v1747 = vand.u32 %v1745, 15
      %v1748 = vsub.s32 0, %v1747
      %v1749 = vsel %vm1743, %v1748, %v1747
      %vm1750 = vcmp.lt.s32.totalorder %v1320, 0
      %v1751 = vsub.s32 0, %v1320
      %v1752 = vsel %vm1750, %v1751, %v1320
      %v1753 = vshrl.u32 %v1752, 4
      %v1754 = vand.u32 %v1752, 15
      %v1755 = vsub.s32 0, %v1754
      %v1756 = vsel %vm1750, %v1755, %v1754
      %vm1757 = vcmp.lt.s32.totalorder %v1321, 0
      %v1758 = vsub.s32 0, %v1321
      %v1759 = vsel %vm1757, %v1758, %v1321
      %v1760 = vshrl.u32 %v1759, 4
      %v1761 = vand.u32 %v1759, 15
      %v1762 = vsub.s32 0, %v1761
      %v1763 = vsel %vm1757, %v1762, %v1761
      %vm1764 = vcmp.lt.s32.totalorder %v1322, 0
      %v1765 = vsub.s32 0, %v1322
      %v1766 = vsel %vm1764, %v1765, %v1322
      %v1767 = vshrl.u32 %v1766, 4
      %v1768 = vand.u32 %v1766, 15
      %v1769 = vsub.s32 0, %v1768
      %v1770 = vsel %vm1764, %v1769, %v1768
      %vm1771 = vcmp.ne.s32.totalorder %v1329, 0
      %vm1772 = vcmp.ne.s32.totalorder %v1336, 0
      %vm1773 = vcmp.ne.s32.totalorder %v1343, 0
      %vm1774 = vcmp.ne.s32.totalorder %v1350, 0
      %vm1775 = vcmp.ne.s32.totalorder %v1357, 0
      %vm1776 = vcmp.ne.s32.totalorder %v1364, 0
      %vm1777 = vcmp.ne.s32.totalorder %v1371, 0
      %vm1778 = vcmp.ne.s32.totalorder %v1378, 0
      %vm1779 = vcmp.ne.s32.totalorder %v1385, 0
      %vm1780 = vcmp.ne.s32.totalorder %v1392, 0
      %vm1781 = vcmp.ne.s32.totalorder %v1399, 0
      %vm1782 = vcmp.ne.s32.totalorder %v1406, 0
      %vm1783 = vcmp.ne.s32.totalorder %v1413, 0
      %vm1784 = vcmp.ne.s32.totalorder %v1420, 0
      %vm1785 = vcmp.ne.s32.totalorder %v1427, 0
      %vm1786 = vcmp.ne.s32.totalorder %v1434, 0
      %vm1787 = vcmp.ne.s32.totalorder %v1441, 0
      %vm1788 = vcmp.ne.s32.totalorder %v1448, 0
      %vm1789 = vcmp.ne.s32.totalorder %v1455, 0
      %vm1790 = vcmp.ne.s32.totalorder %v1462, 0
      %vm1791 = vcmp.ne.s32.totalorder %v1469, 0
      %vm1792 = vcmp.ne.s32.totalorder %v1476, 0
      %vm1793 = vcmp.ne.s32.totalorder %v1483, 0
      %vm1794 = vcmp.ne.s32.totalorder %v1490, 0
      %vm1795 = vcmp.ne.s32.totalorder %v1497, 0
      %vm1796 = vcmp.ne.s32.totalorder %v1504, 0
      %vm1797 = vcmp.ne.s32.totalorder %v1511, 0
      %vm1798 = vcmp.ne.s32.totalorder %v1518, 0
      %vm1799 = vcmp.ne.s32.totalorder %v1525, 0
      %vm1800 = vcmp.ne.s32.totalorder %v1532, 0
      %vm1801 = vcmp.ne.s32.totalorder %v1539, 0
      %vm1802 = vcmp.ne.s32.totalorder %v1546, 0
      %vm1803 = vcmp.ne.s32.totalorder %v1553, 0
      %vm1804 = vcmp.ne.s32.totalorder %v1560, 0
      %vm1805 = vcmp.ne.s32.totalorder %v1567, 0
      %vm1806 = vcmp.ne.s32.totalorder %v1574, 0
      %vm1807 = vcmp.ne.s32.totalorder %v1581, 0
      %vm1808 = vcmp.ne.s32.totalorder %v1588, 0
      %vm1809 = vcmp.ne.s32.totalorder %v1595, 0
      %vm1810 = vcmp.ne.s32.totalorder %v1602, 0
      %vm1811 = vcmp.ne.s32.totalorder %v1609, 0
      %vm1812 = vcmp.ne.s32.totalorder %v1616, 0
      %vm1813 = vcmp.ne.s32.totalorder %v1623, 0
      %vm1814 = vcmp.ne.s32.totalorder %v1630, 0
      %vm1815 = vcmp.ne.s32.totalorder %v1637, 0
      %vm1816 = vcmp.ne.s32.totalorder %v1644, 0
      %vm1817 = vcmp.ne.s32.totalorder %v1651, 0
      %vm1818 = vcmp.ne.s32.totalorder %v1658, 0
      %vm1819 = vcmp.ne.s32.totalorder %v1665, 0
      %vm1820 = vcmp.ne.s32.totalorder %v1672, 0
      %vm1821 = vcmp.ne.s32.totalorder %v1679, 0
      %vm1822 = vcmp.ne.s32.totalorder %v1686, 0
      %vm1823 = vcmp.ne.s32.totalorder %v1693, 0
      %vm1824 = vcmp.ne.s32.totalorder %v1700, 0
      %vm1825 = vcmp.ne.s32.totalorder %v1707, 0
      %vm1826 = vcmp.ne.s32.totalorder %v1714, 0
      %vm1827 = vcmp.ne.s32.totalorder %v1721, 0
      %vm1828 = vcmp.ne.s32.totalorder %v1728, 0
      %vm1829 = vcmp.ne.s32.totalorder %v1735, 0
      %vm1830 = vcmp.ne.s32.totalorder %v1742, 0
      %vm1831 = vcmp.ne.s32.totalorder %v1749, 0
      %vm1832 = vcmp.ne.s32.totalorder %v1756, 0
      %vm1833 = vcmp.ne.s32.totalorder %v1763, 0
      %vm1834 = vcmp.ne.s32.totalorder %v1770, 0
      %vm1835 = vcmp.lt.s32.totalorder %v1329, 0
      %vm1836 = vcmp.lt.s32.totalorder %v1336, 0
      %vm1837 = vcmp.lt.s32.totalorder %v1343, 0
      %vm1838 = vcmp.lt.s32.totalorder %v1350, 0
      %vm1839 = vcmp.lt.s32.totalorder %v1357, 0
      %vm1840 = vcmp.lt.s32.totalorder %v1364, 0
      %vm1841 = vcmp.lt.s32.totalorder %v1371, 0
      %vm1842 = vcmp.lt.s32.totalorder %v1378, 0
      %vm1843 = vcmp.lt.s32.totalorder %v1385, 0
      %vm1844 = vcmp.lt.s32.totalorder %v1392, 0
      %vm1845 = vcmp.lt.s32.totalorder %v1399, 0
      %vm1846 = vcmp.lt.s32.totalorder %v1406, 0
      %vm1847 = vcmp.lt.s32.totalorder %v1413, 0
      %vm1848 = vcmp.lt.s32.totalorder %v1420, 0
      %vm1849 = vcmp.lt.s32.totalorder %v1427, 0
      %vm1850 = vcmp.lt.s32.totalorder %v1434, 0
      %vm1851 = vcmp.lt.s32.totalorder %v1441, 0
      %vm1852 = vcmp.lt.s32.totalorder %v1448, 0
      %vm1853 = vcmp.lt.s32.totalorder %v1455, 0
      %vm1854 = vcmp.lt.s32.totalorder %v1462, 0
      %vm1855 = vcmp.lt.s32.totalorder %v1469, 0
      %vm1856 = vcmp.lt.s32.totalorder %v1476, 0
      %vm1857 = vcmp.lt.s32.totalorder %v1483, 0
      %vm1858 = vcmp.lt.s32.totalorder %v1490, 0
      %vm1859 = vcmp.lt.s32.totalorder %v1497, 0
      %vm1860 = vcmp.lt.s32.totalorder %v1504, 0
      %vm1861 = vcmp.lt.s32.totalorder %v1511, 0
      %vm1862 = vcmp.lt.s32.totalorder %v1518, 0
      %vm1863 = vcmp.lt.s32.totalorder %v1525, 0
      %vm1864 = vcmp.lt.s32.totalorder %v1532, 0
      %vm1865 = vcmp.lt.s32.totalorder %v1539, 0
      %vm1866 = vcmp.lt.s32.totalorder %v1546, 0
      %vm1867 = vcmp.lt.s32.totalorder %v1553, 0
      %vm1868 = vcmp.lt.s32.totalorder %v1560, 0
      %vm1869 = vcmp.lt.s32.totalorder %v1567, 0
      %vm1870 = vcmp.lt.s32.totalorder %v1574, 0
      %vm1871 = vcmp.lt.s32.totalorder %v1581, 0
      %vm1872 = vcmp.lt.s32.totalorder %v1588, 0
      %vm1873 = vcmp.lt.s32.totalorder %v1595, 0
      %vm1874 = vcmp.lt.s32.totalorder %v1602, 0
      %vm1875 = vcmp.lt.s32.totalorder %v1609, 0
      %vm1876 = vcmp.lt.s32.totalorder %v1616, 0
      %vm1877 = vcmp.lt.s32.totalorder %v1623, 0
      %vm1878 = vcmp.lt.s32.totalorder %v1630, 0
      %vm1879 = vcmp.lt.s32.totalorder %v1637, 0
      %vm1880 = vcmp.lt.s32.totalorder %v1644, 0
      %vm1881 = vcmp.lt.s32.totalorder %v1651, 0
      %vm1882 = vcmp.lt.s32.totalorder %v1658, 0
      %vm1883 = vcmp.lt.s32.totalorder %v1665, 0
      %vm1884 = vcmp.lt.s32.totalorder %v1672, 0
      %vm1885 = vcmp.lt.s32.totalorder %v1679, 0
      %vm1886 = vcmp.lt.s32.totalorder %v1686, 0
      %vm1887 = vcmp.lt.s32.totalorder %v1693, 0
      %vm1888 = vcmp.lt.s32.totalorder %v1700, 0
      %vm1889 = vcmp.lt.s32.totalorder %v1707, 0
      %vm1890 = vcmp.lt.s32.totalorder %v1714, 0
      %vm1891 = vcmp.lt.s32.totalorder %v1721, 0
      %vm1892 = vcmp.lt.s32.totalorder %v1728, 0
      %vm1893 = vcmp.lt.s32.totalorder %v1735, 0
      %vm1894 = vcmp.lt.s32.totalorder %v1742, 0
      %vm1895 = vcmp.lt.s32.totalorder %v1749, 0
      %vm1896 = vcmp.lt.s32.totalorder %v1756, 0
      %vm1897 = vcmp.lt.s32.totalorder %v1763, 0
      %vm1898 = vcmp.lt.s32.totalorder %v1770, 0
      %vm1899 = vmand %vm1835, %vm1771
      %vm1900 = vmand %vm1836, %vm1772
      %vm1901 = vmand %vm1837, %vm1773
      %vm1902 = vmand %vm1838, %vm1774
      %vm1903 = vmand %vm1839, %vm1775
      %vm1904 = vmand %vm1840, %vm1776
      %vm1905 = vmand %vm1841, %vm1777
      %vm1906 = vmand %vm1842, %vm1778
      %vm1907 = vmand %vm1843, %vm1779
      %vm1908 = vmand %vm1844, %vm1780
      %vm1909 = vmand %vm1845, %vm1781
      %vm1910 = vmand %vm1846, %vm1782
      %vm1911 = vmand %vm1847, %vm1783
      %vm1912 = vmand %vm1848, %vm1784
      %vm1913 = vmand %vm1849, %vm1785
      %vm1914 = vmand %vm1850, %vm1786
      %vm1915 = vmand %vm1851, %vm1787
      %vm1916 = vmand %vm1852, %vm1788
      %vm1917 = vmand %vm1853, %vm1789
      %vm1918 = vmand %vm1854, %vm1790
      %vm1919 = vmand %vm1855, %vm1791
      %vm1920 = vmand %vm1856, %vm1792
      %vm1921 = vmand %vm1857, %vm1793
      %vm1922 = vmand %vm1858, %vm1794
      %vm1923 = vmand %vm1859, %vm1795
      %vm1924 = vmand %vm1860, %vm1796
      %vm1925 = vmand %vm1861, %vm1797
      %vm1926 = vmand %vm1862, %vm1798
      %vm1927 = vmand %vm1863, %vm1799
      %vm1928 = vmand %vm1864, %vm1800
      %vm1929 = vmand %vm1865, %vm1801
      %vm1930 = vmand %vm1866, %vm1802
      %vm1931 = vmand %vm1867, %vm1803
      %vm1932 = vmand %vm1868, %vm1804
      %vm1933 = vmand %vm1869, %vm1805
      %vm1934 = vmand %vm1870, %vm1806
      %vm1935 = vmand %vm1871, %vm1807
      %vm1936 = vmand %vm1872, %vm1808
      %vm1937 = vmand %vm1873, %vm1809
      %vm1938 = vmand %vm1874, %vm1810
      %vm1939 = vmand %vm1875, %vm1811
      %vm1940 = vmand %vm1876, %vm1812
      %vm1941 = vmand %vm1877, %vm1813
      %vm1942 = vmand %vm1878, %vm1814
      %vm1943 = vmand %vm1879, %vm1815
      %vm1944 = vmand %vm1880, %vm1816
      %vm1945 = vmand %vm1881, %vm1817
      %vm1946 = vmand %vm1882, %vm1818
      %vm1947 = vmand %vm1883, %vm1819
      %vm1948 = vmand %vm1884, %vm1820
      %vm1949 = vmand %vm1885, %vm1821
      %vm1950 = vmand %vm1886, %vm1822
      %vm1951 = vmand %vm1887, %vm1823
      %vm1952 = vmand %vm1888, %vm1824
      %vm1953 = vmand %vm1889, %vm1825
      %vm1954 = vmand %vm1890, %vm1826
      %vm1955 = vmand %vm1891, %vm1827
      %vm1956 = vmand %vm1892, %vm1828
      %vm1957 = vmand %vm1893, %vm1829
      %vm1958 = vmand %vm1894, %vm1830
      %vm1959 = vmand %vm1895, %vm1831
      %vm1960 = vmand %vm1896, %vm1832
      %vm1961 = vmand %vm1897, %vm1833
      %vm1962 = vmand %vm1898, %vm1834
      %v1963 = vadd.s32 %v1329, 16
      %v1964 = vadd.s32 %v1336, 16
      %v1965 = vadd.s32 %v1343, 16
      %v1966 = vadd.s32 %v1350, 16
      %v1967 = vadd.s32 %v1357, 16
      %v1968 = vadd.s32 %v1364, 16
      %v1969 = vadd.s32 %v1371, 16
      %v1970 = vadd.s32 %v1378, 16
      %v1971 = vadd.s32 %v1385, 16
      %v1972 = vadd.s32 %v1392, 16
      %v1973 = vadd.s32 %v1399, 16
      %v1974 = vadd.s32 %v1406, 16
      %v1975 = vadd.s32 %v1413, 16
      %v1976 = vadd.s32 %v1420, 16
      %v1977 = vadd.s32 %v1427, 16
      %v1978 = vadd.s32 %v1434, 16
      %v1979 = vadd.s32 %v1441, 16
      %v1980 = vadd.s32 %v1448, 16
      %v1981 = vadd.s32 %v1455, 16
      %v1982 = vadd.s32 %v1462, 16
      %v1983 = vadd.s32 %v1469, 16
      %v1984 = vadd.s32 %v1476, 16
      %v1985 = vadd.s32 %v1483, 16
      %v1986 = vadd.s32 %v1490, 16
      %v1987 = vadd.s32 %v1497, 16
      %v1988 = vadd.s32 %v1504, 16
      %v1989 = vadd.s32 %v1511, 16
      %v1990 = vadd.s32 %v1518, 16
      %v1991 = vadd.s32 %v1525, 16
      %v1992 = vadd.s32 %v1532, 16
      %v1993 = vadd.s32 %v1539, 16
      %v1994 = vadd.s32 %v1546, 16
      %v1995 = vadd.s32 %v1553, 16
      %v1996 = vadd.s32 %v1560, 16
      %v1997 = vadd.s32 %v1567, 16
      %v1998 = vadd.s32 %v1574, 16
      %v1999 = vadd.s32 %v1581, 16
      %v2000 = vadd.s32 %v1588, 16
      %v2001 = vadd.s32 %v1595, 16
      %v2002 = vadd.s32 %v1602, 16
      %v2003 = vadd.s32 %v1609, 16
      %v2004 = vadd.s32 %v1616, 16
      %v2005 = vadd.s32 %v1623, 16
      %v2006 = vadd.s32 %v1630, 16
      %v2007 = vadd.s32 %v1637, 16
      %v2008 = vadd.s32 %v1644, 16
      %v2009 = vadd.s32 %v1651, 16
      %v2010 = vadd.s32 %v1658, 16
      %v2011 = vadd.s32 %v1665, 16
      %v2012 = vadd.s32 %v1672, 16
      %v2013 = vadd.s32 %v1679, 16
      %v2014 = vadd.s32 %v1686, 16
      %v2015 = vadd.s32 %v1693, 16
      %v2016 = vadd.s32 %v1700, 16
      %v2017 = vadd.s32 %v1707, 16
      %v2018 = vadd.s32 %v1714, 16
      %v2019 = vadd.s32 %v1721, 16
      %v2020 = vadd.s32 %v1728, 16
      %v2021 = vadd.s32 %v1735, 16
      %v2022 = vadd.s32 %v1742, 16
      %v2023 = vadd.s32 %v1749, 16
      %v2024 = vadd.s32 %v1756, 16
      %v2025 = vadd.s32 %v1763, 16
      %v2026 = vadd.s32 %v1770, 16
      %v2027 = vsel %vm1899, %v1963, %v1329
      %v2028 = vsel %vm1900, %v1964, %v1336
      %v2029 = vsel %vm1901, %v1965, %v1343
      %v2030 = vsel %vm1902, %v1966, %v1350
      %v2031 = vsel %vm1903, %v1967, %v1357
      %v2032 = vsel %vm1904, %v1968, %v1364
      %v2033 = vsel %vm1905, %v1969, %v1371
      %v2034 = vsel %vm1906, %v1970, %v1378
      %v2035 = vsel %vm1907, %v1971, %v1385
      %v2036 = vsel %vm1908, %v1972, %v1392
      %v2037 = vsel %vm1909, %v1973, %v1399
      %v2038 = vsel %vm1910, %v1974, %v1406
      %v2039 = vsel %vm1911, %v1975, %v1413
      %v2040 = vsel %vm1912, %v1976, %v1420
      %v2041 = vsel %vm1913, %v1977, %v1427
      %v2042 = vsel %vm1914, %v1978, %v1434
      %v2043 = vsel %vm1915, %v1979, %v1441
      %v2044 = vsel %vm1916, %v1980, %v1448
      %v2045 = vsel %vm1917, %v1981, %v1455
      %v2046 = vsel %vm1918, %v1982, %v1462
      %v2047 = vsel %vm1919, %v1983, %v1469
      %v2048 = vsel %vm1920, %v1984, %v1476
      %v2049 = vsel %vm1921, %v1985, %v1483
      %v2050 = vsel %vm1922, %v1986, %v1490
      %v2051 = vsel %vm1923, %v1987, %v1497
      %v2052 = vsel %vm1924, %v1988, %v1504
      %v2053 = vsel %vm1925, %v1989, %v1511
      %v2054 = vsel %vm1926, %v1990, %v1518
      %v2055 = vsel %vm1927, %v1991, %v1525
      %v2056 = vsel %vm1928, %v1992, %v1532
      %v2057 = vsel %vm1929, %v1993, %v1539
      %v2058 = vsel %vm1930, %v1994, %v1546
      %v2059 = vsel %vm1931, %v1995, %v1553
      %v2060 = vsel %vm1932, %v1996, %v1560
      %v2061 = vsel %vm1933, %v1997, %v1567
      %v2062 = vsel %vm1934, %v1998, %v1574
      %v2063 = vsel %vm1935, %v1999, %v1581
      %v2064 = vsel %vm1936, %v2000, %v1588
      %v2065 = vsel %vm1937, %v2001, %v1595
      %v2066 = vsel %vm1938, %v2002, %v1602
      %v2067 = vsel %vm1939, %v2003, %v1609
      %v2068 = vsel %vm1940, %v2004, %v1616
      %v2069 = vsel %vm1941, %v2005, %v1623
      %v2070 = vsel %vm1942, %v2006, %v1630
      %v2071 = vsel %vm1943, %v2007, %v1637
      %v2072 = vsel %vm1944, %v2008, %v1644
      %v2073 = vsel %vm1945, %v2009, %v1651
      %v2074 = vsel %vm1946, %v2010, %v1658
      %v2075 = vsel %vm1947, %v2011, %v1665
      %v2076 = vsel %vm1948, %v2012, %v1672
      %v2077 = vsel %vm1949, %v2013, %v1679
      %v2078 = vsel %vm1950, %v2014, %v1686
      %v2079 = vsel %vm1951, %v2015, %v1693
      %v2080 = vsel %vm1952, %v2016, %v1700
      %v2081 = vsel %vm1953, %v2017, %v1707
      %v2082 = vsel %vm1954, %v2018, %v1714
      %v2083 = vsel %vm1955, %v2019, %v1721
      %v2084 = vsel %vm1956, %v2020, %v1728
      %v2085 = vsel %vm1957, %v2021, %v1735
      %v2086 = vsel %vm1958, %v2022, %v1742
      %v2087 = vsel %vm1959, %v2023, %v1749
      %v2088 = vsel %vm1960, %v2024, %v1756
      %v2089 = vsel %vm1961, %v2025, %v1763
      %v2090 = vsel %vm1962, %v2026, %v1770
      %vm2091 = vcmp.ne.s32.totalorder %v2027, 0
      %vm2092 = vcmp.ne.s32.totalorder %v2028, 0
      %vm2093 = vcmp.ne.s32.totalorder %v2029, 0
      %vm2094 = vcmp.ne.s32.totalorder %v2030, 0
      %vm2095 = vcmp.ne.s32.totalorder %v2031, 0
      %vm2096 = vcmp.ne.s32.totalorder %v2032, 0
      %vm2097 = vcmp.ne.s32.totalorder %v2033, 0
      %vm2098 = vcmp.ne.s32.totalorder %v2034, 0
      %vm2099 = vcmp.ne.s32.totalorder %v2035, 0
      %vm2100 = vcmp.ne.s32.totalorder %v2036, 0
      %vm2101 = vcmp.ne.s32.totalorder %v2037, 0
      %vm2102 = vcmp.ne.s32.totalorder %v2038, 0
      %vm2103 = vcmp.ne.s32.totalorder %v2039, 0
      %vm2104 = vcmp.ne.s32.totalorder %v2040, 0
      %vm2105 = vcmp.ne.s32.totalorder %v2041, 0
      %vm2106 = vcmp.ne.s32.totalorder %v2042, 0
      %vm2107 = vcmp.ne.s32.totalorder %v2043, 0
      %vm2108 = vcmp.ne.s32.totalorder %v2044, 0
      %vm2109 = vcmp.ne.s32.totalorder %v2045, 0
      %vm2110 = vcmp.ne.s32.totalorder %v2046, 0
      %vm2111 = vcmp.ne.s32.totalorder %v2047, 0
      %vm2112 = vcmp.ne.s32.totalorder %v2048, 0
      %vm2113 = vcmp.ne.s32.totalorder %v2049, 0
      %vm2114 = vcmp.ne.s32.totalorder %v2050, 0
      %vm2115 = vcmp.ne.s32.totalorder %v2051, 0
      %vm2116 = vcmp.ne.s32.totalorder %v2052, 0
      %vm2117 = vcmp.ne.s32.totalorder %v2053, 0
      %vm2118 = vcmp.ne.s32.totalorder %v2054, 0
      %vm2119 = vcmp.ne.s32.totalorder %v2055, 0
      %vm2120 = vcmp.ne.s32.totalorder %v2056, 0
      %vm2121 = vcmp.ne.s32.totalorder %v2057, 0
      %vm2122 = vcmp.ne.s32.totalorder %v2058, 0
      %vm2123 = vcmp.ne.s32.totalorder %v2059, 0
      %vm2124 = vcmp.ne.s32.totalorder %v2060, 0
      %vm2125 = vcmp.ne.s32.totalorder %v2061, 0
      %vm2126 = vcmp.ne.s32.totalorder %v2062, 0
      %vm2127 = vcmp.ne.s32.totalorder %v2063, 0
      %vm2128 = vcmp.ne.s32.totalorder %v2064, 0
      %vm2129 = vcmp.ne.s32.totalorder %v2065, 0
      %vm2130 = vcmp.ne.s32.totalorder %v2066, 0
      %vm2131 = vcmp.ne.s32.totalorder %v2067, 0
      %vm2132 = vcmp.ne.s32.totalorder %v2068, 0
      %vm2133 = vcmp.ne.s32.totalorder %v2069, 0
      %vm2134 = vcmp.ne.s32.totalorder %v2070, 0
      %vm2135 = vcmp.ne.s32.totalorder %v2071, 0
      %vm2136 = vcmp.ne.s32.totalorder %v2072, 0
      %vm2137 = vcmp.ne.s32.totalorder %v2073, 0
      %vm2138 = vcmp.ne.s32.totalorder %v2074, 0
      %vm2139 = vcmp.ne.s32.totalorder %v2075, 0
      %vm2140 = vcmp.ne.s32.totalorder %v2076, 0
      %vm2141 = vcmp.ne.s32.totalorder %v2077, 0
      %vm2142 = vcmp.ne.s32.totalorder %v2078, 0
      %vm2143 = vcmp.ne.s32.totalorder %v2079, 0
      %vm2144 = vcmp.ne.s32.totalorder %v2080, 0
      %vm2145 = vcmp.ne.s32.totalorder %v2081, 0
      %vm2146 = vcmp.ne.s32.totalorder %v2082, 0
      %vm2147 = vcmp.ne.s32.totalorder %v2083, 0
      %vm2148 = vcmp.ne.s32.totalorder %v2084, 0
      %vm2149 = vcmp.ne.s32.totalorder %v2085, 0
      %vm2150 = vcmp.ne.s32.totalorder %v2086, 0
      %vm2151 = vcmp.ne.s32.totalorder %v2087, 0
      %vm2152 = vcmp.ne.s32.totalorder %v2088, 0
      %vm2153 = vcmp.ne.s32.totalorder %v2089, 0
      %vm2154 = vcmp.ne.s32.totalorder %v2090, 0
      %v2155 = vsel %vm2091, %v1259, 0.0
      %v2156 = vsel %vm2092, %v1258, 0.0
      %v2157 = vsel %vm2093, %v1257, 0.0
      %v2158 = vsel %vm2094, %v1256, 0.0
      %v2159 = vsel %vm2095, %v1255, 0.0
      %v2160 = vsel %vm2096, %v1254, 0.0
      %v2161 = vsel %vm2097, %v1253, 0.0
      %v2162 = vsel %vm2098, %v1252, 0.0
      %v2163 = vsel %vm2099, %v1251, 0.0
      %v2164 = vsel %vm2100, %v1250, 0.0
      %v2165 = vsel %vm2101, %v1249, 0.0
      %v2166 = vsel %vm2102, %v1248, 0.0
      %v2167 = vsel %vm2103, %v1247, 0.0
      %v2168 = vsel %vm2104, %v1246, 0.0
      %v2169 = vsel %vm2105, %v1245, 0.0
      %v2170 = vsel %vm2106, %v1244, 0.0
      %v2171 = vsel %vm2107, %v1243, 0.0
      %v2172 = vsel %vm2108, %v1242, 0.0
      %v2173 = vsel %vm2109, %v1241, 0.0
      %v2174 = vsel %vm2110, %v1240, 0.0
      %v2175 = vsel %vm2111, %v1239, 0.0
      %v2176 = vsel %vm2112, %v1238, 0.0
      %v2177 = vsel %vm2113, %v1237, 0.0
      %v2178 = vsel %vm2114, %v1236, 0.0
      %v2179 = vsel %vm2115, %v1235, 0.0
      %v2180 = vsel %vm2116, %v1234, 0.0
      %v2181 = vsel %vm2117, %v1233, 0.0
      %v2182 = vsel %vm2118, %v1232, 0.0
      %v2183 = vsel %vm2119, %v1231, 0.0
      %v2184 = vsel %vm2120, %v1230, 0.0
      %v2185 = vsel %vm2121, %v1229, 0.0
      %v2186 = vsel %vm2122, %v1228, 0.0
      %v2187 = vsel %vm2123, %v1227, 0.0
      %v2188 = vsel %vm2124, %v1226, 0.0
      %v2189 = vsel %vm2125, %v1225, 0.0
      %v2190 = vsel %vm2126, %v1224, 0.0
      %v2191 = vsel %vm2127, %v1223, 0.0
      %v2192 = vsel %vm2128, %v1222, 0.0
      %v2193 = vsel %vm2129, %v1221, 0.0
      %v2194 = vsel %vm2130, %v1220, 0.0
      %v2195 = vsel %vm2131, %v1219, 0.0
      %v2196 = vsel %vm2132, %v1218, 0.0
      %v2197 = vsel %vm2133, %v1217, 0.0
      %v2198 = vsel %vm2134, %v1216, 0.0
      %v2199 = vsel %vm2135, %v1215, 0.0
      %v2200 = vsel %vm2136, %v1214, 0.0
      %v2201 = vsel %vm2137, %v1213, 0.0
      %v2202 = vsel %vm2138, %v1212, 0.0
      %v2203 = vsel %vm2139, %v1211, 0.0
      %v2204 = vsel %vm2140, %v1210, 0.0
      %v2205 = vsel %vm2141, %v1209, 0.0
      %v2206 = vsel %vm2142, %v1208, 0.0
      %v2207 = vsel %vm2143, %v1207, 0.0
      %v2208 = vsel %vm2144, %v1206, 0.0
      %v2209 = vsel %vm2145, %v1205, 0.0
      %v2210 = vsel %vm2146, %v1204, 0.0
      %v2211 = vsel %vm2147, %v1203, 0.0
      %v2212 = vsel %vm2148, %v1202, 0.0
      %v2213 = vsel %vm2149, %v1201, 0.0
      %v2214 = vsel %vm2150, %v1200, 0.0
      %v2215 = vsel %vm2151, %v1199, 0.0
      %v2216 = vsel %vm2152, %v1198, 0.0
      %v2217 = vsel %vm2153, %v1197, 0.0
      %v2218 = vsel %vm2154, %v1196, 0.0
      %v2219 = vadd.f32 %v2155, %v938
      %v2220 = vadd.f32 %v2156, %v941
      %v2221 = vadd.f32 %v2157, %v944
      %v2222 = vadd.f32 %v2158, %v947
      %v2223 = vadd.f32 %v2159, %v950
      %v2224 = vadd.f32 %v2160, %v953
      %v2225 = vadd.f32 %v2161, %v956
      %v2226 = vadd.f32 %v2162, %v959
      %v2227 = vadd.f32 %v2163, %v962
      %v2228 = vadd.f32 %v2164, %v965
      %v2229 = vadd.f32 %v2165, %v968
      %v2230 = vadd.f32 %v2166, %v971
      %v2231 = vadd.f32 %v2167, %v974
      %v2232 = vadd.f32 %v2168, %v977
      %v2233 = vadd.f32 %v2169, %v980
      %v2234 = vadd.f32 %v2170, %v983
      %v2235 = vadd.f32 %v2171, %v986
      %v2236 = vadd.f32 %v2172, %v989
      %v2237 = vadd.f32 %v2173, %v992
      %v2238 = vadd.f32 %v2174, %v995
      %v2239 = vadd.f32 %v2175, %v998
      %v2240 = vadd.f32 %v2176, %v1001
      %v2241 = vadd.f32 %v2177, %v1004
      %v2242 = vadd.f32 %v2178, %v1007
      %v2243 = vadd.f32 %v2179, %v1010
      %v2244 = vadd.f32 %v2180, %v1013
      %v2245 = vadd.f32 %v2181, %v1016
      %v2246 = vadd.f32 %v2182, %v1019
      %v2247 = vadd.f32 %v2183, %v1022
      %v2248 = vadd.f32 %v2184, %v1025
      %v2249 = vadd.f32 %v2185, %v1028
      %v2250 = vadd.f32 %v2186, %v1031
      %v2251 = vadd.f32 %v2187, %v1034
      %v2252 = vadd.f32 %v2188, %v1037
      %v2253 = vadd.f32 %v2189, %v1040
      %v2254 = vadd.f32 %v2190, %v1043
      %v2255 = vadd.f32 %v2191, %v1046
      %v2256 = vadd.f32 %v2192, %v1049
      %v2257 = vadd.f32 %v2193, %v1052
      %v2258 = vadd.f32 %v2194, %v1055
      %v2259 = vadd.f32 %v2195, %v1058
      %v2260 = vadd.f32 %v2196, %v1061
      %v2261 = vadd.f32 %v2197, %v1064
      %v2262 = vadd.f32 %v2198, %v1067
      %v2263 = vadd.f32 %v2199, %v1070
      %v2264 = vadd.f32 %v2200, %v1073
      %v2265 = vadd.f32 %v2201, %v1076
      %v2266 = vadd.f32 %v2202, %v1079
      %v2267 = vadd.f32 %v2203, %v1082
      %v2268 = vadd.f32 %v2204, %v1085
      %v2269 = vadd.f32 %v2205, %v1088
      %v2270 = vadd.f32 %v2206, %v1091
      %v2271 = vadd.f32 %v2207, %v1094
      %v2272 = vadd.f32 %v2208, %v1097
      %v2273 = vadd.f32 %v2209, %v1100
      %v2274 = vadd.f32 %v2210, %v1103
      %v2275 = vadd.f32 %v2211, %v1106
      %v2276 = vadd.f32 %v2212, %v1109
      %v2277 = vadd.f32 %v2213, %v1112
      %v2278 = vadd.f32 %v2214, %v1115
      %v2279 = vadd.f32 %v2215, %v1118
      %v2280 = vadd.f32 %v2216, %v1121
      %v2281 = vadd.f32 %v2217, %v1124
      %v2282 = vadd.f32 %v2218, %v1127
      %v2283 = vadd.f32 %v2219, %v713
      %v2284 = vadd.f32 %v2220, %v716
      %v2285 = vadd.f32 %v2221, %v719
      %v2286 = vadd.f32 %v2222, %v722
      %v2287 = vadd.f32 %v2223, %v725
      %v2288 = vadd.f32 %v2224, %v728
      %v2289 = vadd.f32 %v2225, %v731
      %v2290 = vadd.f32 %v2226, %v734
      %v2291 = vadd.f32 %v2227, %v737
      %v2292 = vadd.f32 %v2228, %v740
      %v2293 = vadd.f32 %v2229, %v743
      %v2294 = vadd.f32 %v2230, %v746
      %v2295 = vadd.f32 %v2231, %v749
      %v2296 = vadd.f32 %v2232, %v752
      %v2297 = vadd.f32 %v2233, %v755
      %v2298 = vadd.f32 %v2234, %v758
      %v2299 = vadd.f32 %v2235, %v761
      %v2300 = vadd.f32 %v2236, %v764
      %v2301 = vadd.f32 %v2237, %v767
      %v2302 = vadd.f32 %v2238, %v770
      %v2303 = vadd.f32 %v2239, %v773
      %v2304 = vadd.f32 %v2240, %v776
      %v2305 = vadd.f32 %v2241, %v779
      %v2306 = vadd.f32 %v2242, %v782
      %v2307 = vadd.f32 %v2243, %v785
      %v2308 = vadd.f32 %v2244, %v788
      %v2309 = vadd.f32 %v2245, %v791
      %v2310 = vadd.f32 %v2246, %v794
      %v2311 = vadd.f32 %v2247, %v797
      %v2312 = vadd.f32 %v2248, %v800
      %v2313 = vadd.f32 %v2249, %v803
      %v2314 = vadd.f32 %v2250, %v806
      %v2315 = vadd.f32 %v2251, %v809
      %v2316 = vadd.f32 %v2252, %v812
      %v2317 = vadd.f32 %v2253, %v815
      %v2318 = vadd.f32 %v2254, %v818
      %v2319 = vadd.f32 %v2255, %v821
      %v2320 = vadd.f32 %v2256, %v824
      %v2321 = vadd.f32 %v2257, %v827
      %v2322 = vadd.f32 %v2258, %v830
      %v2323 = vadd.f32 %v2259, %v833
      %v2324 = vadd.f32 %v2260, %v836
      %v2325 = vadd.f32 %v2261, %v839
      %v2326 = vadd.f32 %v2262, %v842
      %v2327 = vadd.f32 %v2263, %v845
      %v2328 = vadd.f32 %v2264, %v848
      %v2329 = vadd.f32 %v2265, %v851
      %v2330 = vadd.f32 %v2266, %v854
      %v2331 = vadd.f32 %v2267, %v857
      %v2332 = vadd.f32 %v2268, %v860
      %v2333 = vadd.f32 %v2269, %v863
      %v2334 = vadd.f32 %v2270, %v866
      %v2335 = vadd.f32 %v2271, %v869
      %v2336 = vadd.f32 %v2272, %v872
      %v2337 = vadd.f32 %v2273, %v875
      %v2338 = vadd.f32 %v2274, %v878
      %v2339 = vadd.f32 %v2275, %v881
      %v2340 = vadd.f32 %v2276, %v884
      %v2341 = vadd.f32 %v2277, %v887
      %v2342 = vadd.f32 %v2278, %v890
      %v2343 = vadd.f32 %v2279, %v893
      %v2344 = vadd.f32 %v2280, %v896
      %v2345 = vadd.f32 %v2281, %v899
      %v2346 = vadd.f32 %v2282, %v902
      %v2347 = vperm.slane %v198, 0
      %v2348 = vadd.f32 %v2283, %v2347
      %v2349 = vadd.f32 %v2284, %v2347
      %v2350 = vadd.f32 %v2285, %v2347
      %v2351 = vadd.f32 %v2286, %v2347
      %v2352 = vadd.f32 %v2287, %v2347
      %v2353 = vadd.f32 %v2288, %v2347
      %v2354 = vadd.f32 %v2289, %v2347
      %v2355 = vadd.f32 %v2290, %v2347
      %v2356 = vadd.f32 %v2291, %v2347
      %v2357 = vadd.f32 %v2292, %v2347
      %v2358 = vadd.f32 %v2293, %v2347
      %v2359 = vadd.f32 %v2294, %v2347
      %v2360 = vadd.f32 %v2295, %v2347
      %v2361 = vadd.f32 %v2296, %v2347
      %v2362 = vadd.f32 %v2297, %v2347
      %v2363 = vadd.f32 %v2298, %v2347
      %v2364 = vadd.f32 %v2299, %v2347
      %v2365 = vadd.f32 %v2300, %v2347
      %v2366 = vadd.f32 %v2301, %v2347
      %v2367 = vadd.f32 %v2302, %v2347
      %v2368 = vadd.f32 %v2303, %v2347
      %v2369 = vadd.f32 %v2304, %v2347
      %v2370 = vadd.f32 %v2305, %v2347
      %v2371 = vadd.f32 %v2306, %v2347
      %v2372 = vadd.f32 %v2307, %v2347
      %v2373 = vadd.f32 %v2308, %v2347
      %v2374 = vadd.f32 %v2309, %v2347
      %v2375 = vadd.f32 %v2310, %v2347
      %v2376 = vadd.f32 %v2311, %v2347
      %v2377 = vadd.f32 %v2312, %v2347
      %v2378 = vadd.f32 %v2313, %v2347
      %v2379 = vadd.f32 %v2314, %v2347
      %v2380 = vadd.f32 %v2315, %v2347
      %v2381 = vadd.f32 %v2316, %v2347
      %v2382 = vadd.f32 %v2317, %v2347
      %v2383 = vadd.f32 %v2318, %v2347
      %v2384 = vadd.f32 %v2319, %v2347
      %v2385 = vadd.f32 %v2320, %v2347
      %v2386 = vadd.f32 %v2321, %v2347
      %v2387 = vadd.f32 %v2322, %v2347
      %v2388 = vadd.f32 %v2323, %v2347
      %v2389 = vadd.f32 %v2324, %v2347
      %v2390 = vadd.f32 %v2325, %v2347
      %v2391 = vadd.f32 %v2326, %v2347
      %v2392 = vadd.f32 %v2327, %v2347
      %v2393 = vadd.f32 %v2328, %v2347
      %v2394 = vadd.f32 %v2329, %v2347
      %v2395 = vadd.f32 %v2330, %v2347
      %v2396 = vadd.f32 %v2331, %v2347
      %v2397 = vadd.f32 %v2332, %v2347
      %v2398 = vadd.f32 %v2333, %v2347
      %v2399 = vadd.f32 %v2334, %v2347
      %v2400 = vadd.f32 %v2335, %v2347
      %v2401 = vadd.f32 %v2336, %v2347
      %v2402 = vadd.f32 %v2337, %v2347
      %v2403 = vadd.f32 %v2338, %v2347
      %v2404 = vadd.f32 %v2339, %v2347
      %v2405 = vadd.f32 %v2340, %v2347
      %v2406 = vadd.f32 %v2341, %v2347
      %v2407 = vadd.f32 %v2342, %v2347
      %v2408 = vadd.f32 %v2343, %v2347
      %v2409 = vadd.f32 %v2344, %v2347
      %v2410 = vadd.f32 %v2345, %v2347
      %v2411 = vadd.f32 %v2346, %v2347
      %v2412 = vmax.f32 %v2348, 0.0
      %v2413 = vmax.f32 %v2349, 0.0
      %v2414 = vmax.f32 %v2350, 0.0
      %v2415 = vmax.f32 %v2351, 0.0
      %v2416 = vmax.f32 %v2352, 0.0
      %v2417 = vmax.f32 %v2353, 0.0
      %v2418 = vmax.f32 %v2354, 0.0
      %v2419 = vmax.f32 %v2355, 0.0
      %v2420 = vmax.f32 %v2356, 0.0
      %v2421 = vmax.f32 %v2357, 0.0
      %v2422 = vmax.f32 %v2358, 0.0
      %v2423 = vmax.f32 %v2359, 0.0
      %v2424 = vmax.f32 %v2360, 0.0
      %v2425 = vmax.f32 %v2361, 0.0
      %v2426 = vmax.f32 %v2362, 0.0
      %v2427 = vmax.f32 %v2363, 0.0
      %v2428 = vmax.f32 %v2364, 0.0
      %v2429 = vmax.f32 %v2365, 0.0
      %v2430 = vmax.f32 %v2366, 0.0
      %v2431 = vmax.f32 %v2367, 0.0
      %v2432 = vmax.f32 %v2368, 0.0
      %v2433 = vmax.f32 %v2369, 0.0
      %v2434 = vmax.f32 %v2370, 0.0
      %v2435 = vmax.f32 %v2371, 0.0
      %v2436 = vmax.f32 %v2372, 0.0
      %v2437 = vmax.f32 %v2373, 0.0
      %v2438 = vmax.f32 %v2374, 0.0
      %v2439 = vmax.f32 %v2375, 0.0
      %v2440 = vmax.f32 %v2376, 0.0
      %v2441 = vmax.f32 %v2377, 0.0
      %v2442 = vmax.f32 %v2378, 0.0
      %v2443 = vmax.f32 %v2379, 0.0
      %v2444 = vmax.f32 %v2380, 0.0
      %v2445 = vmax.f32 %v2381, 0.0
      %v2446 = vmax.f32 %v2382, 0.0
      %v2447 = vmax.f32 %v2383, 0.0
      %v2448 = vmax.f32 %v2384, 0.0
      %v2449 = vmax.f32 %v2385, 0.0
      %v2450 = vmax.f32 %v2386, 0.0
      %v2451 = vmax.f32 %v2387, 0.0
      %v2452 = vmax.f32 %v2388, 0.0
      %v2453 = vmax.f32 %v2389, 0.0
      %v2454 = vmax.f32 %v2390, 0.0
      %v2455 = vmax.f32 %v2391, 0.0
      %v2456 = vmax.f32 %v2392, 0.0
      %v2457 = vmax.f32 %v2393, 0.0
      %v2458 = vmax.f32 %v2394, 0.0
      %v2459 = vmax.f32 %v2395, 0.0
      %v2460 = vmax.f32 %v2396, 0.0
      %v2461 = vmax.f32 %v2397, 0.0
      %v2462 = vmax.f32 %v2398, 0.0
      %v2463 = vmax.f32 %v2399, 0.0
      %v2464 = vmax.f32 %v2400, 0.0
      %v2465 = vmax.f32 %v2401, 0.0
      %v2466 = vmax.f32 %v2402, 0.0
      %v2467 = vmax.f32 %v2403, 0.0
      %v2468 = vmax.f32 %v2404, 0.0
      %v2469 = vmax.f32 %v2405, 0.0
      %v2470 = vmax.f32 %v2406, 0.0
      %v2471 = vmax.f32 %v2407, 0.0
      %v2472 = vmax.f32 %v2408, 0.0
      %v2473 = vmax.f32 %v2409, 0.0
      %v2474 = vmax.f32 %v2410, 0.0
      %v2475 = vmax.f32 %v2411, 0.0
      %2476 = vst [vmem:[#allocation2] sm:$0xff] %v2412
      %2477 = vst [vmem:[#allocation2 + $0x8] sm:$0xff] %v2413
      %2478 = vst [vmem:[#allocation2 + $0x10] sm:$0xff] %v2414
      %2479 = vst [vmem:[#allocation2 + $0x18] sm:$0xff] %v2415
      %2480 = vst [vmem:[#allocation2 + $0x20] sm:$0xff] %v2416
      %2481 = vst [vmem:[#allocation2 + $0x28] sm:$0xff] %v2417
      %2482 = vst [vmem:[#allocation2 + $0x30] sm:$0xff] %v2418
      %2483 = vst [vmem:[#allocation2 + $0x38] sm:$0xff] %v2419
      %2484 = vst [vmem:[#allocation2 + $0x40] sm:$0xff] %v2420
      %2485 = vst [vmem:[#allocation2 + $0x48] sm:$0xff] %v2421
      %2486 = vst [vmem:[#allocation2 + $0x50] sm:$0xff] %v2422
      %2487 = vst [vmem:[#allocation2 + $0x58] sm:$0xff] %v2423
      %2488 = vst [vmem:[#allocation2 + $0x60] sm:$0xff] %v2424
      %2489 = vst [vmem:[#allocation2 + $0x68] sm:$0xff] %v2425
      %2490 = vst [vmem:[#allocation2 + $0x70] sm:$0xff] %v2426
      %2491 = vst [vmem:[#allocation2 + $0x78] sm:$0xff] %v2427
      %2492 = vst [vmem:[#allocation2 + $0x80] sm:$0xff] %v2428
      %2493 = vst [vmem:[#allocation2 + $0x88] sm:$0xff] %v2429
      %2494 = vst [vmem:[#allocation2 + $0x90] sm:$0xff] %v2430
      %2495 = vst [vmem:[#allocation2 + $0x98] sm:$0xff] %v2431
      %2496 = vst [vmem:[#allocation2 + $0xa0] sm:$0xff] %v2432
      %2497 = vst [vmem:[#allocation2 + $0xa8] sm:$0xff] %v2433
      %2498 = vst [vmem:[#allocation2 + $0xb0] sm:$0xff] %v2434
      %2499 = vst [vmem:[#allocation2 + $0xb8] sm:$0xff] %v2435
      %2500 = vst [vmem:[#allocation2 + $0xc0] sm:$0xff] %v2436
      %2501 = vst [vmem:[#allocation2 + $0xc8] sm:$0xff] %v2437
      %2502 = vst [vmem:[#allocation2 + $0xd0] sm:$0xff] %v2438
      %2503 = vst [vmem:[#allocation2 + $0xd8] sm:$0xff] %v2439
      %2504 = vst [vmem:[#allocation2 + $0xe0] sm:$0xff] %v2440
      %2505 = vst [vmem:[#allocation2 + $0xe8] sm:$0xff] %v2441
      %2506 = vst [vmem:[#allocation2 + $0xf0] sm:$0xff] %v2442
      %2507 = vst [vmem:[#allocation2 + $0xf8] sm:$0xff] %v2443
      %2508 = vst [vmem:[#allocation2 + $0x100] sm:$0xff] %v2444
      %2509 = vst [vmem:[#allocation2 + $0x108] sm:$0xff] %v2445
      %2510 = vst [vmem:[#allocation2 + $0x110] sm:$0xff] %v2446
      %2511 = vst [vmem:[#allocation2 + $0x118] sm:$0xff] %v2447
      %2512 = vst [vmem:[#allocation2 + $0x120] sm:$0xff] %v2448
      %2513 = vst [vmem:[#allocation2 + $0x128] sm:$0xff] %v2449
      %2514 = vst [vmem:[#allocation2 + $0x130] sm:$0xff] %v2450
      %2515 = vst [vmem:[#allocation2 + $0x138] sm:$0xff] %v2451
      %2516 = vst [vmem:[#allocation2 + $0x140] sm:$0xff] %v2452
      %2517 = vst [vmem:[#allocation2 + $0x148] sm:$0xff] %v2453
      %2518 = vst [vmem:[#allocation2 + $0x150] sm:$0xff] %v2454
      %2519 = vst [vmem:[#allocation2 + $0x158] sm:$0xff] %v2455
      %2520 = vst [vmem:[#allocation2 + $0x160] sm:$0xff] %v2456
      %2521 = vst [vmem:[#allocation2 + $0x168] sm:$0xff] %v2457
      %2522 = vst [vmem:[#allocation2 + $0x170] sm:$0xff] %v2458
      %2523 = vst [vmem:[#allocation2 + $0x178] sm:$0xff] %v2459
      %2524 = vst [vmem:[#allocation2 + $0x180] sm:$0xff] %v2460
      %2525 = vst [vmem:[#allocation2 + $0x188] sm:$0xff] %v2461
      %2526 = vst [vmem:[#allocation2 + $0x190] sm:$0xff] %v2462
      %2527 = vst [vmem:[#allocation2 + $0x198] sm:$0xff] %v2463
      %2528 = vst [vmem:[#allocation2 + $0x1a0] sm:$0xff] %v2464
      %2529 = vst [vmem:[#allocation2 + $0x1a8] sm:$0xff] %v2465
      %2530 = vst [vmem:[#allocation2 + $0x1b0] sm:$0xff] %v2466
      %2531 = vst [vmem:[#allocation2 + $0x1b8] sm:$0xff] %v2467
      %2532 = vst [vmem:[#allocation2 + $0x1c0] sm:$0xff] %v2468
      %2533 = vst [vmem:[#allocation2 + $0x1c8] sm:$0xff] %v2469
      %2534 = vst [vmem:[#allocation2 + $0x1d0] sm:$0xff] %v2470
      %2535 = vst [vmem:[#allocation2 + $0x1d8] sm:$0xff] %v2471
      %2536 = vst [vmem:[#allocation2 + $0x1e0] sm:$0xff] %v2472
      %2537 = vst [vmem:[#allocation2 + $0x1e8] sm:$0xff] %v2473
      %2538 = vst [vmem:[#allocation2 + $0x1f0] sm:$0xff] %v2474
      %2539 = vst [vmem:[#allocation2 + $0x1f8] sm:$0xff] %v2475
      %v2540 = vld [vmem:[%s3 + $0x1] sm:$0x1]
      %v2541 = vld [vmem:[#allocation2] ss:$2 sm:$0xff]
      %s2542 = scalar_lea.vmem [#allocation2], 16
      %v2543 = vld [vmem:[%s2542] ss:$2 sm:$0xff]
      %s2544 = scalar_lea.vmem [#allocation2], 32
      %v2545 = vld [vmem:[%s2544] ss:$2 sm:$0xff]
      %s2546 = scalar_lea.vmem [#allocation2], 48
      %v2547 = vld [vmem:[%s2546] ss:$2 sm:$0xff]
      %s2548 = scalar_lea.vmem [#allocation2], 64
      %v2549 = vld [vmem:[%s2548] ss:$2 sm:$0xff]
      %s2550 = scalar_lea.vmem [#allocation2], 80
      %v2551 = vld [vmem:[%s2550] ss:$2 sm:$0xff]
      %s2552 = scalar_lea.vmem [#allocation2], 96
      %v2553 = vld [vmem:[%s2552] ss:$2 sm:$0xff]
      %s2554 = scalar_lea.vmem [#allocation2], 112
      %v2555 = vld [vmem:[%s2554] ss:$2 sm:$0xff]
      %s2556 = scalar_lea.vmem [#allocation2], 128
      %v2557 = vld [vmem:[%s2556] ss:$2 sm:$0xff]
      %s2558 = scalar_lea.vmem [#allocation2], 144
      %v2559 = vld [vmem:[%s2558] ss:$2 sm:$0xff]
      %s2560 = scalar_lea.vmem [#allocation2], 160
      %v2561 = vld [vmem:[%s2560] ss:$2 sm:$0xff]
      %s2562 = scalar_lea.vmem [#allocation2], 176
      %v2563 = vld [vmem:[%s2562] ss:$2 sm:$0xff]
      %s2564 = scalar_lea.vmem [#allocation2], 192
      %v2565 = vld [vmem:[%s2564] ss:$2 sm:$0xff]
      %s2566 = scalar_lea.vmem [#allocation2], 208
      %v2567 = vld [vmem:[%s2566] ss:$2 sm:$0xff]
      %s2568 = scalar_lea.vmem [#allocation2], 224
      %v2569 = vld [vmem:[%s2568] ss:$2 sm:$0xff]
      %s2570 = scalar_lea.vmem [#allocation2], 240
      %v2571 = vld [vmem:[%s2570] ss:$2 sm:$0xff]
      %s2572 = scalar_lea.vmem [#allocation2], 256
      %v2573 = vld [vmem:[%s2572] ss:$2 sm:$0xff]
      %s2574 = scalar_lea.vmem [#allocation2], 272
      %v2575 = vld [vmem:[%s2574] ss:$2 sm:$0xff]
      %s2576 = scalar_lea.vmem [#allocation2], 288
      %v2577 = vld [vmem:[%s2576] ss:$2 sm:$0xff]
      %s2578 = scalar_lea.vmem [#allocation2], 304
      %v2579 = vld [vmem:[%s2578] ss:$2 sm:$0xff]
      %s2580 = scalar_lea.vmem [#allocation2], 320
      %v2581 = vld [vmem:[%s2580] ss:$2 sm:$0xff]
      %s2582 = scalar_lea.vmem [#allocation2], 336
      %v2583 = vld [vmem:[%s2582] ss:$2 sm:$0xff]
      %s2584 = scalar_lea.vmem [#allocation2], 352
      %v2585 = vld [vmem:[%s2584] ss:$2 sm:$0xff]
      %s2586 = scalar_lea.vmem [#allocation2], 368
      %v2587 = vld [vmem:[%s2586] ss:$2 sm:$0xff]
      %s2588 = scalar_lea.vmem [#allocation2], 384
      %v2589 = vld [vmem:[%s2588] ss:$2 sm:$0xff]
      %s2590 = scalar_lea.vmem [#allocation2], 400
      %v2591 = vld [vmem:[%s2590] ss:$2 sm:$0xff]
      %s2592 = scalar_lea.vmem [#allocation2], 416
      %v2593 = vld [vmem:[%s2592] ss:$2 sm:$0xff]
      %s2594 = scalar_lea.vmem [#allocation2], 432
      %v2595 = vld [vmem:[%s2594] ss:$2 sm:$0xff]
      %s2596 = scalar_lea.vmem [#allocation2], 448
      %v2597 = vld [vmem:[%s2596] ss:$2 sm:$0xff]
      %s2598 = scalar_lea.vmem [#allocation2], 464
      %v2599 = vld [vmem:[%s2598] ss:$2 sm:$0xff]
      %s2600 = scalar_lea.vmem [#allocation2], 480
      %v2601 = vld [vmem:[%s2600] ss:$2 sm:$0xff]
      %s2602 = scalar_lea.vmem [#allocation2], 496
      %v2603 = vld [vmem:[%s2602] ss:$2 sm:$0xff]
      %s2604 = scalar_lea.vmem [#allocation2], 1
      %v2605 = vld [vmem:[%s2604] ss:$2 sm:$0xff]
      %s2606 = scalar_lea.vmem [#allocation2], 17
      %v2607 = vld [vmem:[%s2606] ss:$2 sm:$0xff]
      %s2608 = scalar_lea.vmem [#allocation2], 33
      %v2609 = vld [vmem:[%s2608] ss:$2 sm:$0xff]
      %s2610 = scalar_lea.vmem [#allocation2], 49
      %v2611 = vld [vmem:[%s2610] ss:$2 sm:$0xff]
      %s2612 = scalar_lea.vmem [#allocation2], 65
      %v2613 = vld [vmem:[%s2612] ss:$2 sm:$0xff]
      %s2614 = scalar_lea.vmem [#allocation2], 81
      %v2615 = vld [vmem:[%s2614] ss:$2 sm:$0xff]
      %s2616 = scalar_lea.vmem [#allocation2], 97
      %v2617 = vld [vmem:[%s2616] ss:$2 sm:$0xff]
      %s2618 = scalar_lea.vmem [#allocation2], 113
      %v2619 = vld [vmem:[%s2618] ss:$2 sm:$0xff]
      %s2620 = scalar_lea.vmem [#allocation2], 129
      %v2621 = vld [vmem:[%s2620] ss:$2 sm:$0xff]
      %s2622 = scalar_lea.vmem [#allocation2], 145
      %v2623 = vld [vmem:[%s2622] ss:$2 sm:$0xff]
      %s2624 = scalar_lea.vmem [#allocation2], 161
      %v2625 = vld [vmem:[%s2624] ss:$2 sm:$0xff]
      %s2626 = scalar_lea.vmem [#allocation2], 177
      %v2627 = vld [vmem:[%s2626] ss:$2 sm:$0xff]
      %s2628 = scalar_lea.vmem [#allocation2], 193
      %v2629 = vld [vmem:[%s2628] ss:$2 sm:$0xff]
      %s2630 = scalar_lea.vmem [#allocation2], 209
      %v2631 = vld [vmem:[%s2630] ss:$2 sm:$0xff]
      %s2632 = scalar_lea.vmem [#allocation2], 225
      %v2633 = vld [vmem:[%s2632] ss:$2 sm:$0xff]
      %s2634 = scalar_lea.vmem [#allocation2], 241
      %v2635 = vld [vmem:[%s2634] ss:$2 sm:$0xff]
      %s2636 = scalar_lea.vmem [#allocation2], 257
      %v2637 = vld [vmem:[%s2636] ss:$2 sm:$0xff]
      %s2638 = scalar_lea.vmem [#allocation2], 273
      %v2639 = vld [vmem:[%s2638] ss:$2 sm:$0xff]
      %s2640 = scalar_lea.vmem [#allocation2], 289
      %v2641 = vld [vmem:[%s2640] ss:$2 sm:$0xff]
      %s2642 = scalar_lea.vmem [#allocation2], 305
      %v2643 = vld [vmem:[%s2642] ss:$2 sm:$0xff]
      %s2644 = scalar_lea.vmem [#allocation2], 321
      %v2645 = vld [vmem:[%s2644] ss:$2 sm:$0xff]
      %s2646 = scalar_lea.vmem [#allocation2], 337
      %v2647 = vld [vmem:[%s2646] ss:$2 sm:$0xff]
      %s2648 = scalar_lea.vmem [#allocation2], 353
      %v2649 = vld [vmem:[%s2648] ss:$2 sm:$0xff]
      %s2650 = scalar_lea.vmem [#allocation2], 369
      %v2651 = vld [vmem:[%s2650] ss:$2 sm:$0xff]
      %s2652 = scalar_lea.vmem [#allocation2], 385
      %v2653 = vld [vmem:[%s2652] ss:$2 sm:$0xff]
      %s2654 = scalar_lea.vmem [#allocation2], 401
      %v2655 = vld [vmem:[%s2654] ss:$2 sm:$0xff]
      %s2656 = scalar_lea.vmem [#allocation2], 417
      %v2657 = vld [vmem:[%s2656] ss:$2 sm:$0xff]
      %s2658 = scalar_lea.vmem [#allocation2], 433
      %v2659 = vld [vmem:[%s2658] ss:$2 sm:$0xff]
      %s2660 = scalar_lea.vmem [#allocation2], 449
      %v2661 = vld [vmem:[%s2660] ss:$2 sm:$0xff]
      %s2662 = scalar_lea.vmem [#allocation2], 465
      %v2663 = vld [vmem:[%s2662] ss:$2 sm:$0xff]
      %s2664 = scalar_lea.vmem [#allocation2], 481
      %v2665 = vld [vmem:[%s2664] ss:$2 sm:$0xff]
      %s2666 = scalar_lea.vmem [#allocation2], 497
      %v2667 = vld [vmem:[%s2666] ss:$2 sm:$0xff]
      %v2668 = vld [vmem:[%s1 + $0x18] sm:$0xff]
      %v2669 = vld [vmem:[%s1 + $0x20] sm:$0xff]
      %v2670 = vld [vmem:[%s1 + $0x58] sm:$0xff]
      %v2671 = vld [vmem:[%s1 + $0x60] sm:$0xff]
      %v2672 = vld [vmem:[%s1 + $0x98] sm:$0xff]
      %v2673 = vld [vmem:[%s1 + $0xa0] sm:$0xff]
      %v2674 = vld [vmem:[%s1 + $0xd8] sm:$0xff]
      %v2675 = vld [vmem:[%s1 + $0xe0] sm:$0xff]
      %v2676 = vld [vmem:[%s1 + $0x118] sm:$0xff]
      %v2677 = vld [vmem:[%s1 + $0x120] sm:$0xff]
      %v2678 = vld [vmem:[%s1 + $0x158] sm:$0xff]
      %v2679 = vld [vmem:[%s1 + $0x160] sm:$0xff]
      %v2680 = vld [vmem:[%s1 + $0x198] sm:$0xff]
      %v2681 = vld [vmem:[%s1 + $0x1a0] sm:$0xff]
      %v2682 = vld [vmem:[%s1 + $0x1d8] sm:$0xff]
      %v2683 = vld [vmem:[%s1 + $0x1e0] sm:$0xff]
      %v2684 = vld [vmem:[%s1 + $0x218] sm:$0xff]
      %v2685 = vld [vmem:[%s1 + $0x220] sm:$0xff]
      %v2686 = vld [vmem:[%s1 + $0x258] sm:$0xff]
      %v2687 = vld [vmem:[%s1 + $0x260] sm:$0xff]
      %v2688 = vld [vmem:[%s1 + $0x298] sm:$0xff]
      %v2689 = vld [vmem:[%s1 + $0x2a0] sm:$0xff]
      %v2690 = vld [vmem:[%s1 + $0x2d8] sm:$0xff]
      %v2691 = vld [vmem:[%s1 + $0x2e0] sm:$0xff]
      %v2692 = vld [vmem:[%s1 + $0x318] sm:$0xff]
      %v2693 = vld [vmem:[%s1 + $0x320] sm:$0xff]
      %v2694 = vld [vmem:[%s1 + $0x358] sm:$0xff]
      %v2695 = vld [vmem:[%s1 + $0x360] sm:$0xff]
      %v2696 = vld [vmem:[%s1 + $0x398] sm:$0xff]
      %v2697 = vld [vmem:[%s1 + $0x3a0] sm:$0xff]
      %v2698 = vld [vmem:[%s1 + $0x3d8] sm:$0xff]
      %v2699 = vld [vmem:[%s1 + $0x3e0] sm:$0xff]
      %2700 = vmatpush.msra.mxu0 %v2698
      %2701 = vmatpush.msra.mxu0 %v2696
      %2702 = vmatpush.msra.mxu0 %v2694
      %2703 = vmatpush.msra.mxu0 %v2692
      %2704 = vmatpush.msra.mxu0 %v2690
      %2705 = vmatpush.msra.mxu0 %v2688
      %2706 = vmatpush.msra.mxu0 %v2686
      %2707 = vmatpush.msra.mxu0 %v2684
      %2708 = vmatpush.msra.mxu0 %v2682
      %2709 = vmatpush.msra.mxu0 %v2680
      %2710 = vmatpush.msra.mxu0 %v2678
      %2711 = vmatpush.msra.mxu0 %v2676
      %2712 = vmatpush.msra.mxu0 %v2674
      %2713 = vmatpush.msra.mxu0 %v2672
      %2714 = vmatpush.msra.mxu0 %v2670
      %2715 = vmatpush.msra.mxu0 %v2668
      %2716 = vmatmul.f32.gmra.mxu0 %v2605
      %v2717 = vpop.f32.mrf.mxu0
      %v2718 = vadd.f32 0.0, %v2717
      %2719 = vmatmul.f32.gmra.mxu0 %v2607
      %v2720 = vpop.f32.mrf.mxu0
      %v2721 = vadd.f32 0.0, %v2720
      %2722 = vmatmul.f32.gmra.mxu0 %v2609
      %v2723 = vpop.f32.mrf.mxu0
      %v2724 = vadd.f32 0.0, %v2723
      %2725 = vmatmul.f32.gmra.mxu0 %v2611
      %v2726 = vpop.f32.mrf.mxu0
      %v2727 = vadd.f32 0.0, %v2726
      %2728 = vmatmul.f32.gmra.mxu0 %v2613
      %v2729 = vpop.f32.mrf.mxu0
      %v2730 = vadd.f32 0.0, %v2729
      %2731 = vmatmul.f32.gmra.mxu0 %v2615
      %v2732 = vpop.f32.mrf.mxu0
      %v2733 = vadd.f32 0.0, %v2732
      %2734 = vmatmul.f32.gmra.mxu0 %v2617
      %v2735 = vpop.f32.mrf.mxu0
      %v2736 = vadd.f32 0.0, %v2735
      %2737 = vmatmul.f32.gmra.mxu0 %v2619
      %v2738 = vpop.f32.mrf.mxu0
      %v2739 = vadd.f32 0.0, %v2738
      %2740 = vmatmul.f32.gmra.mxu0 %v2621
      %v2741 = vpop.f32.mrf.mxu0
      %v2742 = vadd.f32 0.0, %v2741
      %2743 = vmatmul.f32.gmra.mxu0 %v2623
      %v2744 = vpop.f32.mrf.mxu0
      %v2745 = vadd.f32 0.0, %v2744
      %2746 = vmatmul.f32.gmra.mxu0 %v2625
      %v2747 = vpop.f32.mrf.mxu0
      %v2748 = vadd.f32 0.0, %v2747
      %2749 = vmatmul.f32.gmra.mxu0 %v2627
      %v2750 = vpop.f32.mrf.mxu0
      %v2751 = vadd.f32 0.0, %v2750
      %2752 = vmatmul.f32.gmra.mxu0 %v2629
      %v2753 = vpop.f32.mrf.mxu0
      %v2754 = vadd.f32 0.0, %v2753
      %2755 = vmatmul.f32.gmra.mxu0 %v2631
      %v2756 = vpop.f32.mrf.mxu0
      %v2757 = vadd.f32 0.0, %v2756
      %2758 = vmatmul.f32.gmra.mxu0 %v2633
      %v2759 = vpop.f32.mrf.mxu0
      %v2760 = vadd.f32 0.0, %v2759
      %2761 = vmatmul.f32.gmra.mxu0 %v2635
      %v2762 = vpop.f32.mrf.mxu0
      %v2763 = vadd.f32 0.0, %v2762
      %2764 = vmatmul.f32.gmra.mxu0 %v2637
      %v2765 = vpop.f32.mrf.mxu0
      %v2766 = vadd.f32 0.0, %v2765
      %2767 = vmatmul.f32.gmra.mxu0 %v2639
      %v2768 = vpop.f32.mrf.mxu0
      %v2769 = vadd.f32 0.0, %v2768
      %2770 = vmatmul.f32.gmra.mxu0 %v2641
      %v2771 = vpop.f32.mrf.mxu0
      %v2772 = vadd.f32 0.0, %v2771
      %2773 = vmatmul.f32.gmra.mxu0 %v2643
      %v2774 = vpop.f32.mrf.mxu0
      %v2775 = vadd.f32 0.0, %v2774
      %2776 = vmatmul.f32.gmra.mxu0 %v2645
      %v2777 = vpop.f32.mrf.mxu0
      %v2778 = vadd.f32 0.0, %v2777
      %2779 = vmatmul.f32.gmra.mxu0 %v2647
      %v2780 = vpop.f32.mrf.mxu0
      %v2781 = vadd.f32 0.0, %v2780
      %2782 = vmatmul.f32.gmra.mxu0 %v2649
      %v2783 = vpop.f32.mrf.mxu0
      %v2784 = vadd.f32 0.0, %v2783
      %2785 = vmatmul.f32.gmra.mxu0 %v2651
      %v2786 = vpop.f32.mrf.mxu0
      %v2787 = vadd.f32 0.0, %v2786
      %2788 = vmatmul.f32.gmra.mxu0 %v2653
      %v2789 = vpop.f32.mrf.mxu0
      %v2790 = vadd.f32 0.0, %v2789
      %2791 = vmatmul.f32.gmra.mxu0 %v2655
      %v2792 = vpop.f32.mrf.mxu0
      %v2793 = vadd.f32 0.0, %v2792
      %2794 = vmatmul.f32.gmra.mxu0 %v2657
      %v2795 = vpop.f32.mrf.mxu0
      %v2796 = vadd.f32 0.0, %v2795
      %2797 = vmatmul.f32.gmra.mxu0 %v2659
      %v2798 = vpop.f32.mrf.mxu0
      %v2799 = vadd.f32 0.0, %v2798
      %2800 = vmatmul.f32.gmra.mxu0 %v2661
      %v2801 = vpop.f32.mrf.mxu0
      %v2802 = vadd.f32 0.0, %v2801
      %2803 = vmatmul.f32.gmra.mxu0 %v2663
      %v2804 = vpop.f32.mrf.mxu0
      %v2805 = vadd.f32 0.0, %v2804
      %2806 = vmatmul.f32.gmra.mxu0 %v2665
      %v2807 = vpop.f32.mrf.mxu0
      %v2808 = vadd.f32 0.0, %v2807
      %2809 = vmatmul.f32.gmra.mxu0 %v2667
      %v2810 = vpop.f32.mrf.mxu0
      %v2811 = vadd.f32 0.0, %v2810
      %2812 = vdwg.mxu0
      %2813 = vmatpush.msra.mxu0 %v2699
      %2814 = vmatpush.msra.mxu0 %v2697
      %2815 = vmatpush.msra.mxu0 %v2695
      %2816 = vmatpush.msra.mxu0 %v2693
      %2817 = vmatpush.msra.mxu0 %v2691
      %2818 = vmatpush.msra.mxu0 %v2689
      %2819 = vmatpush.msra.mxu0 %v2687
      %2820 = vmatpush.msra.mxu0 %v2685
      %2821 = vmatpush.msra.mxu0 %v2683
      %2822 = vmatpush.msra.mxu0 %v2681
      %2823 = vmatpush.msra.mxu0 %v2679
      %2824 = vmatpush.msra.mxu0 %v2677
      %2825 = vmatpush.msra.mxu0 %v2675
      %2826 = vmatpush.msra.mxu0 %v2673
      %2827 = vmatpush.msra.mxu0 %v2671
      %2828 = vmatpush.msra.mxu0 %v2669
      %2829 = vmatmul.f32.gmra.mxu0 %v2605
      %v2830 = vpop.f32.mrf.mxu0
      %v2831 = vadd.f32 0.0, %v2830
      %2832 = vmatmul.f32.gmra.mxu0 %v2607
      %v2833 = vpop.f32.mrf.mxu0
      %v2834 = vadd.f32 0.0, %v2833
      %2835 = vmatmul.f32.gmra.mxu0 %v2609
      %v2836 = vpop.f32.mrf.mxu0
      %v2837 = vadd.f32 0.0, %v2836
      %2838 = vmatmul.f32.gmra.mxu0 %v2611
      %v2839 = vpop.f32.mrf.mxu0
      %v2840 = vadd.f32 0.0, %v2839
      %2841 = vmatmul.f32.gmra.mxu0 %v2613
      %v2842 = vpop.f32.mrf.mxu0
      %v2843 = vadd.f32 0.0, %v2842
      %2844 = vmatmul.f32.gmra.mxu0 %v2615
      %v2845 = vpop.f32.mrf.mxu0
      %v2846 = vadd.f32 0.0, %v2845
      %2847 = vmatmul.f32.gmra.mxu0 %v2617
      %v2848 = vpop.f32.mrf.mxu0
      %v2849 = vadd.f32 0.0, %v2848
      %2850 = vmatmul.f32.gmra.mxu0 %v2619
      %v2851 = vpop.f32.mrf.mxu0
      %v2852 = vadd.f32 0.0, %v2851
      %2853 = vmatmul.f32.gmra.mxu0 %v2621
      %v2854 = vpop.f32.mrf.mxu0
      %v2855 = vadd.f32 0.0, %v2854
      %2856 = vmatmul.f32.gmra.mxu0 %v2623
      %v2857 = vpop.f32.mrf.mxu0
      %v2858 = vadd.f32 0.0, %v2857
      %2859 = vmatmul.f32.gmra.mxu0 %v2625
      %v2860 = vpop.f32.mrf.mxu0
      %v2861 = vadd.f32 0.0, %v2860
      %2862 = vmatmul.f32.gmra.mxu0 %v2627
      %v2863 = vpop.f32.mrf.mxu0
      %v2864 = vadd.f32 0.0, %v2863
      %2865 = vmatmul.f32.gmra.mxu0 %v2629
      %v2866 = vpop.f32.mrf.mxu0
      %v2867 = vadd.f32 0.0, %v2866
      %2868 = vmatmul.f32.gmra.mxu0 %v2631
      %v2869 = vpop.f32.mrf.mxu0
      %v2870 = vadd.f32 0.0, %v2869
      %2871 = vmatmul.f32.gmra.mxu0 %v2633
      %v2872 = vpop.f32.mrf.mxu0
      %v2873 = vadd.f32 0.0, %v2872
      %2874 = vmatmul.f32.gmra.mxu0 %v2635
      %v2875 = vpop.f32.mrf.mxu0
      %v2876 = vadd.f32 0.0, %v2875
      %2877 = vmatmul.f32.gmra.mxu0 %v2637
      %v2878 = vpop.f32.mrf.mxu0
      %v2879 = vadd.f32 0.0, %v2878
      %2880 = vmatmul.f32.gmra.mxu0 %v2639
      %v2881 = vpop.f32.mrf.mxu0
      %v2882 = vadd.f32 0.0, %v2881
      %2883 = vmatmul.f32.gmra.mxu0 %v2641
      %v2884 = vpop.f32.mrf.mxu0
      %v2885 = vadd.f32 0.0, %v2884
      %2886 = vmatmul.f32.gmra.mxu0 %v2643
      %v2887 = vpop.f32.mrf.mxu0
      %v2888 = vadd.f32 0.0, %v2887
      %2889 = vmatmul.f32.gmra.mxu0 %v2645
      %v2890 = vpop.f32.mrf.mxu0
      %v2891 = vadd.f32 0.0, %v2890
      %2892 = vmatmul.f32.gmra.mxu0 %v2647
      %v2893 = vpop.f32.mrf.mxu0
      %v2894 = vadd.f32 0.0, %v2893
      %2895 = vmatmul.f32.gmra.mxu0 %v2649
      %v2896 = vpop.f32.mrf.mxu0
      %v2897 = vadd.f32 0.0, %v2896
      %2898 = vmatmul.f32.gmra.mxu0 %v2651
      %v2899 = vpop.f32.mrf.mxu0
      %v2900 = vadd.f32 0.0, %v2899
      %2901 = vmatmul.f32.gmra.mxu0 %v2653
      %v2902 = vpop.f32.mrf.mxu0
      %v2903 = vadd.f32 0.0, %v2902
      %2904 = vmatmul.f32.gmra.mxu0 %v2655
      %v2905 = vpop.f32.mrf.mxu0
      %v2906 = vadd.f32 0.0, %v2905
      %2907 = vmatmul.f32.gmra.mxu0 %v2657
      %v2908 = vpop.f32.mrf.mxu0
      %v2909 = vadd.f32 0.0, %v2908
      %2910 = vmatmul.f32.gmra.mxu0 %v2659
      %v2911 = vpop.f32.mrf.mxu0
      %v2912 = vadd.f32 0.0, %v2911
      %2913 = vmatmul.f32.gmra.mxu0 %v2661
      %v2914 = vpop.f32.mrf.mxu0
      %v2915 = vadd.f32 0.0, %v2914
      %2916 = vmatmul.f32.gmra.mxu0 %v2663
      %v2917 = vpop.f32.mrf.mxu0
      %v2918 = vadd.f32 0.0, %v2917
      %2919 = vmatmul.f32.gmra.mxu0 %v2665
      %v2920 = vpop.f32.mrf.mxu0
      %v2921 = vadd.f32 0.0, %v2920
      %2922 = vmatmul.f32.gmra.mxu0 %v2667
      %v2923 = vpop.f32.mrf.mxu0
      %v2924 = vadd.f32 0.0, %v2923
      %2925 = vdwg.mxu0
      %v2926 = vld [vmem:[%s1 + $0x28] sm:$0xff]
      %v2927 = vld [vmem:[%s1 + $0x68] sm:$0xff]
      %v2928 = vld [vmem:[%s1 + $0xa8] sm:$0xff]
      %v2929 = vld [vmem:[%s1 + $0xe8] sm:$0xff]
      %v2930 = vld [vmem:[%s1 + $0x128] sm:$0xff]
      %v2931 = vld [vmem:[%s1 + $0x168] sm:$0xff]
      %v2932 = vld [vmem:[%s1 + $0x1a8] sm:$0xff]
      %v2933 = vld [vmem:[%s1 + $0x1e8] sm:$0xff]
      %v2934 = vld [vmem:[%s1 + $0x228] sm:$0xff]
      %v2935 = vld [vmem:[%s1 + $0x268] sm:$0xff]
      %v2936 = vld [vmem:[%s1 + $0x2a8] sm:$0xff]
      %v2937 = vld [vmem:[%s1 + $0x2e8] sm:$0xff]
      %v2938 = vld [vmem:[%s1 + $0x328] sm:$0xff]
      %v2939 = vld [vmem:[%s1 + $0x368] sm:$0xff]
      %v2940 = vld [vmem:[%s1 + $0x3a8] sm:$0xff]
      %v2941 = vld [vmem:[%s1 + $0x3e8] sm:$0xff]
      %2942 = vmatpush.msra.mxu0 %v2941
      %2943 = vmatpush.msra.mxu0 %v2940
      %2944 = vmatpush.msra.mxu0 %v2939
      %2945 = vmatpush.msra.mxu0 %v2938
      %2946 = vmatpush.msra.mxu0 %v2937
      %2947 = vmatpush.msra.mxu0 %v2936
      %2948 = vmatpush.msra.mxu0 %v2935
      %2949 = vmatpush.msra.mxu0 %v2934
      %2950 = vmatpush.msra.mxu0 %v2933
      %2951 = vmatpush.msra.mxu0 %v2932
      %2952 = vmatpush.msra.mxu0 %v2931
      %2953 = vmatpush.msra.mxu0 %v2930
      %2954 = vmatpush.msra.mxu0 %v2929
      %2955 = vmatpush.msra.mxu0 %v2928
      %2956 = vmatpush.msra.mxu0 %v2927
      %2957 = vmatpush.msra.mxu0 %v2926
      %2958 = vmatmul.f32.gmra.mxu0 %v2541
      %v2959 = vpop.f32.mrf.mxu0
      %v2960 = vadd.f32 0.0, %v2959
      %2961 = vmatmul.f32.gmra.mxu0 %v2543
      %v2962 = vpop.f32.mrf.mxu0
      %v2963 = vadd.f32 0.0, %v2962
      %2964 = vmatmul.f32.gmra.mxu0 %v2545
      %v2965 = vpop.f32.mrf.mxu0
      %v2966 = vadd.f32 0.0, %v2965
      %2967 = vmatmul.f32.gmra.mxu0 %v2547
      %v2968 = vpop.f32.mrf.mxu0
      %v2969 = vadd.f32 0.0, %v2968
      %2970 = vmatmul.f32.gmra.mxu0 %v2549
      %v2971 = vpop.f32.mrf.mxu0
      %v2972 = vadd.f32 0.0, %v2971
      %2973 = vmatmul.f32.gmra.mxu0 %v2551
      %v2974 = vpop.f32.mrf.mxu0
      %v2975 = vadd.f32 0.0, %v2974
      %2976 = vmatmul.f32.gmra.mxu0 %v2553
      %v2977 = vpop.f32.mrf.mxu0
      %v2978 = vadd.f32 0.0, %v2977
      %2979 = vmatmul.f32.gmra.mxu0 %v2555
      %v2980 = vpop.f32.mrf.mxu0
      %v2981 = vadd.f32 0.0, %v2980
      %2982 = vmatmul.f32.gmra.mxu0 %v2557
      %v2983 = vpop.f32.mrf.mxu0
      %v2984 = vadd.f32 0.0, %v2983
      %2985 = vmatmul.f32.gmra.mxu0 %v2559
      %v2986 = vpop.f32.mrf.mxu0
      %v2987 = vadd.f32 0.0, %v2986
      %2988 = vmatmul.f32.gmra.mxu0 %v2561
      %v2989 = vpop.f32.mrf.mxu0
      %v2990 = vadd.f32 0.0, %v2989
      %2991 = vmatmul.f32.gmra.mxu0 %v2563
      %v2992 = vpop.f32.mrf.mxu0
      %v2993 = vadd.f32 0.0, %v2992
      %2994 = vmatmul.f32.gmra.mxu0 %v2565
      %v2995 = vpop.f32.mrf.mxu0
      %v2996 = vadd.f32 0.0, %v2995
      %2997 = vmatmul.f32.gmra.mxu0 %v2567
      %v2998 = vpop.f32.mrf.mxu0
      %v2999 = vadd.f32 0.0, %v2998
      %3000 = vmatmul.f32.gmra.mxu0 %v2569
      %v3001 = vpop.f32.mrf.mxu0
      %v3002 = vadd.f32 0.0, %v3001
      %3003 = vmatmul.f32.gmra.mxu0 %v2571
      %v3004 = vpop.f32.mrf.mxu0
      %v3005 = vadd.f32 0.0, %v3004
      %3006 = vmatmul.f32.gmra.mxu0 %v2573
      %v3007 = vpop.f32.mrf.mxu0
      %v3008 = vadd.f32 0.0, %v3007
      %3009 = vmatmul.f32.gmra.mxu0 %v2575
      %v3010 = vpop.f32.mrf.mxu0
      %v3011 = vadd.f32 0.0, %v3010
      %3012 = vmatmul.f32.gmra.mxu0 %v2577
      %v3013 = vpop.f32.mrf.mxu0
      %v3014 = vadd.f32 0.0, %v3013
      %3015 = vmatmul.f32.gmra.mxu0 %v2579
      %v3016 = vpop.f32.mrf.mxu0
      %v3017 = vadd.f32 0.0, %v3016
      %3018 = vmatmul.f32.gmra.mxu0 %v2581
      %v3019 = vpop.f32.mrf.mxu0
      %v3020 = vadd.f32 0.0, %v3019
      %3021 = vmatmul.f32.gmra.mxu0 %v2583
      %v3022 = vpop.f32.mrf.mxu0
      %v3023 = vadd.f32 0.0, %v3022
      %3024 = vmatmul.f32.gmra.mxu0 %v2585
      %v3025 = vpop.f32.mrf.mxu0
      %v3026 = vadd.f32 0.0, %v3025
      %3027 = vmatmul.f32.gmra.mxu0 %v2587
      %v3028 = vpop.f32.mrf.mxu0
      %v3029 = vadd.f32 0.0, %v3028
      %3030 = vmatmul.f32.gmra.mxu0 %v2589
      %v3031 = vpop.f32.mrf.mxu0
      %v3032 = vadd.f32 0.0, %v3031
      %3033 = vmatmul.f32.gmra.mxu0 %v2591
      %v3034 = vpop.f32.mrf.mxu0
      %v3035 = vadd.f32 0.0, %v3034
      %3036 = vmatmul.f32.gmra.mxu0 %v2593
      %v3037 = vpop.f32.mrf.mxu0
      %v3038 = vadd.f32 0.0, %v3037
      %3039 = vmatmul.f32.gmra.mxu0 %v2595
      %v3040 = vpop.f32.mrf.mxu0
      %v3041 = vadd.f32 0.0, %v3040
      %3042 = vmatmul.f32.gmra.mxu0 %v2597
      %v3043 = vpop.f32.mrf.mxu0
      %v3044 = vadd.f32 0.0, %v3043
      %3045 = vmatmul.f32.gmra.mxu0 %v2599
      %v3046 = vpop.f32.mrf.mxu0
      %v3047 = vadd.f32 0.0, %v3046
      %3048 = vmatmul.f32.gmra.mxu0 %v2601
      %v3049 = vpop.f32.mrf.mxu0
      %v3050 = vadd.f32 0.0, %v3049
      %3051 = vmatmul.f32.gmra.mxu0 %v2603
      %v3052 = vpop.f32.mrf.mxu0
      %v3053 = vadd.f32 0.0, %v3052
      %3054 = vdwg.mxu0
      %v3055 = vrot.slane %v2718, 7
      %v3056 = vrot.slane %v2721, 7
      %v3057 = vrot.slane %v2724, 7
      %v3058 = vrot.slane %v2727, 7
      %v3059 = vrot.slane %v2730, 7
      %v3060 = vrot.slane %v2733, 7
      %v3061 = vrot.slane %v2736, 7
      %v3062 = vrot.slane %v2739, 7
      %v3063 = vrot.slane %v2742, 7
      %v3064 = vrot.slane %v2745, 7
      %v3065 = vrot.slane %v2748, 7
      %v3066 = vrot.slane %v2751, 7
      %v3067 = vrot.slane %v2754, 7
      %v3068 = vrot.slane %v2757, 7
      %v3069 = vrot.slane %v2760, 7
      %v3070 = vrot.slane %v2763, 7
      %v3071 = vrot.slane %v2766, 7
      %v3072 = vrot.slane %v2769, 7
      %v3073 = vrot.slane %v2772, 7
      %v3074 = vrot.slane %v2775, 7
      %v3075 = vrot.slane %v2778, 7
      %v3076 = vrot.slane %v2781, 7
      %v3077 = vrot.slane %v2784, 7
      %v3078 = vrot.slane %v2787, 7
      %v3079 = vrot.slane %v2790, 7
      %v3080 = vrot.slane %v2793, 7
      %v3081 = vrot.slane %v2796, 7
      %v3082 = vrot.slane %v2799, 7
      %v3083 = vrot.slane %v2802, 7
      %v3084 = vrot.slane %v2805, 7
      %v3085 = vrot.slane %v2808, 7
      %v3086 = vrot.slane %v2811, 7
      %v3087 = vsel %vm1195, %v3085, %v3086
      %v3088 = vsel %vm1195, %v3084, %v3085
      %v3089 = vsel %vm1195, %v3083, %v3084
      %v3090 = vsel %vm1195, %v3082, %v3083
      %v3091 = vsel %vm1195, %v3081, %v3082
      %v3092 = vsel %vm1195, %v3080, %v3081
      %v3093 = vsel %vm1195, %v3079, %v3080
      %v3094 = vsel %vm1195, %v3078, %v3079
      %v3095 = vsel %vm1195, %v3077, %v3078
      %v3096 = vsel %vm1195, %v3076, %v3077
      %v3097 = vsel %vm1195, %v3075, %v3076
      %v3098 = vsel %vm1195, %v3074, %v3075
      %v3099 = vsel %vm1195, %v3073, %v3074
      %v3100 = vsel %vm1195, %v3072, %v3073
      %v3101 = vsel %vm1195, %v3071, %v3072
      %v3102 = vsel %vm1195, %v3070, %v3071
      %v3103 = vsel %vm1195, %v3069, %v3070
      %v3104 = vsel %vm1195, %v3068, %v3069
      %v3105 = vsel %vm1195, %v3067, %v3068
      %v3106 = vsel %vm1195, %v3066, %v3067
      %v3107 = vsel %vm1195, %v3065, %v3066
      %v3108 = vsel %vm1195, %v3064, %v3065
      %v3109 = vsel %vm1195, %v3063, %v3064
      %v3110 = vsel %vm1195, %v3062, %v3063
      %v3111 = vsel %vm1195, %v3061, %v3062
      %v3112 = vsel %vm1195, %v3060, %v3061
      %v3113 = vsel %vm1195, %v3059, %v3060
      %v3114 = vsel %vm1195, %v3058, %v3059
      %v3115 = vsel %vm1195, %v3057, %v3058
      %v3116 = vsel %vm1195, %v3056, %v3057
      %v3117 = vsel %vm1195, %v3055, %v3056
      %v3118 = vsel %vm1195, %v3086, %v3055
      %vm3119 = vcmp.lt.s32.totalorder %v1194, 0
      %v3120 = vsub.s32 0, %v1194
      %v3121 = vsel %vm3119, %v3120, %v1194
      %v3122 = vshrl.u32 %v3121, 3
      %v3123 = vand.u32 %v3121, 7
      %v3124 = vsub.s32 0, %v3123
      %v3125 = vsel %vm3119, %v3124, %v3123
      %vm3126 = vcmp.lt.s32.totalorder %v1260, 0
      %v3127 = vsub.s32 0, %v1260
      %v3128 = vsel %vm3126, %v3127, %v1260
      %v3129 = vshrl.u32 %v3128, 3
      %v3130 = vand.u32 %v3128, 7
      %v3131 = vsub.s32 0, %v3130
      %v3132 = vsel %vm3126, %v3131, %v3130
      %vm3133 = vcmp.lt.s32.totalorder %v1261, 0
      %v3134 = vsub.s32 0, %v1261
      %v3135 = vsel %vm3133, %v3134, %v1261
      %v3136 = vshrl.u32 %v3135, 3
      %v3137 = vand.u32 %v3135, 7
      %v3138 = vsub.s32 0, %v3137
      %v3139 = vsel %vm3133, %v3138, %v3137
      %vm3140 = vcmp.lt.s32.totalorder %v1262, 0
      %v3141 = vsub.s32 0, %v1262
      %v3142 = vsel %vm3140, %v3141, %v1262
      %v3143 = vshrl.u32 %v3142, 3
      %v3144 = vand.u32 %v3142, 7
      %v3145 = vsub.s32 0, %v3144
      %v3146 = vsel %vm3140, %v3145, %v3144
      %vm3147 = vcmp.lt.s32.totalorder %v1263, 0
      %v3148 = vsub.s32 0, %v1263
      %v3149 = vsel %vm3147, %v3148, %v1263
      %v3150 = vshrl.u32 %v3149, 3
      %v3151 = vand.u32 %v3149, 7
      %v3152 = vsub.s32 0, %v3151
      %v3153 = vsel %vm3147, %v3152, %v3151
      %vm3154 = vcmp.lt.s32.totalorder %v1264, 0
      %v3155 = vsub.s32 0, %v1264
      %v3156 = vsel %vm3154, %v3155, %v1264
      %v3157 = vshrl.u32 %v3156, 3
      %v3158 = vand.u32 %v3156, 7
      %v3159 = vsub.s32 0, %v3158
      %v3160 = vsel %vm3154, %v3159, %v3158
      %vm3161 = vcmp.lt.s32.totalorder %v1265, 0
      %v3162 = vsub.s32 0, %v1265
      %v3163 = vsel %vm3161, %v3162, %v1265
      %v3164 = vshrl.u32 %v3163, 3
      %v3165 = vand.u32 %v3163, 7
      %v3166 = vsub.s32 0, %v3165
      %v3167 = vsel %vm3161, %v3166, %v3165
      %vm3168 = vcmp.lt.s32.totalorder %v1266, 0
      %v3169 = vsub.s32 0, %v1266
      %v3170 = vsel %vm3168, %v3169, %v1266
      %v3171 = vshrl.u32 %v3170, 3
      %v3172 = vand.u32 %v3170, 7
      %v3173 = vsub.s32 0, %v3172
      %v3174 = vsel %vm3168, %v3173, %v3172
      %vm3175 = vcmp.lt.s32.totalorder %v1267, 0
      %v3176 = vsub.s32 0, %v1267
      %v3177 = vsel %vm3175, %v3176, %v1267
      %v3178 = vshrl.u32 %v3177, 3
      %v3179 = vand.u32 %v3177, 7
      %v3180 = vsub.s32 0, %v3179
      %v3181 = vsel %vm3175, %v3180, %v3179
      %vm3182 = vcmp.lt.s32.totalorder %v1268, 0
      %v3183 = vsub.s32 0, %v1268
      %v3184 = vsel %vm3182, %v3183, %v1268
      %v3185 = vshrl.u32 %v3184, 3
      %v3186 = vand.u32 %v3184, 7
      %v3187 = vsub.s32 0, %v3186
      %v3188 = vsel %vm3182, %v3187, %v3186
      %vm3189 = vcmp.lt.s32.totalorder %v1269, 0
      %v3190 = vsub.s32 0, %v1269
      %v3191 = vsel %vm3189, %v3190, %v1269
      %v3192 = vshrl.u32 %v3191, 3
      %v3193 = vand.u32 %v3191, 7
      %v3194 = vsub.s32 0, %v3193
      %v3195 = vsel %vm3189, %v3194, %v3193
      %vm3196 = vcmp.lt.s32.totalorder %v1270, 0
      %v3197 = vsub.s32 0, %v1270
      %v3198 = vsel %vm3196, %v3197, %v1270
      %v3199 = vshrl.u32 %v3198, 3
      %v3200 = vand.u32 %v3198, 7
      %v3201 = vsub.s32 0, %v3200
      %v3202 = vsel %vm3196, %v3201, %v3200
      %vm3203 = vcmp.lt.s32.totalorder %v1271, 0
      %v3204 = vsub.s32 0, %v1271
      %v3205 = vsel %vm3203, %v3204, %v1271
      %v3206 = vshrl.u32 %v3205, 3
      %v3207 = vand.u32 %v3205, 7
      %v3208 = vsub.s32 0, %v3207
      %v3209 = vsel %vm3203, %v3208, %v3207
      %vm3210 = vcmp.lt.s32.totalorder %v1272, 0
      %v3211 = vsub.s32 0, %v1272
      %v3212 = vsel %vm3210, %v3211, %v1272
      %v3213 = vshrl.u32 %v3212, 3
      %v3214 = vand.u32 %v3212, 7
      %v3215 = vsub.s32 0, %v3214
      %v3216 = vsel %vm3210, %v3215, %v3214
      %vm3217 = vcmp.lt.s32.totalorder %v1273, 0
      %v3218 = vsub.s32 0, %v1273
      %v3219 = vsel %vm3217, %v3218, %v1273
      %v3220 = vshrl.u32 %v3219, 3
      %v3221 = vand.u32 %v3219, 7
      %v3222 = vsub.s32 0, %v3221
      %v3223 = vsel %vm3217, %v3222, %v3221
      %vm3224 = vcmp.lt.s32.totalorder %v1274, 0
      %v3225 = vsub.s32 0, %v1274
      %v3226 = vsel %vm3224, %v3225, %v1274
      %v3227 = vshrl.u32 %v3226, 3
      %v3228 = vand.u32 %v3226, 7
      %v3229 = vsub.s32 0, %v3228
      %v3230 = vsel %vm3224, %v3229, %v3228
      %vm3231 = vcmp.lt.s32.totalorder %v1275, 0
      %v3232 = vsub.s32 0, %v1275
      %v3233 = vsel %vm3231, %v3232, %v1275
      %v3234 = vshrl.u32 %v3233, 3
      %v3235 = vand.u32 %v3233, 7
      %v3236 = vsub.s32 0, %v3235
      %v3237 = vsel %vm3231, %v3236, %v3235
      %vm3238 = vcmp.lt.s32.totalorder %v1276, 0
      %v3239 = vsub.s32 0, %v1276
      %v3240 = vsel %vm3238, %v3239, %v1276
      %v3241 = vshrl.u32 %v3240, 3
      %v3242 = vand.u32 %v3240, 7
      %v3243 = vsub.s32 0, %v3242
      %v3244 = vsel %vm3238, %v3243, %v3242
      %vm3245 = vcmp.lt.s32.totalorder %v1277, 0
      %v3246 = vsub.s32 0, %v1277
      %v3247 = vsel %vm3245, %v3246, %v1277
      %v3248 = vshrl.u32 %v3247, 3
      %v3249 = vand.u32 %v3247, 7
      %v3250 = vsub.s32 0, %v3249
      %v3251 = vsel %vm3245, %v3250, %v3249
      %vm3252 = vcmp.lt.s32.totalorder %v1278, 0
      %v3253 = vsub.s32 0, %v1278
      %v3254 = vsel %vm3252, %v3253, %v1278
      %v3255 = vshrl.u32 %v3254, 3
      %v3256 = vand.u32 %v3254, 7
      %v3257 = vsub.s32 0, %v3256
      %v3258 = vsel %vm3252, %v3257, %v3256
      %vm3259 = vcmp.lt.s32.totalorder %v1279, 0
      %v3260 = vsub.s32 0, %v1279
      %v3261 = vsel %vm3259, %v3260, %v1279
      %v3262 = vshrl.u32 %v3261, 3
      %v3263 = vand.u32 %v3261, 7
      %v3264 = vsub.s32 0, %v3263
      %v3265 = vsel %vm3259, %v3264, %v3263
      %vm3266 = vcmp.lt.s32.totalorder %v1280, 0
      %v3267 = vsub.s32 0, %v1280
      %v3268 = vsel %vm3266, %v3267, %v1280
      %v3269 = vshrl.u32 %v3268, 3
      %v3270 = vand.u32 %v3268, 7
      %v3271 = vsub.s32 0, %v3270
      %v3272 = vsel %vm3266, %v3271, %v3270
      %vm3273 = vcmp.lt.s32.totalorder %v1281, 0
      %v3274 = vsub.s32 0, %v1281
      %v3275 = vsel %vm3273, %v3274, %v1281
      %v3276 = vshrl.u32 %v3275, 3
      %v3277 = vand.u32 %v3275, 7
      %v3278 = vsub.s32 0, %v3277
      %v3279 = vsel %vm3273, %v3278, %v3277
      %vm3280 = vcmp.lt.s32.totalorder %v1282, 0
      %v3281 = vsub.s32 0, %v1282
      %v3282 = vsel %vm3280, %v3281, %v1282
      %v3283 = vshrl.u32 %v3282, 3
      %v3284 = vand.u32 %v3282, 7
      %v3285 = vsub.s32 0, %v3284
      %v3286 = vsel %vm3280, %v3285, %v3284
      %vm3287 = vcmp.lt.s32.totalorder %v1283, 0
      %v3288 = vsub.s32 0, %v1283
      %v3289 = vsel %vm3287, %v3288, %v1283
      %v3290 = vshrl.u32 %v3289, 3
      %v3291 = vand.u32 %v3289, 7
      %v3292 = vsub.s32 0, %v3291
      %v3293 = vsel %vm3287, %v3292, %v3291
      %vm3294 = vcmp.lt.s32.totalorder %v1284, 0
      %v3295 = vsub.s32 0, %v1284
      %v3296 = vsel %vm3294, %v3295, %v1284
      %v3297 = vshrl.u32 %v3296, 3
      %v3298 = vand.u32 %v3296, 7
      %v3299 = vsub.s32 0, %v3298
      %v3300 = vsel %vm3294, %v3299, %v3298
      %vm3301 = vcmp.lt.s32.totalorder %v1285, 0
      %v3302 = vsub.s32 0, %v1285
      %v3303 = vsel %vm3301, %v3302, %v1285
      %v3304 = vshrl.u32 %v3303, 3
      %v3305 = vand.u32 %v3303, 7
      %v3306 = vsub.s32 0, %v3305
      %v3307 = vsel %vm3301, %v3306, %v3305
      %vm3308 = vcmp.lt.s32.totalorder %v1286, 0
      %v3309 = vsub.s32 0, %v1286
      %v3310 = vsel %vm3308, %v3309, %v1286
      %v3311 = vshrl.u32 %v3310, 3
      %v3312 = vand.u32 %v3310, 7
      %v3313 = vsub.s32 0, %v3312
      %v3314 = vsel %vm3308, %v3313, %v3312
      %vm3315 = vcmp.lt.s32.totalorder %v1287, 0
      %v3316 = vsub.s32 0, %v1287
      %v3317 = vsel %vm3315, %v3316, %v1287
      %v3318 = vshrl.u32 %v3317, 3
      %v3319 = vand.u32 %v3317, 7
      %v3320 = vsub.s32 0, %v3319
      %v3321 = vsel %vm3315, %v3320, %v3319
      %vm3322 = vcmp.lt.s32.totalorder %v1288, 0
      %v3323 = vsub.s32 0, %v1288
      %v3324 = vsel %vm3322, %v3323, %v1288
      %v3325 = vshrl.u32 %v3324, 3
      %v3326 = vand.u32 %v3324, 7
      %v3327 = vsub.s32 0, %v3326
      %v3328 = vsel %vm3322, %v3327, %v3326
      %vm3329 = vcmp.lt.s32.totalorder %v1289, 0
      %v3330 = vsub.s32 0, %v1289
      %v3331 = vsel %vm3329, %v3330, %v1289
      %v3332 = vshrl.u32 %v3331, 3
      %v3333 = vand.u32 %v3331, 7
      %v3334 = vsub.s32 0, %v3333
      %v3335 = vsel %vm3329, %v3334, %v3333
      %vm3336 = vcmp.lt.s32.totalorder %v1290, 0
      %v3337 = vsub.s32 0, %v1290
      %v3338 = vsel %vm3336, %v3337, %v1290
      %v3339 = vshrl.u32 %v3338, 3
      %v3340 = vand.u32 %v3338, 7
      %v3341 = vsub.s32 0, %v3340
      %v3342 = vsel %vm3336, %v3341, %v3340
      %vm3343 = vcmp.ne.s32.totalorder %v3125, 0
      %vm3344 = vcmp.ne.s32.totalorder %v3132, 0
      %vm3345 = vcmp.ne.s32.totalorder %v3139, 0
      %vm3346 = vcmp.ne.s32.totalorder %v3146, 0
      %vm3347 = vcmp.ne.s32.totalorder %v3153, 0
      %vm3348 = vcmp.ne.s32.totalorder %v3160, 0
      %vm3349 = vcmp.ne.s32.totalorder %v3167, 0
      %vm3350 = vcmp.ne.s32.totalorder %v3174, 0
      %vm3351 = vcmp.ne.s32.totalorder %v3181, 0
      %vm3352 = vcmp.ne.s32.totalorder %v3188, 0
      %vm3353 = vcmp.ne.s32.totalorder %v3195, 0
      %vm3354 = vcmp.ne.s32.totalorder %v3202, 0
      %vm3355 = vcmp.ne.s32.totalorder %v3209, 0
      %vm3356 = vcmp.ne.s32.totalorder %v3216, 0
      %vm3357 = vcmp.ne.s32.totalorder %v3223, 0
      %vm3358 = vcmp.ne.s32.totalorder %v3230, 0
      %vm3359 = vcmp.ne.s32.totalorder %v3237, 0
      %vm3360 = vcmp.ne.s32.totalorder %v3244, 0
      %vm3361 = vcmp.ne.s32.totalorder %v3251, 0
      %vm3362 = vcmp.ne.s32.totalorder %v3258, 0
      %vm3363 = vcmp.ne.s32.totalorder %v3265, 0
      %vm3364 = vcmp.ne.s32.totalorder %v3272, 0
      %vm3365 = vcmp.ne.s32.totalorder %v3279, 0
      %vm3366 = vcmp.ne.s32.totalorder %v3286, 0
      %vm3367 = vcmp.ne.s32.totalorder %v3293, 0
      %vm3368 = vcmp.ne.s32.totalorder %v3300, 0
      %vm3369 = vcmp.ne.s32.totalorder %v3307, 0
      %vm3370 = vcmp.ne.s32.totalorder %v3314, 0
      %vm3371 = vcmp.ne.s32.totalorder %v3321, 0
      %vm3372 = vcmp.ne.s32.totalorder %v3328, 0
      %vm3373 = vcmp.ne.s32.totalorder %v3335, 0
      %vm3374 = vcmp.ne.s32.totalorder %v3342, 0
      %vm3375 = vcmp.lt.s32.totalorder %v3125, 0
      %vm3376 = vcmp.lt.s32.totalorder %v3132, 0
      %vm3377 = vcmp.lt.s32.totalorder %v3139, 0
      %vm3378 = vcmp.lt.s32.totalorder %v3146, 0
      %vm3379 = vcmp.lt.s32.totalorder %v3153, 0
      %vm3380 = vcmp.lt.s32.totalorder %v3160, 0
      %vm3381 = vcmp.lt.s32.totalorder %v3167, 0
      %vm3382 = vcmp.lt.s32.totalorder %v3174, 0
      %vm3383 = vcmp.lt.s32.totalorder %v3181, 0
      %vm3384 = vcmp.lt.s32.totalorder %v3188, 0
      %vm3385 = vcmp.lt.s32.totalorder %v3195, 0
      %vm3386 = vcmp.lt.s32.totalorder %v3202, 0
      %vm3387 = vcmp.lt.s32.totalorder %v3209, 0
      %vm3388 = vcmp.lt.s32.totalorder %v3216, 0
      %vm3389 = vcmp.lt.s32.totalorder %v3223, 0
      %vm3390 = vcmp.lt.s32.totalorder %v3230, 0
      %vm3391 = vcmp.lt.s32.totalorder %v3237, 0
      %vm3392 = vcmp.lt.s32.totalorder %v3244, 0
      %vm3393 = vcmp.lt.s32.totalorder %v3251, 0
      %vm3394 = vcmp.lt.s32.totalorder %v3258, 0
      %vm3395 = vcmp.lt.s32.totalorder %v3265, 0
      %vm3396 = vcmp.lt.s32.totalorder %v3272, 0
      %vm3397 = vcmp.lt.s32.totalorder %v3279, 0
      %vm3398 = vcmp.lt.s32.totalorder %v3286, 0
      %vm3399 = vcmp.lt.s32.totalorder %v3293, 0
      %vm3400 = vcmp.lt.s32.totalorder %v3300, 0
      %vm3401 = vcmp.lt.s32.totalorder %v3307, 0
      %vm3402 = vcmp.lt.s32.totalorder %v3314, 0
      %vm3403 = vcmp.lt.s32.totalorder %v3321, 0
      %vm3404 = vcmp.lt.s32.totalorder %v3328, 0
      %vm3405 = vcmp.lt.s32.totalorder %v3335, 0
      %vm3406 = vcmp.lt.s32.totalorder %v3342, 0
      %vm3407 = vmand %vm3375, %vm3343
      %vm3408 = vmand %vm3376, %vm3344
      %vm3409 = vmand %vm3377, %vm3345
      %vm3410 = vmand %vm3378, %vm3346
      %vm3411 = vmand %vm3379, %vm3347
      %vm3412 = vmand %vm3380, %vm3348
      %vm3413 = vmand %vm3381, %vm3349
      %vm3414 = vmand %vm3382, %vm3350
      %vm3415 = vmand %vm3383, %vm3351
      %vm3416 = vmand %vm3384, %vm3352
      %vm3417 = vmand %vm3385, %vm3353
      %vm3418 = vmand %vm3386, %vm3354
      %vm3419 = vmand %vm3387, %vm3355
      %vm3420 = vmand %vm3388, %vm3356
      %vm3421 = vmand %vm3389, %vm3357
      %vm3422 = vmand %vm3390, %vm3358
      %vm3423 = vmand %vm3391, %vm3359
      %vm3424 = vmand %vm3392, %vm3360
      %vm3425 = vmand %vm3393, %vm3361
      %vm3426 = vmand %vm3394, %vm3362
      %vm3427 = vmand %vm3395, %vm3363
      %vm3428 = vmand %vm3396, %vm3364
      %vm3429 = vmand %vm3397, %vm3365
      %vm3430 = vmand %vm3398, %vm3366
      %vm3431 = vmand %vm3399, %vm3367
      %vm3432 = vmand %vm3400, %vm3368
      %vm3433 = vmand %vm3401, %vm3369
      %vm3434 = vmand %vm3402, %vm3370
      %vm3435 = vmand %vm3403, %vm3371
      %vm3436 = vmand %vm3404, %vm3372
      %vm3437 = vmand %vm3405, %vm3373
      %vm3438 = vmand %vm3406, %vm3374
      %v3439 = vadd.s32 %v3125, 8
      %v3440 = vadd.s32 %v3132, 8
      %v3441 = vadd.s32 %v3139, 8
      %v3442 = vadd.s32 %v3146, 8
      %v3443 = vadd.s32 %v3153, 8
      %v3444 = vadd.s32 %v3160, 8
      %v3445 = vadd.s32 %v3167, 8
      %v3446 = vadd.s32 %v3174, 8
      %v3447 = vadd.s32 %v3181, 8
      %v3448 = vadd.s32 %v3188, 8
      %v3449 = vadd.s32 %v3195, 8
      %v3450 = vadd.s32 %v3202, 8
      %v3451 = vadd.s32 %v3209, 8
      %v3452 = vadd.s32 %v3216, 8
      %v3453 = vadd.s32 %v3223, 8
      %v3454 = vadd.s32 %v3230, 8
      %v3455 = vadd.s32 %v3237, 8
      %v3456 = vadd.s32 %v3244, 8
      %v3457 = vadd.s32 %v3251, 8
      %v3458 = vadd.s32 %v3258, 8
      %v3459 = vadd.s32 %v3265, 8
      %v3460 = vadd.s32 %v3272, 8
      %v3461 = vadd.s32 %v3279, 8
      %v3462 = vadd.s32 %v3286, 8
      %v3463 = vadd.s32 %v3293, 8
      %v3464 = vadd.s32 %v3300, 8
      %v3465 = vadd.s32 %v3307, 8
      %v3466 = vadd.s32 %v3314, 8
      %v3467 = vadd.s32 %v3321, 8
      %v3468 = vadd.s32 %v3328, 8
      %v3469 = vadd.s32 %v3335, 8
      %v3470 = vadd.s32 %v3342, 8
      %v3471 = vsel %vm3407, %v3439, %v3125
      %v3472 = vsel %vm3408, %v3440, %v3132
      %v3473 = vsel %vm3409, %v3441, %v3139
      %v3474 = vsel %vm3410, %v3442, %v3146
      %v3475 = vsel %vm3411, %v3443, %v3153
      %v3476 = vsel %vm3412, %v3444, %v3160
      %v3477 = vsel %vm3413, %v3445, %v3167
      %v3478 = vsel %vm3414, %v3446, %v3174
      %v3479 = vsel %vm3415, %v3447, %v3181
      %v3480 = vsel %vm3416, %v3448, %v3188
      %v3481 = vsel %vm3417, %v3449, %v3195
      %v3482 = vsel %vm3418, %v3450, %v3202
      %v3483 = vsel %vm3419, %v3451, %v3209
      %v3484 = vsel %vm3420, %v3452, %v3216
      %v3485 = vsel %vm3421, %v3453, %v3223
      %v3486 = vsel %vm3422, %v3454, %v3230
      %v3487 = vsel %vm3423, %v3455, %v3237
      %v3488 = vsel %vm3424, %v3456, %v3244
      %v3489 = vsel %vm3425, %v3457, %v3251
      %v3490 = vsel %vm3426, %v3458, %v3258
      %v3491 = vsel %vm3427, %v3459, %v3265
      %v3492 = vsel %vm3428, %v3460, %v3272
      %v3493 = vsel %vm3429, %v3461, %v3279
      %v3494 = vsel %vm3430, %v3462, %v3286
      %v3495 = vsel %vm3431, %v3463, %v3293
      %v3496 = vsel %vm3432, %v3464, %v3300
      %v3497 = vsel %vm3433, %v3465, %v3307
      %v3498 = vsel %vm3434, %v3466, %v3314
      %v3499 = vsel %vm3435, %v3467, %v3321
      %v3500 = vsel %vm3436, %v3468, %v3328
      %v3501 = vsel %vm3437, %v3469, %v3335
      %v3502 = vsel %vm3438, %v3470, %v3342
      %vm3503 = vcmp.ne.s32.totalorder %v3471, 0
      %vm3504 = vcmp.ne.s32.totalorder %v3472, 0
      %vm3505 = vcmp.ne.s32.totalorder %v3473, 0
      %vm3506 = vcmp.ne.s32.totalorder %v3474, 0
      %vm3507 = vcmp.ne.s32.totalorder %v3475, 0
      %vm3508 = vcmp.ne.s32.totalorder %v3476, 0
      %vm3509 = vcmp.ne.s32.totalorder %v3477, 0
      %vm3510 = vcmp.ne.s32.totalorder %v3478, 0
      %vm3511 = vcmp.ne.s32.totalorder %v3479, 0
      %vm3512 = vcmp.ne.s32.totalorder %v3480, 0
      %vm3513 = vcmp.ne.s32.totalorder %v3481, 0
      %vm3514 = vcmp.ne.s32.totalorder %v3482, 0
      %vm3515 = vcmp.ne.s32.totalorder %v3483, 0
      %vm3516 = vcmp.ne.s32.totalorder %v3484, 0
      %vm3517 = vcmp.ne.s32.totalorder %v3485, 0
      %vm3518 = vcmp.ne.s32.totalorder %v3486, 0
      %vm3519 = vcmp.ne.s32.totalorder %v3487, 0
      %vm3520 = vcmp.ne.s32.totalorder %v3488, 0
      %vm3521 = vcmp.ne.s32.totalorder %v3489, 0
      %vm3522 = vcmp.ne.s32.totalorder %v3490, 0
      %vm3523 = vcmp.ne.s32.totalorder %v3491, 0
      %vm3524 = vcmp.ne.s32.totalorder %v3492, 0
      %vm3525 = vcmp.ne.s32.totalorder %v3493, 0
      %vm3526 = vcmp.ne.s32.totalorder %v3494, 0
      %vm3527 = vcmp.ne.s32.totalorder %v3495, 0
      %vm3528 = vcmp.ne.s32.totalorder %v3496, 0
      %vm3529 = vcmp.ne.s32.totalorder %v3497, 0
      %vm3530 = vcmp.ne.s32.totalorder %v3498, 0
      %vm3531 = vcmp.ne.s32.totalorder %v3499, 0
      %vm3532 = vcmp.ne.s32.totalorder %v3500, 0
      %vm3533 = vcmp.ne.s32.totalorder %v3501, 0
      %vm3534 = vcmp.ne.s32.totalorder %v3502, 0
      %v3535 = vsel %vm3503, %v3118, 0.0
      %v3536 = vsel %vm3504, %v3117, 0.0
      %v3537 = vsel %vm3505, %v3116, 0.0
      %v3538 = vsel %vm3506, %v3115, 0.0
      %v3539 = vsel %vm3507, %v3114, 0.0
      %v3540 = vsel %vm3508, %v3113, 0.0
      %v3541 = vsel %vm3509, %v3112, 0.0
      %v3542 = vsel %vm3510, %v3111, 0.0
      %v3543 = vsel %vm3511, %v3110, 0.0
      %v3544 = vsel %vm3512, %v3109, 0.0
      %v3545 = vsel %vm3513, %v3108, 0.0
      %v3546 = vsel %vm3514, %v3107, 0.0
      %v3547 = vsel %vm3515, %v3106, 0.0
      %v3548 = vsel %vm3516, %v3105, 0.0
      %v3549 = vsel %vm3517, %v3104, 0.0
      %v3550 = vsel %vm3518, %v3103, 0.0
      %v3551 = vsel %vm3519, %v3102, 0.0
      %v3552 = vsel %vm3520, %v3101, 0.0
      %v3553 = vsel %vm3521, %v3100, 0.0
      %v3554 = vsel %vm3522, %v3099, 0.0
      %v3555 = vsel %vm3523, %v3098, 0.0
      %v3556 = vsel %vm3524, %v3097, 0.0
      %v3557 = vsel %vm3525, %v3096, 0.0
      %v3558 = vsel %vm3526, %v3095, 0.0
      %v3559 = vsel %vm3527, %v3094, 0.0
      %v3560 = vsel %vm3528, %v3093, 0.0
      %v3561 = vsel %vm3529, %v3092, 0.0
      %v3562 = vsel %vm3530, %v3091, 0.0
      %v3563 = vsel %vm3531, %v3090, 0.0
      %v3564 = vsel %vm3532, %v3089, 0.0
      %v3565 = vsel %vm3533, %v3088, 0.0
      %v3566 = vsel %vm3534, %v3087, 0.0
      %v3567 = vadd.f32 %v3535, %v2960
      %v3568 = vadd.f32 %v3536, %v2963
      %v3569 = vadd.f32 %v3537, %v2966
      %v3570 = vadd.f32 %v3538, %v2969
      %v3571 = vadd.f32 %v3539, %v2972
      %v3572 = vadd.f32 %v3540, %v2975
      %v3573 = vadd.f32 %v3541, %v2978
      %v3574 = vadd.f32 %v3542, %v2981
      %v3575 = vadd.f32 %v3543, %v2984
      %v3576 = vadd.f32 %v3544, %v2987
      %v3577 = vadd.f32 %v3545, %v2990
      %v3578 = vadd.f32 %v3546, %v2993
      %v3579 = vadd.f32 %v3547, %v2996
      %v3580 = vadd.f32 %v3548, %v2999
      %v3581 = vadd.f32 %v3549, %v3002
      %v3582 = vadd.f32 %v3550, %v3005
      %v3583 = vadd.f32 %v3551, %v3008
      %v3584 = vadd.f32 %v3552, %v3011
      %v3585 = vadd.f32 %v3553, %v3014
      %v3586 = vadd.f32 %v3554, %v3017
      %v3587 = vadd.f32 %v3555, %v3020
      %v3588 = vadd.f32 %v3556, %v3023
      %v3589 = vadd.f32 %v3557, %v3026
      %v3590 = vadd.f32 %v3558, %v3029
      %v3591 = vadd.f32 %v3559, %v3032
      %v3592 = vadd.f32 %v3560, %v3035
      %v3593 = vadd.f32 %v3561, %v3038
      %v3594 = vadd.f32 %v3562, %v3041
      %v3595 = vadd.f32 %v3563, %v3044
      %v3596 = vadd.f32 %v3564, %v3047
      %v3597 = vadd.f32 %v3565, %v3050
      %v3598 = vadd.f32 %v3566, %v3053
      %v3599 = vadd.f32 %v3567, %v2831
      %v3600 = vadd.f32 %v3568, %v2834
      %v3601 = vadd.f32 %v3569, %v2837
      %v3602 = vadd.f32 %v3570, %v2840
      %v3603 = vadd.f32 %v3571, %v2843
      %v3604 = vadd.f32 %v3572, %v2846
      %v3605 = vadd.f32 %v3573, %v2849
      %v3606 = vadd.f32 %v3574, %v2852
      %v3607 = vadd.f32 %v3575, %v2855
      %v3608 = vadd.f32 %v3576, %v2858
      %v3609 = vadd.f32 %v3577, %v2861
      %v3610 = vadd.f32 %v3578, %v2864
      %v3611 = vadd.f32 %v3579, %v2867
      %v3612 = vadd.f32 %v3580, %v2870
      %v3613 = vadd.f32 %v3581, %v2873
      %v3614 = vadd.f32 %v3582, %v2876
      %v3615 = vadd.f32 %v3583, %v2879
      %v3616 = vadd.f32 %v3584, %v2882
      %v3617 = vadd.f32 %v3585, %v2885
      %v3618 = vadd.f32 %v3586, %v2888
      %v3619 = vadd.f32 %v3587, %v2891
      %v3620 = vadd.f32 %v3588, %v2894
      %v3621 = vadd.f32 %v3589, %v2897
      %v3622 = vadd.f32 %v3590, %v2900
      %v3623 = vadd.f32 %v3591, %v2903
      %v3624 = vadd.f32 %v3592, %v2906
      %v3625 = vadd.f32 %v3593, %v2909
      %v3626 = vadd.f32 %v3594, %v2912
      %v3627 = vadd.f32 %v3595, %v2915
      %v3628 = vadd.f32 %v3596, %v2918
      %v3629 = vadd.f32 %v3597, %v2921
      %v3630 = vadd.f32 %v3598, %v2924
      %v3631 = vperm.slane %v2540, 0
      %v3632 = vadd.f32 %v3599, %v3631
      %v3633 = vadd.f32 %v3600, %v3631
      %v3634 = vadd.f32 %v3601, %v3631
      %v3635 = vadd.f32 %v3602, %v3631
      %v3636 = vadd.f32 %v3603, %v3631
      %v3637 = vadd.f32 %v3604, %v3631
      %v3638 = vadd.f32 %v3605, %v3631
      %v3639 = vadd.f32 %v3606, %v3631
      %v3640 = vadd.f32 %v3607, %v3631
      %v3641 = vadd.f32 %v3608, %v3631
      %v3642 = vadd.f32 %v3609, %v3631
      %v3643 = vadd.f32 %v3610, %v3631
      %v3644 = vadd.f32 %v3611, %v3631
      %v3645 = vadd.f32 %v3612, %v3631
      %v3646 = vadd.f32 %v3613, %v3631
      %v3647 = vadd.f32 %v3614, %v3631
      %v3648 = vadd.f32 %v3615, %v3631
      %v3649 = vadd.f32 %v3616, %v3631
      %v3650 = vadd.f32 %v3617, %v3631
      %v3651 = vadd.f32 %v3618, %v3631
      %v3652 = vadd.f32 %v3619, %v3631
      %v3653 = vadd.f32 %v3620, %v3631
      %v3654 = vadd.f32 %v3621, %v3631
      %v3655 = vadd.f32 %v3622, %v3631
      %v3656 = vadd.f32 %v3623, %v3631
      %v3657 = vadd.f32 %v3624, %v3631
      %v3658 = vadd.f32 %v3625, %v3631
      %v3659 = vadd.f32 %v3626, %v3631
      %v3660 = vadd.f32 %v3627, %v3631
      %v3661 = vadd.f32 %v3628, %v3631
      %v3662 = vadd.f32 %v3629, %v3631
      %v3663 = vadd.f32 %v3630, %v3631
      %v3664 = vmax.f32 %v3632, 0.0
      %v3665 = vmax.f32 %v3633, 0.0
      %v3666 = vmax.f32 %v3634, 0.0
      %v3667 = vmax.f32 %v3635, 0.0
      %v3668 = vmax.f32 %v3636, 0.0
      %v3669 = vmax.f32 %v3637, 0.0
      %v3670 = vmax.f32 %v3638, 0.0
      %v3671 = vmax.f32 %v3639, 0.0
      %v3672 = vmax.f32 %v3640, 0.0
      %v3673 = vmax.f32 %v3641, 0.0
      %v3674 = vmax.f32 %v3642, 0.0
      %v3675 = vmax.f32 %v3643, 0.0
      %v3676 = vmax.f32 %v3644, 0.0
      %v3677 = vmax.f32 %v3645, 0.0
      %v3678 = vmax.f32 %v3646, 0.0
      %v3679 = vmax.f32 %v3647, 0.0
      %v3680 = vmax.f32 %v3648, 0.0
      %v3681 = vmax.f32 %v3649, 0.0
      %v3682 = vmax.f32 %v3650, 0.0
      %v3683 = vmax.f32 %v3651, 0.0
      %v3684 = vmax.f32 %v3652, 0.0
      %v3685 = vmax.f32 %v3653, 0.0
      %v3686 = vmax.f32 %v3654, 0.0
      %v3687 = vmax.f32 %v3655, 0.0
      %v3688 = vmax.f32 %v3656, 0.0
      %v3689 = vmax.f32 %v3657, 0.0
      %v3690 = vmax.f32 %v3658, 0.0
      %v3691 = vmax.f32 %v3659, 0.0
      %v3692 = vmax.f32 %v3660, 0.0
      %v3693 = vmax.f32 %v3661, 0.0
      %v3694 = vmax.f32 %v3662, 0.0
      %v3695 = vmax.f32 %v3663, 0.0
      %3696 = vst [vmem:[#allocation3] sm:$0xff] %v3664
      %3697 = vst [vmem:[#allocation3 + $0x8] sm:$0xff] %v3665
      %3698 = vst [vmem:[#allocation3 + $0x10] sm:$0xff] %v3666
      %3699 = vst [vmem:[#allocation3 + $0x18] sm:$0xff] %v3667
      %3700 = vst [vmem:[#allocation3 + $0x20] sm:$0xff] %v3668
      %3701 = vst [vmem:[#allocation3 + $0x28] sm:$0xff] %v3669
      %3702 = vst [vmem:[#allocation3 + $0x30] sm:$0xff] %v3670
      %3703 = vst [vmem:[#allocation3 + $0x38] sm:$0xff] %v3671
      %3704 = vst [vmem:[#allocation3 + $0x40] sm:$0xff] %v3672
      %3705 = vst [vmem:[#allocation3 + $0x48] sm:$0xff] %v3673
      %3706 = vst [vmem:[#allocation3 + $0x50] sm:$0xff] %v3674
      %3707 = vst [vmem:[#allocation3 + $0x58] sm:$0xff] %v3675
      %3708 = vst [vmem:[#allocation3 + $0x60] sm:$0xff] %v3676
      %3709 = vst [vmem:[#allocation3 + $0x68] sm:$0xff] %v3677
      %3710 = vst [vmem:[#allocation3 + $0x70] sm:$0xff] %v3678
      %3711 = vst [vmem:[#allocation3 + $0x78] sm:$0xff] %v3679
      %3712 = vst [vmem:[#allocation3 + $0x80] sm:$0xff] %v3680
      %3713 = vst [vmem:[#allocation3 + $0x88] sm:$0xff] %v3681
      %3714 = vst [vmem:[#allocation3 + $0x90] sm:$0xff] %v3682
      %3715 = vst [vmem:[#allocation3 + $0x98] sm:$0xff] %v3683
      %3716 = vst [vmem:[#allocation3 + $0xa0] sm:$0xff] %v3684
      %3717 = vst [vmem:[#allocation3 + $0xa8] sm:$0xff] %v3685
      %3718 = vst [vmem:[#allocation3 + $0xb0] sm:$0xff] %v3686
      %3719 = vst [vmem:[#allocation3 + $0xb8] sm:$0xff] %v3687
      %3720 = vst [vmem:[#allocation3 + $0xc0] sm:$0xff] %v3688
      %3721 = vst [vmem:[#allocation3 + $0xc8] sm:$0xff] %v3689
      %3722 = vst [vmem:[#allocation3 + $0xd0] sm:$0xff] %v3690
      %3723 = vst [vmem:[#allocation3 + $0xd8] sm:$0xff] %v3691
      %3724 = vst [vmem:[#allocation3 + $0xe0] sm:$0xff] %v3692
      %3725 = vst [vmem:[#allocation3 + $0xe8] sm:$0xff] %v3693
      %3726 = vst [vmem:[#allocation3 + $0xf0] sm:$0xff] %v3694
      %3727 = vst [vmem:[#allocation3 + $0xf8] sm:$0xff] %v3695
      %v3728 = vld [vmem:[%s3 + $0x2] sm:$0x1]
      %v3729 = vld [vmem:[#allocation3] ss:$2 sm:$0xff]
      %s3730 = scalar_lea.vmem [#allocation3], 16
      %v3731 = vld [vmem:[%s3730] ss:$2 sm:$0xff]
      %s3732 = scalar_lea.vmem [#allocation3], 32
      %v3733 = vld [vmem:[%s3732] ss:$2 sm:$0xff]
      %s3734 = scalar_lea.vmem [#allocation3], 48
      %v3735 = vld [vmem:[%s3734] ss:$2 sm:$0xff]
      %s3736 = scalar_lea.vmem [#allocation3], 64
      %v3737 = vld [vmem:[%s3736] ss:$2 sm:$0xff]
      %s3738 = scalar_lea.vmem [#allocation3], 80
      %v3739 = vld [vmem:[%s3738] ss:$2 sm:$0xff]
      %s3740 = scalar_lea.vmem [#allocation3], 96
      %v3741 = vld [vmem:[%s3740] ss:$2 sm:$0xff]
      %s3742 = scalar_lea.vmem [#allocation3], 112
      %v3743 = vld [vmem:[%s3742] ss:$2 sm:$0xff]
      %s3744 = scalar_lea.vmem [#allocation3], 128
      %v3745 = vld [vmem:[%s3744] ss:$2 sm:$0xff]
      %s3746 = scalar_lea.vmem [#allocation3], 144
      %v3747 = vld [vmem:[%s3746] ss:$2 sm:$0xff]
      %s3748 = scalar_lea.vmem [#allocation3], 160
      %v3749 = vld [vmem:[%s3748] ss:$2 sm:$0xff]
      %s3750 = scalar_lea.vmem [#allocation3], 176
      %v3751 = vld [vmem:[%s3750] ss:$2 sm:$0xff]
      %s3752 = scalar_lea.vmem [#allocation3], 192
      %v3753 = vld [vmem:[%s3752] ss:$2 sm:$0xff]
      %s3754 = scalar_lea.vmem [#allocation3], 208
      %v3755 = vld [vmem:[%s3754] ss:$2 sm:$0xff]
      %s3756 = scalar_lea.vmem [#allocation3], 224
      %v3757 = vld [vmem:[%s3756] ss:$2 sm:$0xff]
      %s3758 = scalar_lea.vmem [#allocation3], 240
      %v3759 = vld [vmem:[%s3758] ss:$2 sm:$0xff]
      %s3760 = scalar_lea.vmem [#allocation3], 1
      %v3761 = vld [vmem:[%s3760] ss:$2 sm:$0xff]
      %s3762 = scalar_lea.vmem [#allocation3], 17
      %v3763 = vld [vmem:[%s3762] ss:$2 sm:$0xff]
      %s3764 = scalar_lea.vmem [#allocation3], 33
      %v3765 = vld [vmem:[%s3764] ss:$2 sm:$0xff]
      %s3766 = scalar_lea.vmem [#allocation3], 49
      %v3767 = vld [vmem:[%s3766] ss:$2 sm:$0xff]
      %s3768 = scalar_lea.vmem [#allocation3], 65
      %v3769 = vld [vmem:[%s3768] ss:$2 sm:$0xff]
      %s3770 = scalar_lea.vmem [#allocation3], 81
      %v3771 = vld [vmem:[%s3770] ss:$2 sm:$0xff]
      %s3772 = scalar_lea.vmem [#allocation3], 97
      %v3773 = vld [vmem:[%s3772] ss:$2 sm:$0xff]
      %s3774 = scalar_lea.vmem [#allocation3], 113
      %v3775 = vld [vmem:[%s3774] ss:$2 sm:$0xff]
      %s3776 = scalar_lea.vmem [#allocation3], 129
      %v3777 = vld [vmem:[%s3776] ss:$2 sm:$0xff]
      %s3778 = scalar_lea.vmem [#allocation3], 145
      %v3779 = vld [vmem:[%s3778] ss:$2 sm:$0xff]
      %s3780 = scalar_lea.vmem [#allocation3], 161
      %v3781 = vld [vmem:[%s3780] ss:$2 sm:$0xff]
      %s3782 = scalar_lea.vmem [#allocation3], 177
      %v3783 = vld [vmem:[%s3782] ss:$2 sm:$0xff]
      %s3784 = scalar_lea.vmem [#allocation3], 193
      %v3785 = vld [vmem:[%s3784] ss:$2 sm:$0xff]
      %s3786 = scalar_lea.vmem [#allocation3], 209
      %v3787 = vld [vmem:[%s3786] ss:$2 sm:$0xff]
      %s3788 = scalar_lea.vmem [#allocation3], 225
      %v3789 = vld [vmem:[%s3788] ss:$2 sm:$0xff]
      %s3790 = scalar_lea.vmem [#allocation3], 241
      %v3791 = vld [vmem:[%s3790] ss:$2 sm:$0xff]
      %v3792 = vld [vmem:[%s1 + $0x30] sm:$0xff]
      %v3793 = vld [vmem:[%s1 + $0x70] sm:$0xff]
      %v3794 = vld [vmem:[%s1 + $0xb0] sm:$0xff]
      %v3795 = vld [vmem:[%s1 + $0xf0] sm:$0xff]
      %v3796 = vld [vmem:[%s1 + $0x130] sm:$0xff]
      %v3797 = vld [vmem:[%s1 + $0x170] sm:$0xff]
      %v3798 = vld [vmem:[%s1 + $0x1b0] sm:$0xff]
      %v3799 = vld [vmem:[%s1 + $0x1f0] sm:$0xff]
      %v3800 = vld [vmem:[%s1 + $0x230] sm:$0xff]
      %v3801 = vld [vmem:[%s1 + $0x270] sm:$0xff]
      %v3802 = vld [vmem:[%s1 + $0x2b0] sm:$0xff]
      %v3803 = vld [vmem:[%s1 + $0x2f0] sm:$0xff]
      %v3804 = vld [vmem:[%s1 + $0x330] sm:$0xff]
      %v3805 = vld [vmem:[%s1 + $0x370] sm:$0xff]
      %v3806 = vld [vmem:[%s1 + $0x3b0] sm:$0xff]
      %v3807 = vld [vmem:[%s1 + $0x3f0] sm:$0xff]
      %3808 = vmatpush.msra.mxu0 %v3807
      %3809 = vmatpush.msra.mxu0 %v3806
      %3810 = vmatpush.msra.mxu0 %v3805
      %3811 = vmatpush.msra.mxu0 %v3804
      %3812 = vmatpush.msra.mxu0 %v3803
      %3813 = vmatpush.msra.mxu0 %v3802
      %3814 = vmatpush.msra.mxu0 %v3801
      %3815 = vmatpush.msra.mxu0 %v3800
      %3816 = vmatpush.msra.mxu0 %v3799
      %3817 = vmatpush.msra.mxu0 %v3798
      %3818 = vmatpush.msra.mxu0 %v3797
      %3819 = vmatpush.msra.mxu0 %v3796
      %3820 = vmatpush.msra.mxu0 %v3795
      %3821 = vmatpush.msra.mxu0 %v3794
      %3822 = vmatpush.msra.mxu0 %v3793
      %3823 = vmatpush.msra.mxu0 %v3792
      %3824 = vmatmul.f32.gmra.mxu0 %v3761
      %v3825 = vpop.f32.mrf.mxu0
      %v3826 = vadd.f32 0.0, %v3825
      %3827 = vmatmul.f32.gmra.mxu0 %v3763
      %v3828 = vpop.f32.mrf.mxu0
      %v3829 = vadd.f32 0.0, %v3828
      %3830 = vmatmul.f32.gmra.mxu0 %v3765
      %v3831 = vpop.f32.mrf.mxu0
      %v3832 = vadd.f32 0.0, %v3831
      %3833 = vmatmul.f32.gmra.mxu0 %v3767
      %v3834 = vpop.f32.mrf.mxu0
      %v3835 = vadd.f32 0.0, %v3834
      %3836 = vmatmul.f32.gmra.mxu0 %v3769
      %v3837 = vpop.f32.mrf.mxu0
      %v3838 = vadd.f32 0.0, %v3837
      %3839 = vmatmul.f32.gmra.mxu0 %v3771
      %v3840 = vpop.f32.mrf.mxu0
      %v3841 = vadd.f32 0.0, %v3840
      %3842 = vmatmul.f32.gmra.mxu0 %v3773
      %v3843 = vpop.f32.mrf.mxu0
      %v3844 = vadd.f32 0.0, %v3843
      %3845 = vmatmul.f32.gmra.mxu0 %v3775
      %v3846 = vpop.f32.mrf.mxu0
      %v3847 = vadd.f32 0.0, %v3846
      %3848 = vmatmul.f32.gmra.mxu0 %v3777
      %v3849 = vpop.f32.mrf.mxu0
      %v3850 = vadd.f32 0.0, %v3849
      %3851 = vmatmul.f32.gmra.mxu0 %v3779
      %v3852 = vpop.f32.mrf.mxu0
      %v3853 = vadd.f32 0.0, %v3852
      %3854 = vmatmul.f32.gmra.mxu0 %v3781
      %v3855 = vpop.f32.mrf.mxu0
      %v3856 = vadd.f32 0.0, %v3855
      %3857 = vmatmul.f32.gmra.mxu0 %v3783
      %v3858 = vpop.f32.mrf.mxu0
      %v3859 = vadd.f32 0.0, %v3858
      %3860 = vmatmul.f32.gmra.mxu0 %v3785
      %v3861 = vpop.f32.mrf.mxu0
      %v3862 = vadd.f32 0.0, %v3861
      %3863 = vmatmul.f32.gmra.mxu0 %v3787
      %v3864 = vpop.f32.mrf.mxu0
      %v3865 = vadd.f32 0.0, %v3864
      %3866 = vmatmul.f32.gmra.mxu0 %v3789
      %v3867 = vpop.f32.mrf.mxu0
      %v3868 = vadd.f32 0.0, %v3867
      %3869 = vmatmul.f32.gmra.mxu0 %v3791
      %v3870 = vpop.f32.mrf.mxu0
      %v3871 = vadd.f32 0.0, %v3870
      %3872 = vdwg.mxu0
      %v3873 = vld [vmem:[%s1 + $0x38] sm:$0xff]
      %v3874 = vld [vmem:[%s1 + $0x78] sm:$0xff]
      %v3875 = vld [vmem:[%s1 + $0xb8] sm:$0xff]
      %v3876 = vld [vmem:[%s1 + $0xf8] sm:$0xff]
      %v3877 = vld [vmem:[%s1 + $0x138] sm:$0xff]
      %v3878 = vld [vmem:[%s1 + $0x178] sm:$0xff]
      %v3879 = vld [vmem:[%s1 + $0x1b8] sm:$0xff]
      %v3880 = vld [vmem:[%s1 + $0x1f8] sm:$0xff]
      %v3881 = vld [vmem:[%s1 + $0x238] sm:$0xff]
      %v3882 = vld [vmem:[%s1 + $0x278] sm:$0xff]
      %v3883 = vld [vmem:[%s1 + $0x2b8] sm:$0xff]
      %v3884 = vld [vmem:[%s1 + $0x2f8] sm:$0xff]
      %v3885 = vld [vmem:[%s1 + $0x338] sm:$0xff]
      %v3886 = vld [vmem:[%s1 + $0x378] sm:$0xff]
      %v3887 = vld [vmem:[%s1 + $0x3b8] sm:$0xff]
      %v3888 = vld [vmem:[%s1 + $0x3f8] sm:$0xff]
      %3889 = vmatpush.msra.mxu0 %v3888
      %3890 = vmatpush.msra.mxu0 %v3887
      %3891 = vmatpush.msra.mxu0 %v3886
      %3892 = vmatpush.msra.mxu0 %v3885
      %3893 = vmatpush.msra.mxu0 %v3884
      %3894 = vmatpush.msra.mxu0 %v3883
      %3895 = vmatpush.msra.mxu0 %v3882
      %3896 = vmatpush.msra.mxu0 %v3881
      %3897 = vmatpush.msra.mxu0 %v3880
      %3898 = vmatpush.msra.mxu0 %v3879
      %3899 = vmatpush.msra.mxu0 %v3878
      %3900 = vmatpush.msra.mxu0 %v3877
      %3901 = vmatpush.msra.mxu0 %v3876
      %3902 = vmatpush.msra.mxu0 %v3875
      %3903 = vmatpush.msra.mxu0 %v3874
      %3904 = vmatpush.msra.mxu0 %v3873
      %3905 = vmatmul.f32.gmra.mxu0 %v3729
      %v3906 = vpop.f32.mrf.mxu0
      %v3907 = vadd.f32 0.0, %v3906
      %3908 = vmatmul.f32.gmra.mxu0 %v3731
      %v3909 = vpop.f32.mrf.mxu0
      %v3910 = vadd.f32 0.0, %v3909
      %3911 = vmatmul.f32.gmra.mxu0 %v3733
      %v3912 = vpop.f32.mrf.mxu0
      %v3913 = vadd.f32 0.0, %v3912
      %3914 = vmatmul.f32.gmra.mxu0 %v3735
      %v3915 = vpop.f32.mrf.mxu0
      %v3916 = vadd.f32 0.0, %v3915
      %3917 = vmatmul.f32.gmra.mxu0 %v3737
      %v3918 = vpop.f32.mrf.mxu0
      %v3919 = vadd.f32 0.0, %v3918
      %3920 = vmatmul.f32.gmra.mxu0 %v3739
      %v3921 = vpop.f32.mrf.mxu0
      %v3922 = vadd.f32 0.0, %v3921
      %3923 = vmatmul.f32.gmra.mxu0 %v3741
      %v3924 = vpop.f32.mrf.mxu0
      %v3925 = vadd.f32 0.0, %v3924
      %3926 = vmatmul.f32.gmra.mxu0 %v3743
      %v3927 = vpop.f32.mrf.mxu0
      %v3928 = vadd.f32 0.0, %v3927
      %3929 = vmatmul.f32.gmra.mxu0 %v3745
      %v3930 = vpop.f32.mrf.mxu0
      %v3931 = vadd.f32 0.0, %v3930
      %3932 = vmatmul.f32.gmra.mxu0 %v3747
      %v3933 = vpop.f32.mrf.mxu0
      %v3934 = vadd.f32 0.0, %v3933
      %3935 = vmatmul.f32.gmra.mxu0 %v3749
      %v3936 = vpop.f32.mrf.mxu0
      %v3937 = vadd.f32 0.0, %v3936
      %3938 = vmatmul.f32.gmra.mxu0 %v3751
      %v3939 = vpop.f32.mrf.mxu0
      %v3940 = vadd.f32 0.0, %v3939
      %3941 = vmatmul.f32.gmra.mxu0 %v3753
      %v3942 = vpop.f32.mrf.mxu0
      %v3943 = vadd.f32 0.0, %v3942
      %3944 = vmatmul.f32.gmra.mxu0 %v3755
      %v3945 = vpop.f32.mrf.mxu0
      %v3946 = vadd.f32 0.0, %v3945
      %3947 = vmatmul.f32.gmra.mxu0 %v3757
      %v3948 = vpop.f32.mrf.mxu0
      %v3949 = vadd.f32 0.0, %v3948
      %3950 = vmatmul.f32.gmra.mxu0 %v3759
      %v3951 = vpop.f32.mrf.mxu0
      %v3952 = vadd.f32 0.0, %v3951
      %3953 = vdwg.mxu0
      %v3954 = vrot.slane %v3826, 7
      %v3955 = vrot.slane %v3829, 7
      %v3956 = vrot.slane %v3832, 7
      %v3957 = vrot.slane %v3835, 7
      %v3958 = vrot.slane %v3838, 7
      %v3959 = vrot.slane %v3841, 7
      %v3960 = vrot.slane %v3844, 7
      %v3961 = vrot.slane %v3847, 7
      %v3962 = vrot.slane %v3850, 7
      %v3963 = vrot.slane %v3853, 7
      %v3964 = vrot.slane %v3856, 7
      %v3965 = vrot.slane %v3859, 7
      %v3966 = vrot.slane %v3862, 7
      %v3967 = vrot.slane %v3865, 7
      %v3968 = vrot.slane %v3868, 7
      %v3969 = vrot.slane %v3871, 7
      %v3970 = vsel %vm1195, %v3968, %v3969
      %v3971 = vsel %vm1195, %v3967, %v3968
      %v3972 = vsel %vm1195, %v3966, %v3967
      %v3973 = vsel %vm1195, %v3965, %v3966
      %v3974 = vsel %vm1195, %v3964, %v3965
      %v3975 = vsel %vm1195, %v3963, %v3964
      %v3976 = vsel %vm1195, %v3962, %v3963
      %v3977 = vsel %vm1195, %v3961, %v3962
      %v3978 = vsel %vm1195, %v3960, %v3961
      %v3979 = vsel %vm1195, %v3959, %v3960
      %v3980 = vsel %vm1195, %v3958, %v3959
      %v3981 = vsel %vm1195, %v3957, %v3958
      %v3982 = vsel %vm1195, %v3956, %v3957
      %v3983 = vsel %vm1195, %v3955, %v3956
      %v3984 = vsel %vm1195, %v3954, %v3955
      %v3985 = vsel %vm1195, %v3969, %v3954
      %vm3986 = vcmp.lt.s32.totalorder %v1194, 0
      %v3987 = vsub.s32 0, %v1194
      %v3988 = vsel %vm3986, %v3987, %v1194
      %v3989 = vshrl.u32 %v3988, 2
      %v3990 = vand.u32 %v3988, 3
      %v3991 = vsub.s32 0, %v3990
      %v3992 = vsel %vm3986, %v3991, %v3990
      %vm3993 = vcmp.lt.s32.totalorder %v1260, 0
      %v3994 = vsub.s32 0, %v1260
      %v3995 = vsel %vm3993, %v3994, %v1260
      %v3996 = vshrl.u32 %v3995, 2
      %v3997 = vand.u32 %v3995, 3
      %v3998 = vsub.s32 0, %v3997
      %v3999 = vsel %vm3993, %v3998, %v3997
      %vm4000 = vcmp.lt.s32.totalorder %v1261, 0
      %v4001 = vsub.s32 0, %v1261
      %v4002 = vsel %vm4000, %v4001, %v1261
      %v4003 = vshrl.u32 %v4002, 2
      %v4004 = vand.u32 %v4002, 3
      %v4005 = vsub.s32 0, %v4004
      %v4006 = vsel %vm4000, %v4005, %v4004
      %vm4007 = vcmp.lt.s32.totalorder %v1262, 0
      %v4008 = vsub.s32 0, %v1262
      %v4009 = vsel %vm4007, %v4008, %v1262
      %v4010 = vshrl.u32 %v4009, 2
      %v4011 = vand.u32 %v4009, 3
      %v4012 = vsub.s32 0, %v4011
      %v4013 = vsel %vm4007, %v4012, %v4011
      %vm4014 = vcmp.lt.s32.totalorder %v1263, 0
      %v4015 = vsub.s32 0, %v1263
      %v4016 = vsel %vm4014, %v4015, %v1263
      %v4017 = vshrl.u32 %v4016, 2
      %v4018 = vand.u32 %v4016, 3
      %v4019 = vsub.s32 0, %v4018
      %v4020 = vsel %vm4014, %v4019, %v4018
      %vm4021 = vcmp.lt.s32.totalorder %v1264, 0
      %v4022 = vsub.s32 0, %v1264
      %v4023 = vsel %vm4021, %v4022, %v1264
      %v4024 = vshrl.u32 %v4023, 2
      %v4025 = vand.u32 %v4023, 3
      %v4026 = vsub.s32 0, %v4025
      %v4027 = vsel %vm4021, %v4026, %v4025
      %vm4028 = vcmp.lt.s32.totalorder %v1265, 0
      %v4029 = vsub.s32 0, %v1265
      %v4030 = vsel %vm4028, %v4029, %v1265
      %v4031 = vshrl.u32 %v4030, 2
      %v4032 = vand.u32 %v4030, 3
      %v4033 = vsub.s32 0, %v4032
      %v4034 = vsel %vm4028, %v4033, %v4032
      %vm4035 = vcmp.lt.s32.totalorder %v1266, 0
      %v4036 = vsub.s32 0, %v1266
      %v4037 = vsel %vm4035, %v4036, %v1266
      %v4038 = vshrl.u32 %v4037, 2
      %v4039 = vand.u32 %v4037, 3
      %v4040 = vsub.s32 0, %v4039
      %v4041 = vsel %vm4035, %v4040, %v4039
      %vm4042 = vcmp.lt.s32.totalorder %v1267, 0
      %v4043 = vsub.s32 0, %v1267
      %v4044 = vsel %vm4042, %v4043, %v1267
      %v4045 = vshrl.u32 %v4044, 2
      %v4046 = vand.u32 %v4044, 3
      %v4047 = vsub.s32 0, %v4046
      %v4048 = vsel %vm4042, %v4047, %v4046
      %vm4049 = vcmp.lt.s32.totalorder %v1268, 0
      %v4050 = vsub.s32 0, %v1268
      %v4051 = vsel %vm4049, %v4050, %v1268
      %v4052 = vshrl.u32 %v4051, 2
      %v4053 = vand.u32 %v4051, 3
      %v4054 = vsub.s32 0, %v4053
      %v4055 = vsel %vm4049, %v4054, %v4053
      %vm4056 = vcmp.lt.s32.totalorder %v1269, 0
      %v4057 = vsub.s32 0, %v1269
      %v4058 = vsel %vm4056, %v4057, %v1269
      %v4059 = vshrl.u32 %v4058, 2
      %v4060 = vand.u32 %v4058, 3
      %v4061 = vsub.s32 0, %v4060
      %v4062 = vsel %vm4056, %v4061, %v4060
      %vm4063 = vcmp.lt.s32.totalorder %v1270, 0
      %v4064 = vsub.s32 0, %v1270
      %v4065 = vsel %vm4063, %v4064, %v1270
      %v4066 = vshrl.u32 %v4065, 2
      %v4067 = vand.u32 %v4065, 3
      %v4068 = vsub.s32 0, %v4067
      %v4069 = vsel %vm4063, %v4068, %v4067
      %vm4070 = vcmp.lt.s32.totalorder %v1271, 0
      %v4071 = vsub.s32 0, %v1271
      %v4072 = vsel %vm4070, %v4071, %v1271
      %v4073 = vshrl.u32 %v4072, 2
      %v4074 = vand.u32 %v4072, 3
      %v4075 = vsub.s32 0, %v4074
      %v4076 = vsel %vm4070, %v4075, %v4074
      %vm4077 = vcmp.lt.s32.totalorder %v1272, 0
      %v4078 = vsub.s32 0, %v1272
      %v4079 = vsel %vm4077, %v4078, %v1272
      %v4080 = vshrl.u32 %v4079, 2
      %v4081 = vand.u32 %v4079, 3
      %v4082 = vsub.s32 0, %v4081
      %v4083 = vsel %vm4077, %v4082, %v4081
      %vm4084 = vcmp.lt.s32.totalorder %v1273, 0
      %v4085 = vsub.s32 0, %v1273
      %v4086 = vsel %vm4084, %v4085, %v1273
      %v4087 = vshrl.u32 %v4086, 2
      %v4088 = vand.u32 %v4086, 3
      %v4089 = vsub.s32 0, %v4088
      %v4090 = vsel %vm4084, %v4089, %v4088
      %vm4091 = vcmp.lt.s32.totalorder %v1274, 0
      %v4092 = vsub.s32 0, %v1274
      %v4093 = vsel %vm4091, %v4092, %v1274
      %v4094 = vshrl.u32 %v4093, 2
      %v4095 = vand.u32 %v4093, 3
      %v4096 = vsub.s32 0, %v4095
      %v4097 = vsel %vm4091, %v4096, %v4095
      %vm4098 = vcmp.ne.s32.totalorder %v3992, 0
      %vm4099 = vcmp.ne.s32.totalorder %v3999, 0
      %vm4100 = vcmp.ne.s32.totalorder %v4006, 0
      %vm4101 = vcmp.ne.s32.totalorder %v4013, 0
      %vm4102 = vcmp.ne.s32.totalorder %v4020, 0
      %vm4103 = vcmp.ne.s32.totalorder %v4027, 0
      %vm4104 = vcmp.ne.s32.totalorder %v4034, 0
      %vm4105 = vcmp.ne.s32.totalorder %v4041, 0
      %vm4106 = vcmp.ne.s32.totalorder %v4048, 0
      %vm4107 = vcmp.ne.s32.totalorder %v4055, 0
      %vm4108 = vcmp.ne.s32.totalorder %v4062, 0
      %vm4109 = vcmp.ne.s32.totalorder %v4069, 0
      %vm4110 = vcmp.ne.s32.totalorder %v4076, 0
      %vm4111 = vcmp.ne.s32.totalorder %v4083, 0
      %vm4112 = vcmp.ne.s32.totalorder %v4090, 0
      %vm4113 = vcmp.ne.s32.totalorder %v4097, 0
      %vm4114 = vcmp.lt.s32.totalorder %v3992, 0
      %vm4115 = vcmp.lt.s32.totalorder %v3999, 0
      %vm4116 = vcmp.lt.s32.totalorder %v4006, 0
      %vm4117 = vcmp.lt.s32.totalorder %v4013, 0
      %vm4118 = vcmp.lt.s32.totalorder %v4020, 0
      %vm4119 = vcmp.lt.s32.totalorder %v4027, 0
      %vm4120 = vcmp.lt.s32.totalorder %v4034, 0
      %vm4121 = vcmp.lt.s32.totalorder %v4041, 0
      %vm4122 = vcmp.lt.s32.totalorder %v4048, 0
      %vm4123 = vcmp.lt.s32.totalorder %v4055, 0
      %vm4124 = vcmp.lt.s32.totalorder %v4062, 0
      %vm4125 = vcmp.lt.s32.totalorder %v4069, 0
      %vm4126 = vcmp.lt.s32.totalorder %v4076, 0
      %vm4127 = vcmp.lt.s32.totalorder %v4083, 0
      %vm4128 = vcmp.lt.s32.totalorder %v4090, 0
      %vm4129 = vcmp.lt.s32.totalorder %v4097, 0
      %vm4130 = vmand %vm4114, %vm4098
      %vm4131 = vmand %vm4115, %vm4099
      %vm4132 = vmand %vm4116, %vm4100
      %vm4133 = vmand %vm4117, %vm4101
      %vm4134 = vmand %vm4118, %vm4102
      %vm4135 = vmand %vm4119, %vm4103
      %vm4136 = vmand %vm4120, %vm4104
      %vm4137 = vmand %vm4121, %vm4105
      %vm4138 = vmand %vm4122, %vm4106
      %vm4139 = vmand %vm4123, %vm4107
      %vm4140 = vmand %vm4124, %vm4108
      %vm4141 = vmand %vm4125, %vm4109
      %vm4142 = vmand %vm4126, %vm4110
      %vm4143 = vmand %vm4127, %vm4111
      %vm4144 = vmand %vm4128, %vm4112
      %vm4145 = vmand %vm4129, %vm4113
      %v4146 = vadd.s32 %v3992, 4
      %v4147 = vadd.s32 %v3999, 4
      %v4148 = vadd.s32 %v4006, 4
      %v4149 = vadd.s32 %v4013, 4
      %v4150 = vadd.s32 %v4020, 4
      %v4151 = vadd.s32 %v4027, 4
      %v4152 = vadd.s32 %v4034, 4
      %v4153 = vadd.s32 %v4041, 4
      %v4154 = vadd.s32 %v4048, 4
      %v4155 = vadd.s32 %v4055, 4
      %v4156 = vadd.s32 %v4062, 4
      %v4157 = vadd.s32 %v4069, 4
      %v4158 = vadd.s32 %v4076, 4
      %v4159 = vadd.s32 %v4083, 4
      %v4160 = vadd.s32 %v4090, 4
      %v4161 = vadd.s32 %v4097, 4
      %v4162 = vsel %vm4130, %v4146, %v3992
      %v4163 = vsel %vm4131, %v4147, %v3999
      %v4164 = vsel %vm4132, %v4148, %v4006
      %v4165 = vsel %vm4133, %v4149, %v4013
      %v4166 = vsel %vm4134, %v4150, %v4020
      %v4167 = vsel %vm4135, %v4151, %v4027
      %v4168 = vsel %vm4136, %v4152, %v4034
      %v4169 = vsel %vm4137, %v4153, %v4041
      %v4170 = vsel %vm4138, %v4154, %v4048
      %v4171 = vsel %vm4139, %v4155, %v4055
      %v4172 = vsel %vm4140, %v4156, %v4062
      %v4173 = vsel %vm4141, %v4157, %v4069
      %v4174 = vsel %vm4142, %v4158, %v4076
      %v4175 = vsel %vm4143, %v4159, %v4083
      %v4176 = vsel %vm4144, %v4160, %v4090
      %v4177 = vsel %vm4145, %v4161, %v4097
      %vm4178 = vcmp.ne.s32.totalorder %v4162, 0
      %vm4179 = vcmp.ne.s32.totalorder %v4163, 0
      %vm4180 = vcmp.ne.s32.totalorder %v4164, 0
      %vm4181 = vcmp.ne.s32.totalorder %v4165, 0
      %vm4182 = vcmp.ne.s32.totalorder %v4166, 0
      %vm4183 = vcmp.ne.s32.totalorder %v4167, 0
      %vm4184 = vcmp.ne.s32.totalorder %v4168, 0
      %vm4185 = vcmp.ne.s32.totalorder %v4169, 0
      %vm4186 = vcmp.ne.s32.totalorder %v4170, 0
      %vm4187 = vcmp.ne.s32.totalorder %v4171, 0
      %vm4188 = vcmp.ne.s32.totalorder %v4172, 0
      %vm4189 = vcmp.ne.s32.totalorder %v4173, 0
      %vm4190 = vcmp.ne.s32.totalorder %v4174, 0
      %vm4191 = vcmp.ne.s32.totalorder %v4175, 0
      %vm4192 = vcmp.ne.s32.totalorder %v4176, 0
      %vm4193 = vcmp.ne.s32.totalorder %v4177, 0
      %v4194 = vsel %vm4178, %v3985, 0.0
      %v4195 = vsel %vm4179, %v3984, 0.0
      %v4196 = vsel %vm4180, %v3983, 0.0
      %v4197 = vsel %vm4181, %v3982, 0.0
      %v4198 = vsel %vm4182, %v3981, 0.0
      %v4199 = vsel %vm4183, %v3980, 0.0
      %v4200 = vsel %vm4184, %v3979, 0.0
      %v4201 = vsel %vm4185, %v3978, 0.0
      %v4202 = vsel %vm4186, %v3977, 0.0
      %v4203 = vsel %vm4187, %v3976, 0.0
      %v4204 = vsel %vm4188, %v3975, 0.0
      %v4205 = vsel %vm4189, %v3974, 0.0
      %v4206 = vsel %vm4190, %v3973, 0.0
      %v4207 = vsel %vm4191, %v3972, 0.0
      %v4208 = vsel %vm4192, %v3971, 0.0
      %v4209 = vsel %vm4193, %v3970, 0.0
      %v4210 = vadd.f32 %v4194, %v3907
      %v4211 = vadd.f32 %v4195, %v3910
      %v4212 = vadd.f32 %v4196, %v3913
      %v4213 = vadd.f32 %v4197, %v3916
      %v4214 = vadd.f32 %v4198, %v3919
      %v4215 = vadd.f32 %v4199, %v3922
      %v4216 = vadd.f32 %v4200, %v3925
      %v4217 = vadd.f32 %v4201, %v3928
      %v4218 = vadd.f32 %v4202, %v3931
      %v4219 = vadd.f32 %v4203, %v3934
      %v4220 = vadd.f32 %v4204, %v3937
      %v4221 = vadd.f32 %v4205, %v3940
      %v4222 = vadd.f32 %v4206, %v3943
      %v4223 = vadd.f32 %v4207, %v3946
      %v4224 = vadd.f32 %v4208, %v3949
      %v4225 = vadd.f32 %v4209, %v3952
      %4242 = vrot.lane.b32.xlu0 %v3826, 64
      %v4243 = vpop.permute.xlu0 %4242
      %4244 = vrot.lane.b32.xlu0 %v3829, 64
      %v4245 = vpop.permute.xlu0 %4244
      %4246 = vrot.lane.b32.xlu0 %v3832, 64
      %v4247 = vpop.permute.xlu0 %4246
      %4248 = vrot.lane.b32.xlu0 %v3835, 64
      %v4249 = vpop.permute.xlu0 %4248
      %4250 = vrot.lane.b32.xlu0 %v3838, 64
      %v4251 = vpop.permute.xlu0 %4250
      %4252 = vrot.lane.b32.xlu0 %v3841, 64
      %v4253 = vpop.permute.xlu0 %4252
      %4254 = vrot.lane.b32.xlu0 %v3844, 64
      %v4255 = vpop.permute.xlu0 %4254
      %4256 = vrot.lane.b32.xlu0 %v3847, 64
      %v4257 = vpop.permute.xlu0 %4256
      %4258 = vrot.lane.b32.xlu0 %v3850, 64
      %v4259 = vpop.permute.xlu0 %4258
      %4260 = vrot.lane.b32.xlu0 %v3853, 64
      %v4261 = vpop.permute.xlu0 %4260
      %4262 = vrot.lane.b32.xlu0 %v3856, 64
      %v4263 = vpop.permute.xlu0 %4262
      %4264 = vrot.lane.b32.xlu0 %v3859, 64
      %v4265 = vpop.permute.xlu0 %4264
      %4266 = vrot.lane.b32.xlu0 %v3862, 64
      %v4267 = vpop.permute.xlu0 %4266
      %4268 = vrot.lane.b32.xlu0 %v3865, 64
      %v4269 = vpop.permute.xlu0 %4268
      %4270 = vrot.lane.b32.xlu0 %v3868, 64
      %v4271 = vpop.permute.xlu0 %4270
      %4272 = vrot.lane.b32.xlu0 %v3871, 64
      %v4273 = vpop.permute.xlu0 %4272
      %v4290 = vadd.f32 %v4210, %v4243
      %v4291 = vadd.f32 %v4211, %v4245
      %v4292 = vadd.f32 %v4212, %v4247
      %v4293 = vadd.f32 %v4213, %v4249
      %v4294 = vadd.f32 %v4214, %v4251
      %v4295 = vadd.f32 %v4215, %v4253
      %v4296 = vadd.f32 %v4216, %v4255
      %v4297 = vadd.f32 %v4217, %v4257
      %v4298 = vadd.f32 %v4218, %v4259
      %v4299 = vadd.f32 %v4219, %v4261
      %v4300 = vadd.f32 %v4220, %v4263
      %v4301 = vadd.f32 %v4221, %v4265
      %v4302 = vadd.f32 %v4222, %v4267
      %v4303 = vadd.f32 %v4223, %v4269
      %v4304 = vadd.f32 %v4224, %v4271
      %v4305 = vadd.f32 %v4225, %v4273
      %v4306 = vperm.slane %v3728, 0
      %v4307 = vadd.f32 %v4290, %v4306
      %v4308 = vadd.f32 %v4291, %v4306
      %v4309 = vadd.f32 %v4292, %v4306
      %v4310 = vadd.f32 %v4293, %v4306
      %v4311 = vadd.f32 %v4294, %v4306
      %v4312 = vadd.f32 %v4295, %v4306
      %v4313 = vadd.f32 %v4296, %v4306
      %v4314 = vadd.f32 %v4297, %v4306
      %v4315 = vadd.f32 %v4298, %v4306
      %v4316 = vadd.f32 %v4299, %v4306
      %v4317 = vadd.f32 %v4300, %v4306
      %v4318 = vadd.f32 %v4301, %v4306
      %v4319 = vadd.f32 %v4302, %v4306
      %v4320 = vadd.f32 %v4303, %v4306
      %v4321 = vadd.f32 %v4304, %v4306
      %v4322 = vadd.f32 %v4305, %v4306
      %v4323 = vmax.f32 %v4307, 0.0
      %v4324 = vmax.f32 %v4308, 0.0
      %v4325 = vmax.f32 %v4309, 0.0
      %v4326 = vmax.f32 %v4310, 0.0
      %v4327 = vmax.f32 %v4311, 0.0
      %v4328 = vmax.f32 %v4312, 0.0
      %v4329 = vmax.f32 %v4313, 0.0
      %v4330 = vmax.f32 %v4314, 0.0
      %v4331 = vmax.f32 %v4315, 0.0
      %v4332 = vmax.f32 %v4316, 0.0
      %v4333 = vmax.f32 %v4317, 0.0
      %v4334 = vmax.f32 %v4318, 0.0
      %v4335 = vmax.f32 %v4319, 0.0
      %v4336 = vmax.f32 %v4320, 0.0
      %v4337 = vmax.f32 %v4321, 0.0
      %v4338 = vmax.f32 %v4322, 0.0
      %vm4339 = vcmask 523264
      %4340 = vst.msk [vmem:[#allocation4] sm:$0xff] %vm4339, %v4323
      %4341 = vst.msk [vmem:[#allocation4 + $0x8] sm:$0xff] %vm4339, %v4324
      %4342 = vst.msk [vmem:[#allocation4 + $0x10] sm:$0xff] %vm4339, %v4325
      %4343 = vst.msk [vmem:[#allocation4 + $0x18] sm:$0xff] %vm4339, %v4326
      %4344 = vst.msk [vmem:[#allocation4 + $0x20] sm:$0xff] %vm4339, %v4327
      %4345 = vst.msk [vmem:[#allocation4 + $0x28] sm:$0xff] %vm4339, %v4328
      %4346 = vst.msk [vmem:[#allocation4 + $0x30] sm:$0xff] %vm4339, %v4329
      %4347 = vst.msk [vmem:[#allocation4 + $0x38] sm:$0xff] %vm4339, %v4330
      %4348 = vst.msk [vmem:[#allocation4 + $0x40] sm:$0xff] %vm4339, %v4331
      %4349 = vst.msk [vmem:[#allocation4 + $0x48] sm:$0xff] %vm4339, %v4332
      %4350 = vst.msk [vmem:[#allocation4 + $0x50] sm:$0xff] %vm4339, %v4333
      %4351 = vst.msk [vmem:[#allocation4 + $0x58] sm:$0xff] %vm4339, %v4334
      %4352 = vst.msk [vmem:[#allocation4 + $0x60] sm:$0xff] %vm4339, %v4335
      %4353 = vst.msk [vmem:[#allocation4 + $0x68] sm:$0xff] %vm4339, %v4336
      %4354 = vst.msk [vmem:[#allocation4 + $0x70] sm:$0xff] %vm4339, %v4337
      %4355 = vst.msk [vmem:[#allocation4 + $0x78] sm:$0xff] %vm4339, %v4338
      %v4356 = vld [vmem:[#allocation4] ss:$4 sm:$0xff]
      %s4357 = scalar_lea.vmem [#allocation4], 32
      %v4358 = vld [vmem:[%s4357] ss:$4 sm:$0xff]
      %s4359 = scalar_lea.vmem [#allocation4], 64
      %v4360 = vld [vmem:[%s4359] ss:$4 sm:$0xff]
      %s4361 = scalar_lea.vmem [#allocation4], 96
      %v4362 = vld [vmem:[%s4361] ss:$4 sm:$0xff]
      %v4363 = vld [vmem:[%s2] sm:$0xff]
      %v4364 = vld [vmem:[%s2 + $0x8] sm:$0xff]
      %v4365 = vld [vmem:[%s2 + $0x10] sm:$0xff]
      %v4366 = vld [vmem:[%s2 + $0x18] sm:$0xff]
      %v4367 = vld [vmem:[%s2 + $0x20] sm:$0xff]
      %v4368 = vld [vmem:[%s2 + $0x28] sm:$0xff]
      %v4369 = vld [vmem:[%s2 + $0x30] sm:$0xff]
      %v4370 = vld [vmem:[%s2 + $0x38] sm:$0xff]
      %s4371 = scalar_lea.vmem [#allocation4], 1
      %v4372 = vld [vmem:[%s4371] ss:$4 sm:$0xff]
      %s4373 = scalar_lea.vmem [#allocation4], 33
      %v4374 = vld [vmem:[%s4373] ss:$4 sm:$0xff]
      %s4375 = scalar_lea.vmem [#allocation4], 65
      %v4376 = vld [vmem:[%s4375] ss:$4 sm:$0xff]
      %s4377 = scalar_lea.vmem [#allocation4], 97
      %v4378 = vld [vmem:[%s4377] ss:$4 sm:$0xff]
      %v4379 = vld [vmem:[%s2 + $0x40] sm:$0xff]
      %v4380 = vld [vmem:[%s2 + $0x48] sm:$0xff]
      %v4381 = vld [vmem:[%s2 + $0x50] sm:$0xff]
      %v4382 = vld [vmem:[%s2 + $0x58] sm:$0xff]
      %v4383 = vld [vmem:[%s2 + $0x60] sm:$0xff]
      %v4384 = vld [vmem:[%s2 + $0x68] sm:$0xff]
      %v4385 = vld [vmem:[%s2 + $0x70] sm:$0xff]
      %v4386 = vld [vmem:[%s2 + $0x78] sm:$0xff]
      %v4388 = vsel %vm4339, %v4372, 0
      %v4391 = vsel %vm4339, %v4374, 0
      %v4394 = vsel %vm4339, %v4376, 0
      %v4397 = vsel %vm4339, %v4378, 0
      %4399 = vmatpush.msra.mxu0 0.0
      %4400 = vmatpush.msra.mxu0 0.0
      %4401 = vmatpush.msra.mxu0 0.0
      %4402 = vmatpush.msra.mxu0 0.0
      %4403 = vmatpush.msra.mxu0 0.0
      %4404 = vmatpush.msra.mxu0 0.0
      %4405 = vmatpush.msra.mxu0 0.0
      %4406 = vmatpush.msra.mxu0 0.0
      %4407 = vmatpush.msra.mxu0 %v4386
      %4408 = vmatpush.msra.mxu0 %v4385
      %4409 = vmatpush.msra.mxu0 %v4384
      %4410 = vmatpush.msra.mxu0 %v4383
      %4411 = vmatpush.msra.mxu0 %v4382
      %4412 = vmatpush.msra.mxu0 %v4381
      %4413 = vmatpush.msra.mxu0 %v4380
      %4414 = vmatpush.msra.mxu0 %v4379
      %4415 = vmatmul.f32.gmra.mxu0 %v4388
      %v4416 = vpop.f32.mrf.mxu0
      %v4417 = vadd.f32 0.0, %v4416
      %4418 = vmatmul.f32.gmra.mxu0 %v4391
      %v4419 = vpop.f32.mrf.mxu0
      %v4420 = vadd.f32 0.0, %v4419
      %4421 = vmatmul.f32.gmra.mxu0 %v4394
      %v4422 = vpop.f32.mrf.mxu0
      %v4423 = vadd.f32 0.0, %v4422
      %4424 = vmatmul.f32.gmra.mxu0 %v4397
      %v4425 = vpop.f32.mrf.mxu0
      %v4426 = vadd.f32 0.0, %v4425
      %4427 = vdwg.mxu0
      %v4429 = vsel %vm4339, %v4356, 0
      %v4432 = vsel %vm4339, %v4358, 0
      %v4435 = vsel %vm4339, %v4360, 0
      %v4438 = vsel %vm4339, %v4362, 0
      %4440 = vmatpush.msra.mxu0 0.0
      %4441 = vmatpush.msra.mxu0 0.0
      %4442 = vmatpush.msra.mxu0 0.0
      %4443 = vmatpush.msra.mxu0 0.0
      %4444 = vmatpush.msra.mxu0 0.0
      %4445 = vmatpush.msra.mxu0 0.0
      %4446 = vmatpush.msra.mxu0 0.0
      %4447 = vmatpush.msra.mxu0 0.0
      %4448 = vmatpush.msra.mxu0 %v4370
      %4449 = vmatpush.msra.mxu0 %v4369
      %4450 = vmatpush.msra.mxu0 %v4368
      %4451 = vmatpush.msra.mxu0 %v4367
      %4452 = vmatpush.msra.mxu0 %v4366
      %4453 = vmatpush.msra.mxu0 %v4365
      %4454 = vmatpush.msra.mxu0 %v4364
      %4455 = vmatpush.msra.mxu0 %v4363
      %4456 = vmatmul.f32.gmra.mxu0 %v4429
      %v4457 = vpop.f32.mrf.mxu0
      %v4458 = vadd.f32 %v4417, %v4457
      %4459 = vmatmul.f32.gmra.mxu0 %v4432
      %v4460 = vpop.f32.mrf.mxu0
      %v4461 = vadd.f32 %v4420, %v4460
      %4462 = vmatmul.f32.gmra.mxu0 %v4435
      %v4463 = vpop.f32.mrf.mxu0
      %v4464 = vadd.f32 %v4423, %v4463
      %4465 = vmatmul.f32.gmra.mxu0 %v4438
      %v4466 = vpop.f32.mrf.mxu0
      %v4467 = vadd.f32 %v4426, %v4466
      %4468 = vdwg.mxu0
      %s4469 = scalar_lea.vmem [#allocation4], 2
      %v4470 = vld [vmem:[%s4469] ss:$4 sm:$0xff]
      %s4471 = scalar_lea.vmem [#allocation4], 34
      %v4472 = vld [vmem:[%s4471] ss:$4 sm:$0xff]
      %s4473 = scalar_lea.vmem [#allocation4], 66
      %v4474 = vld [vmem:[%s4473] ss:$4 sm:$0xff]
      %s4475 = scalar_lea.vmem [#allocation4], 98
      %v4476 = vld [vmem:[%s4475] ss:$4 sm:$0xff]
      %v4477 = vld [vmem:[%s2 + $0x80] sm:$0xff]
      %v4478 = vld [vmem:[%s2 + $0x88] sm:$0xff]
      %v4479 = vld [vmem:[%s2 + $0x90] sm:$0xff]
      %v4480 = vld [vmem:[%s2 + $0x98] sm:$0xff]
      %v4481 = vld [vmem:[%s2 + $0xa0] sm:$0xff]
      %v4482 = vld [vmem:[%s2 + $0xa8] sm:$0xff]
      %v4483 = vld [vmem:[%s2 + $0xb0] sm:$0xff]
      %v4484 = vld [vmem:[%s2 + $0xb8] sm:$0xff]
      %v4486 = vsel %vm4339, %v4470, 0
      %v4489 = vsel %vm4339, %v4472, 0
      %v4492 = vsel %vm4339, %v4474, 0
      %v4495 = vsel %vm4339, %v4476, 0
      %4497 = vmatpush.msra.mxu0 0.0
      %4498 = vmatpush.msra.mxu0 0.0
      %4499 = vmatpush.msra.mxu0 0.0
      %4500 = vmatpush.msra.mxu0 0.0
      %4501 = vmatpush.msra.mxu0 0.0
      %4502 = vmatpush.msra.mxu0 0.0
      %4503 = vmatpush.msra.mxu0 0.0
      %4504 = vmatpush.msra.mxu0 0.0
      %4505 = vmatpush.msra.mxu0 %v4484
      %4506 = vmatpush.msra.mxu0 %v4483
      %4507 = vmatpush.msra.mxu0 %v4482
      %4508 = vmatpush.msra.mxu0 %v4481
      %4509 = vmatpush.msra.mxu0 %v4480
      %4510 = vmatpush.msra.mxu0 %v4479
      %4511 = vmatpush.msra.mxu0 %v4478
      %4512 = vmatpush.msra.mxu0 %v4477
      %4513 = vmatmul.f32.gmra.mxu0 %v4486
      %v4514 = vpop.f32.mrf.mxu0
      %v4515 = vadd.f32 0.0, %v4514
      %4516 = vmatmul.f32.gmra.mxu0 %v4489
      %v4517 = vpop.f32.mrf.mxu0
      %v4518 = vadd.f32 0.0, %v4517
      %4519 = vmatmul.f32.gmra.mxu0 %v4492
      %v4520 = vpop.f32.mrf.mxu0
      %v4521 = vadd.f32 0.0, %v4520
      %4522 = vmatmul.f32.gmra.mxu0 %v4495
      %v4523 = vpop.f32.mrf.mxu0
      %v4524 = vadd.f32 0.0, %v4523
      %4525 = vdwg.mxu0
      %v4526 = vadd.f32 %v4458, %v4515
      %v4527 = vadd.f32 %v4461, %v4518
      %v4528 = vadd.f32 %v4464, %v4521
      %v4529 = vadd.f32 %v4467, %v4524
      %s4530 = scalar_lea.vmem [#allocation4], 3
      %v4531 = vld [vmem:[%s4530] ss:$4 sm:$0xff]
      %s4532 = scalar_lea.vmem [#allocation4], 35
      %v4533 = vld [vmem:[%s4532] ss:$4 sm:$0xff]
      %s4534 = scalar_lea.vmem [#allocation4], 67
      %v4535 = vld [vmem:[%s4534] ss:$4 sm:$0xff]
      %s4536 = scalar_lea.vmem [#allocation4], 99
      %v4537 = vld [vmem:[%s4536] ss:$4 sm:$0xff]
      %v4538 = vld [vmem:[%s2 + $0xc0] sm:$0xff]
      %v4539 = vld [vmem:[%s2 + $0xc8] sm:$0xff]
      %v4540 = vld [vmem:[%s2 + $0xd0] sm:$0xff]
      %v4541 = vld [vmem:[%s2 + $0xd8] sm:$0xff]
      %v4542 = vld [vmem:[%s2 + $0xe0] sm:$0xff]
      %v4543 = vld [vmem:[%s2 + $0xe8] sm:$0xff]
      %v4544 = vld [vmem:[%s2 + $0xf0] sm:$0xff]
      %v4545 = vld [vmem:[%s2 + $0xf8] sm:$0xff]
      %v4547 = vsel %vm4339, %v4531, 0
      %v4550 = vsel %vm4339, %v4533, 0
      %v4553 = vsel %vm4339, %v4535, 0
      %v4556 = vsel %vm4339, %v4537, 0
      %4558 = vmatpush.msra.mxu0 0.0
      %4559 = vmatpush.msra.mxu0 0.0
      %4560 = vmatpush.msra.mxu0 0.0
      %4561 = vmatpush.msra.mxu0 0.0
      %4562 = vmatpush.msra.mxu0 0.0
      %4563 = vmatpush.msra.mxu0 0.0
      %4564 = vmatpush.msra.mxu0 0.0
      %4565 = vmatpush.msra.mxu0 0.0
      %4566 = vmatpush.msra.mxu0 %v4545
      %4567 = vmatpush.msra.mxu0 %v4544
      %4568 = vmatpush.msra.mxu0 %v4543
      %4569 = vmatpush.msra.mxu0 %v4542
      %4570 = vmatpush.msra.mxu0 %v4541
      %4571 = vmatpush.msra.mxu0 %v4540
      %4572 = vmatpush.msra.mxu0 %v4539
      %4573 = vmatpush.msra.mxu0 %v4538
      %4574 = vmatmul.f32.gmra.mxu0 %v4547
      %v4575 = vpop.f32.mrf.mxu0
      %v4576 = vadd.f32 0.0, %v4575
      %4577 = vmatmul.f32.gmra.mxu0 %v4550
      %v4578 = vpop.f32.mrf.mxu0
      %v4579 = vadd.f32 0.0, %v4578
      %4580 = vmatmul.f32.gmra.mxu0 %v4553
      %v4581 = vpop.f32.mrf.mxu0
      %v4582 = vadd.f32 0.0, %v4581
      %4583 = vmatmul.f32.gmra.mxu0 %v4556
      %v4584 = vpop.f32.mrf.mxu0
      %v4585 = vadd.f32 0.0, %v4584
      %4586 = vdwg.mxu0
      %v4587 = vadd.f32 %v4526, %v4576
      %v4588 = vadd.f32 %v4527, %v4579
      %v4589 = vadd.f32 %v4528, %v4582
      %v4590 = vadd.f32 %v4529, %v4585
      %v4591 = vld [vmem:[%s3 + $0x3] sm:$0x1]
      %v4592 = vperm.slane %v4591, 0
      %v4593 = vadd.f32 %v4587, %v4592
      %v4594 = vadd.f32 %v4588, %v4592
      %v4595 = vadd.f32 %v4589, %v4592
      %v4596 = vadd.f32 %v4590, %v4592
      %v4597 = vmax.f32 %v4593, 0.0
      %v4598 = vmax.f32 %v4594, 0.0
      %v4599 = vmax.f32 %v4595, 0.0
      %v4600 = vmax.f32 %v4596, 0.0
      %v4601 = vld [vmem:[%s3 + $0x4] sm:$0x3]
      %4603 = vset.pattern.permute.xlu0 16
      %4604 = vperm.xlu0 %4603, %v4601
      %v4605 = vpop.permute.xlu0 %4604
      %vm4607 = vcmask 130048
      %v4608 = vsel %vm4607, %v4601, 0
      %v4611 = vsel %vm4607, %v4597, 0
      %v4614 = vsel %vm4607, %v4598, 0
      %v4617 = vsel %vm4607, %v4599, 0
      %v4620 = vsel %vm4607, %v4600, 0
      %4622 = vmatpush.xpose.msra.mxu0 0.0
      %4623 = vmatpush.xpose.msra.mxu0 0.0
      %4624 = vmatpush.xpose.msra.mxu0 0.0
      %4625 = vmatpush.xpose.msra.mxu0 0.0
      %4626 = vmatpush.xpose.msra.mxu0 0.0
      %4627 = vmatpush.xpose.msra.mxu0 0.0
      %4628 = vmatpush.xpose.msra.mxu0 0.0
      %4629 = vmatpush.xpose.msra.mxu0 0.0
      %4630 = vmatpush.xpose.msra.mxu0 0.0
      %4631 = vmatpush.xpose.msra.mxu0 0.0
      %4632 = vmatpush.xpose.msra.mxu0 0.0
      %4633 = vmatpush.xpose.msra.mxu0 0.0
      %4634 = vmatpush.xpose.msra.mxu0 %v4620
      %4635 = vmatpush.xpose.msra.mxu0 %v4617
      %4636 = vmatpush.xpose.msra.mxu0 %v4614
      %4637 = vmatpush.xpose.msra.mxu0 %v4611
      %4638 = vmatmul.f32.gmra.mxu0 %v4608
      %v4639 = vpop.f32.mrf.mxu0
      %v4640 = vadd.f32 %v4605, %v4639
      %4641 = vdwg.mxu0
      %v4642 = vmax.f32 %v4640, 0.0
      %vm4643 = vcmask 254976
      %v4644 = vsel %vm4643, %v4642, -inf
      %v4645 = vrot.slane %v4644, 4
      %v4646 = vmax.f32 %v4644, %v4645
      %v4647 = vrot.slane %v4646, 2
      %v4648 = vmax.f32 %v4646, %v4647
      %v4649 = vrot.slane %v4648, 1
      %v4650 = vmax.f32 %v4648, %v4649
      %v4651 = vsub.f32 %v4642, %v4650
      %v4652 = vmul.f32 %v4651, 1.442695
      %v4653 = vpow.pop %v4652
      %v4654 = vsel %vm4643, %v4653, 0.0
      %v4655 = vrot.slane %v4654, 4
      %v4656 = vadd.f32 %v4654, %v4655
      %v4657 = vrot.slane %v4656, 2
      %v4658 = vadd.f32 %v4656, %v4657
      %v4659 = vrot.slane %v4658, 1
      %v4660 = vadd.f32 %v4658, %v4659
      %v4661 = vrcp.pop %v4660
      %v4662 = vmul.f32 %v4660, %v4661
      %v4663 = vsub.f32 1.0, %v4662
      %v4664 = vmul.f32 %v4661, %v4663
      %v4665 = vadd.f32 %v4661, %v4664
      %vm4666 = vweird.f32 %v4660
      %vm4667 = vweird.f32 %v4661
      %vm4668 = vmor %vm4666, %vm4667
      %v4669 = vsel %vm4668, %v4661, %v4665
      %v4670 = vand.u32 2147483647, %v4660
      %vm4671 = vcmp.eq.f32.partialorder %v4670, 8.507059e+37
      %v4672 = vand.u32 %v4660, 2147483648
      %v4673 = vor.u32 1.1754944e-38, %v4672
      %v4674 = vsel %vm4671, %v4673, %v4669
      %v4675 = vmul.f32 %v4653, %v4674
      %4676 = vst.msk [vmem:[%s197] sm:$0x3] %vm4643, %v4675
      %p4677 = scmp.lt.s32.totalorder %s15, 1
      %s4678 = scalar_select %p4677, %s15, 1
      %s4679 = smul.addr %s4678, 2
      %s4680 = scalar_lea.vmem %s4, %s4679
      // Predicated region
      $region37: #{separate_model_forward.1} parent=35 // pred_check
        %p4681 = pneg %p122
      $region38: #{separate_model_forward.1} parent=35 // pred_check_branch
        %4683 = sbr.rel (%p4681) target = $region40
      $region39: #{separate_model_forward.1} parent=35 // pred_region
        _
      $region40: #{separate_model_forward.1} parent=35 // pred_fallthru
        _
    $region36: #{separate_model_forward.1} parent=5 // pred_fallthru
      _
    %p4684 = scmp.le.s32.totalorder 2, %s10
    // Predicated region
    $region41: #{separate_model_forward.1} parent=5 // pred_check
      %p4685 = pneg %p4684
    $region42: #{separate_model_forward.1} parent=5 // pred_check_branch
      %4687 = sbr.rel (%p4685) target = $region44
    $region43: #{separate_model_forward.1} parent=5 // pred_region
      %s4688 = ssub.s32 %s10, 2
      // Predicated region
      $region45: #{separate_model_forward.1} parent=43 // pred_check
        %p4689 = pneg %p128
      $region46: #{separate_model_forward.1} parent=43 // pred_check_branch
        %4691 = sbr.rel (%p4689) target = $region48
      $region47: #{separate_model_forward.1} parent=43 // pred_region
        %p4692 = scmp.lt.s32.totalorder %s16, 1
        %s4693 = scalar_select %p4692, %s16, 1
        %s4694 = smul.addr %s4693, 2
        %s4695 = scalar_lea.vmem %s4, %s4694
      $region48: #{separate_model_forward.1} parent=43 // pred_fallthru
        _
    $region44: #{separate_model_forward.1} parent=5 // pred_fallthru
      _
  $region6: #{separate_model_forward.1} parent=0 // loop_footer
    %s14 = sadd.s32 1, %s10
  $region7: #{separate_model_forward.1} parent=0 // loop_footer_branch
    %9 = sbr.rel target = $region3
  $region8: #{separate_model_forward.1} parent=0 // loop_exit
    _

</llo_original>
